<compile_context>
chip_gen: v6e
topology: v6e:2x2x1
jax: 0.10.0
libtpu: 0.0.40
codegen_flags: <defaults>
</compile_context>

<pallas_src>
import jax
import jax.numpy as jnp
import numpy as np
from jax import lax
from jax.experimental import pallas as pl
from jax.experimental.pallas import tpu as pltpu


# ----------------------------- Config -----------------------------

class Config:
    embed_size = 16
    pos_embed_size = 8
    hidden_size = 32
    hidden_layers = 2
    dropout_keep = 0.0      # inference: dropout is identity (only valid at inference)
    bidirectional = True
    output_size = 4


def _round_up(x, m):
    return -(-x // m) * m


# ----------------------------- Fully fused kernel -----------------------------

def _make_bilstm_kernel(S, Bp, H, num_layers, B, O, Vtot):
    SB = S * Bp
    H2, H6 = 2 * H, 6 * H

    def kernel(*refs):
        tok_ref, pos_ref = refs[0], refs[1]                      # (SB, 1) int32 each
        layer_refs = refs[2:2 + 4 * num_layers]                  # (wxf, wxr, wh, b) * L
        fcw_ref = refs[2 + 4 * num_layers]                       # (2H*L, O) f32
        fcb_ref = refs[3 + 4 * num_layers]                       # (1, O)    f32
        out_ref = refs[4 + 4 * num_layers]                       # (B, O)    f32
        seq_scr = refs[5 + 4 * num_layers:]                      # (L-1) x (SB, 2H) f32

        def x_project(x_bf16, wxf_ref, wxr_ref, b_ref):
            # One matmul per direction for ALL time steps (off the serial critical path).
            pf = jnp.dot(x_bf16, wxf_ref[...], preferred_element_type=jnp.float32)
            pr = jnp.dot(x_bf16, wxr_ref[...], preferred_element_type=jnp.float32)
            bias = b_ref[...]
            # Per-step x-contribution: fwd dir consumes x_t, rev dir consumes x_{S-1-t}.
            return [pf[t * Bp:(t + 1) * Bp] + pr[(S - 1 - t) * Bp:(S - t) * Bp] + bias
                    for t in range(S)]

        def run_layer(xc, wh_ref, out_scr):
            wh = wh_ref[...]                                     # (2H, 8H) bf16, hoisted
            h = jnp.zeros((Bp, H2), jnp.float32)                 # [h_fwd | h_rev]
            c = jnp.zeros((Bp, H2), jnp.float32)                 # [c_fwd | c_rev]
            for t in range(S):                                   # static unroll (S = 8)
                gates = xc[t] + jnp.dot(h.astype(jnp.bfloat16), wh,
                                        preferred_element_type=jnp.float32)
                sg = jax.nn.sigmoid(gates[:, :H6])               # [i_f i_r|f_f f_r|o_f o_r]
                g = jnp.tanh(gates[:, H6:])                      # [g_f g_r]
                c = sg[:, H2:2 * H2] * c + sg[:, :H2] * g
                h = sg[:, 2 * H2:] * jnp.tanh(c)
                if out_scr is not None:
                    out_scr[t * Bp:(t + 1) * Bp, :H] = h[:, :H]             # fwd @ t
                    out_scr[(S - 1 - t) * Bp:(S - t) * Bp, H:] = h[:, H:]   # rev @ S-1-t
            return h                                             # [h_n fwd | h_n rev]

        # Layer-0 input = one-hot over [word vocab rows | pos vocab rows]; the embedding
        # lookup / concat / feature pad live in the pre-projected tables (wxf/wxr of l0).
        lanes = lax.broadcasted_iota(jnp.int32, (SB, Vtot), 1)
        hit = (lanes == tok_ref[...]) | (lanes == pos_ref[...])  # pos ids pre-offset
        x_in = jnp.where(hit, 1.0, 0.0).astype(jnp.bfloat16)     # (SB, Vtot) bf16

        h_finals = []
        for l in range(num_layers):
            wxf, wxr, wh, b = layer_refs[4 * l:4 * l + 4]
            xc = x_project(x_in, wxf, wxr, b)
            out_scr = seq_scr[l] if l < num_layers - 1 else None
            h_finals.append(run_layer(xc, wh, out_scr))
            if out_scr is not None:
                x_in = out_scr[...].astype(jnp.bfloat16)         # (SB, 2H) next layer in

        # h_n order matches torch: (l0 fwd, l0 rev, l1 fwd, l1 rev) concat on features.
        feat = jnp.concatenate(h_finals, axis=1)                 # (Bp, 2H*L)
        out = jnp.dot(feat, fcw_ref[...],
                      preferred_element_type=jnp.float32) + fcb_ref[...]
        out_ref[...] = out[:B, :].astype(out_ref.dtype)          # exact (B, O) result

    return kernel


def fused_bilstm_call(tok, pos, layers, fc_w_t, fc_b, *, S, Bp, B):
    """tok/pos: (S*Bp, 1) int32 (pos pre-offset by the table row offset).
    layers[l] = (wx_f, wx_r, wh, bias); layer 0's wx_* are the pre-projected embedding
    tables (Vtot, 8H) bf16, later layers' wx_* are (2H, 8H) bf16; wh is (2H, 8H) bf16;
    bias (1, 8H) f32.  Returns (B, output_size) f32."""
    SB = S * Bp
    H = layers[0][2].shape[0] // 2        # wh: (2H, 8H)
    Vtot = layers[0][0].shape[0]          # layer-0 tables: (Vtot, 8H)
    O = fc_w_t.shape[1]
    num_layers = len(layers)

    inputs = [tok, pos]
    for wxf, wxr, wh, b in layers:
        inputs += [wxf, wxr, wh, b]
    inputs += [fc_w_t, fc_b]

    vmem = pl.BlockSpec(memory_space=pltpu.MemorySpace.VMEM)
    return pl.pallas_call(
        _make_bilstm_kernel(S, Bp, H, num_layers, B, O, Vtot),
        out_shape=jax.ShapeDtypeStruct((B, O), jnp.float32),
        in_specs=[vmem] * len(inputs),
        out_specs=vmem,
        scratch_shapes=[pltpu.VMEM((SB, 2 * H), jnp.float32)
                        for _ in range(num_layers - 1)],
    )(*inputs)


# ------------------- Parameter prep (done once, outside jit) -------------------

def init_params(key, cfg, vocab_size, pos_vocab_size):
    """Raw PyTorch-layout parameters (also used by the pure-JAX reference)."""
    params = {}
    num_dirs = 2 if cfg.bidirectional else 1
    keys = iter(jax.random.split(key, 64))

    params["word_emb"] = jax.random.normal(next(keys), (vocab_size, cfg.embed_size),
                                           jnp.float32) * 0.1
    params["pos_emb"] = jax.random.normal(next(keys), (pos_vocab_size, cfg.pos_embed_size),
                                          jnp.float32) * 0.1

    H = cfg.hidden_size
    for layer in range(cfg.hidden_layers):
        d_in = (cfg.embed_size + cfg.pos_embed_size) if layer == 0 else num_dirs * H
        for d in range(num_dirs):
            suf = f"l{layer}" + ("_rev" if d == 1 else "")
            params[f"w_ih_{suf}"] = jax.random.normal(next(keys), (4 * H, d_in),
                                                      jnp.float32) * 0.1
            params[f"w_hh_{suf}"] = jax.random.normal(next(keys), (4 * H, H),
                                                      jnp.float32) * 0.1
            b_ih = jax.random.normal(next(keys), (4 * H,), jnp.float32) * 0.1
            b_hh = jax.random.normal(next(keys), (4 * H,), jnp.float32) * 0.1
            params[f"b_{suf}"] = b_ih + b_hh          # torch adds b_ih + b_hh

    F = H * cfg.hidden_layers * (1 + int(cfg.bidirectional))
    params["fc_w"] = jax.random.normal(next(keys), (cfg.output_size, F), jnp.float32) * 0.1
    params["fc_b"] = jax.random.normal(next(keys), (cfg.output_size,), jnp.float32) * 0.1
    return params


def _prep_bidir_layer(w_ih_f, w_hh_f, b_f, w_ih_r, w_hh_r, b_r, H):
    """f32 fused weights for one bidirectional layer.
    Column layout (gate pairs, sigmoid gates first, tanh gate last):
        [i_f i_r | f_f f_r | o_f o_r | g_f g_r]             (8H columns)
    wx_* rows: the layer's input features (other direction's columns zero).
    wh rows:   [h_fwd (H) ; h_rev (H)] block-diagonal per direction."""
    D = w_ih_f.shape[1]
    zx = jnp.zeros((D, H), jnp.float32)
    zh = jnp.zeros((H, H), jnp.float32)

    def gate_t(w, q):                      # (4H, X) -> (X, H) transposed gate block
        return jnp.transpose(w[q * H:(q + 1) * H, :])

    cxf, cxr, ch, cb = [], [], [], []
    for q in (0, 1, 3, 2):                 # torch gate order i,f,g,o -> emit i,f,o,g
        cxf += [gate_t(w_ih_f, q), zx]
        cxr += [zx, gate_t(w_ih_r, q)]
        ch += [jnp.concatenate([gate_t(w_hh_f, q), zh], axis=0),
               jnp.concatenate([zh, gate_t(w_hh_r, q)], axis=0)]
        cb += [b_f[q * H:(q + 1) * H], b_r[q * H:(q + 1) * H]]
    wx_f = jnp.concatenate(cxf, axis=1)                # (D, 8H)
    wx_r = jnp.concatenate(cxr, axis=1)                # (D, 8H)
    wh = jnp.concatenate(ch, axis=1)                   # (2H, 8H)
    b = jnp.concatenate(cb).reshape(1, 8 * H)          # (1, 8H)
    return wx_f, wx_r, wh, b


def prepare_fused_params(params, cfg, vocab_size, pos_vocab_size):
    # TODO(synk): only the bidirectional configuration (as in the spec Config) is fused.
    assert cfg.bidirectional, "fused kernel assumes bidirectional=True (spec config)"
    H, E, PE = cfg.hidden_size, cfg.embed_size, cfg.pos_embed_size
    pos_off = _round_up(vocab_size, 8)
    tab_rows = _round_up(pos_off + pos_vocab_size, 128)   # lane-friendly one-hot width

    layers = []
    for layer in range(cfg.hidden_layers):
        wx_f, wx_r, wh, b = _prep_bidir_layer(
            params[f"w_ih_l{layer}"], params[f"w_hh_l{layer}"], params[f"b_l{layer}"],
            params[f"w_ih_l{layer}_rev"], params[f"w_hh_l{layer}_rev"],
            params[f"b_l{layer}_rev"], H)
        if layer == 0:
            # Fold embedding lookup + [emb|pos] concat + feature pad into the layer-0
            # input projection:  row v (< vocab)   = word_emb[v] @ wx[:E]
            #                    row pos_off + p   = pos_emb[p]  @ wx[E:]
            tab = jnp.zeros((tab_rows, E + PE), jnp.float32)
            tab = tab.at[:vocab_size, :E].set(params["word_emb"])
            tab = tab.at[pos_off:pos_off + pos_vocab_size, E:].set(params["pos_emb"])
            wx_f = tab @ wx_f
            wx_r = tab @ wx_r
        layers.append((wx_f.astype(jnp.bfloat16), wx_r.astype(jnp.bfloat16),
                       wh.astype(jnp.bfloat16), b.astype(jnp.float32)))

    return {
        "layers": tuple(layers),
        "fc_w_t": jnp.transpose(params["fc_w"]).astype(jnp.float32),
        "fc_b": params["fc_b"].reshape(1, -1).astype(jnp.float32),
        "pos_row_offset": np.int32(pos_off),
    }


# ----------------------------- Forward -----------------------------

@jax.jit
def bilstm_forward(x_tokens, pos_tokens, fused):
    """x_tokens, pos_tokens: (seq_len, batch) int32. Returns (batch, output_size) f32."""
    S, B = x_tokens.shape
    Bp = max(8, _round_up(B, 8))                      # pad batch to a full sublane group
    tok = jnp.pad(x_tokens.astype(jnp.int32), ((0, 0), (0, Bp - B)))
    pos = jnp.pad(pos_tokens.astype(jnp.int32) + fused["pos_row_offset"],
                  ((0, 0), (0, Bp - B)))
    tok = tok.reshape(S * Bp, 1)                      # row = t*Bp + b (time-major)
    pos = pos.reshape(S * Bp, 1)
    return fused_bilstm_call(tok, pos, fused["layers"], fused["fc_w_t"], fused["fc_b"],
                             S=S, Bp=Bp, B=B)


# ----------------------------- Pure-JAX reference (for validation) -----------------------------

def bilstm_reference(x_tokens, pos_tokens, params, cfg):
    emb = jnp.take(params["word_emb"], x_tokens, axis=0)
    pemb = jnp.take(params["pos_emb"], pos_tokens, axis=0)
    layer_in = jnp.concatenate([emb, pemb], axis=2)
    S, B, _ = layer_in.shape
    H = cfg.hidden_size
    num_dirs = 2 if cfg.bidirectional else 1
    h_n = []
    for layer in range(cfg.hidden_layers):
        outs = []
        for d in range(num_dirs):
            suf = f"l{layer}" + ("_rev" if d == 1 else "")
            w_ih, w_hh, b = params[f"w_ih_{suf}"], params[f"w_hh_{suf}"], params[f"b_{suf}"]
            xs = layer_in[::-1] if d == 1 else layer_in
            h = jnp.zeros((B, H), jnp.float32)
            c = jnp.zeros((B, H), jnp.float32)
            hs = []
            for t in range(S):
                gates = xs[t] @ w_ih.T + h @ w_hh.T + b
                i = jax.nn.sigmoid(gates[:, 0:H])
                f = jax.nn.sigmoid(gates[:, H:2 * H])
                g = jnp.tanh(gates[:, 2 * H:3 * H])
                o = jax.nn.sigmoid(gates[:, 3 * H:4 * H])
                c = f * c + i * g
                h = o * jnp.tanh(c)
                hs.append(h)
            out = jnp.stack(hs, axis=0)
            outs.append(out[::-1] if d == 1 else out)
            h_n.append(h)
        layer_in = jnp.concatenate(outs, axis=2)
    feat = jnp.concatenate(h_n, axis=1)       # (B, layers*dirs*H), dropout = identity
    return feat @ params["fc_w"].T + params["fc_b"]


# ----------------------------- Main -----------------------------

if __name__ == "__main__":
    cfg = Config()
    vocab_size = 50
    pos_vocab_size = 12
    seq_len = 8
    batch = 4

    key = jax.random.PRNGKey(0)
    k_par, k_x, k_pos = jax.random.split(key, 3)
    params = init_params(k_par, cfg, vocab_size, pos_vocab_size)
    fused = prepare_fused_params(params, cfg, vocab_size, pos_vocab_size)

    x = jax.random.randint(k_x, (seq_len, batch), 0, vocab_size, dtype=jnp.int32)
    pos = jax.random.randint(k_pos, (seq_len, batch), 0, pos_vocab_size, dtype=jnp.int32)

    out = bilstm_forward(x, pos, fused)
    out = jax.block_until_ready(out)
    assert out.shape == (batch, cfg.output_size), out.shape
    assert bool(jnp.all(jnp.isfinite(out)))

    # Validate against a pure-JAX f32 reference (bf16 MXU inputs -> loose tolerance).
    ref = bilstm_reference(x, pos, params, cfg)
    np.testing.assert_allclose(np.asarray(out), np.asarray(ref), atol=3e-2, rtol=3e-2)

    print("KERNEL_OK")
</pallas_src>

<mosaic_0001>
module attributes {stable_mosaic.version = 11 : i64} {
  func.func @kernel(%arg0: memref<64x1xi32, #tpu.memory_space<vmem>>, %arg1: memref<64x1xi32, #tpu.memory_space<vmem>>, %arg2: memref<128x256xbf16, #tpu.memory_space<vmem>>, %arg3: memref<128x256xbf16, #tpu.memory_space<vmem>>, %arg4: memref<64x256xbf16, #tpu.memory_space<vmem>>, %arg5: memref<1x256xf32, #tpu.memory_space<vmem>>, %arg6: memref<64x256xbf16, #tpu.memory_space<vmem>>, %arg7: memref<64x256xbf16, #tpu.memory_space<vmem>>, %arg8: memref<64x256xbf16, #tpu.memory_space<vmem>>, %arg9: memref<1x256xf32, #tpu.memory_space<vmem>>, %arg10: memref<128x4xf32, #tpu.memory_space<vmem>>, %arg11: memref<1x4xf32, #tpu.memory_space<vmem>>, %arg12: memref<4x4xf32, #tpu.memory_space<vmem>>, %arg13: memref<64x64xf32, #tpu.memory_space<vmem>>) attributes {dimension_semantics = [], scalar_prefetch = 0 : i64, scratch_operands = 1 : i64, tpu.core_type = #tpu.core_type<tc>} {
    %0 = tpu.iota {dimensions = array<i32: 1>} : vector<64x128xi32>
    %c0 = arith.constant 0 : index
    %c0_0 = arith.constant 0 : index
    %1 = vector.load %arg0[%c0, %c0_0] : memref<64x1xi32, #tpu.memory_space<vmem>>, vector<64x1xi32>
    %2 = vector.broadcast %1 : vector<64x1xi32> to vector<64x128xi32>
    %3 = arith.cmpi eq, %0, %2 : vector<64x128xi32>
    %c0_1 = arith.constant 0 : index
    %c0_2 = arith.constant 0 : index
    %4 = vector.load %arg1[%c0_1, %c0_2] : memref<64x1xi32, #tpu.memory_space<vmem>>, vector<64x1xi32>
    %5 = vector.broadcast %4 : vector<64x1xi32> to vector<64x128xi32>
    %6 = arith.cmpi eq, %0, %5 : vector<64x128xi32>
    %7 = arith.ori %3, %6 : vector<64x128xi1>
    %cst = arith.constant 1.000000e+00 : f32
    %cst_3 = arith.constant 0.000000e+00 : f32
    %8 = vector.broadcast %cst : f32 to vector<64x128xf32>
    %9 = vector.broadcast %cst_3 : f32 to vector<64x128xf32>
    %10 = arith.select %7, %8, %9 : vector<64x128xi1>, vector<64x128xf32>
    %11 = arith.truncf %10 : vector<64x128xf32> to vector<64x128xbf16>
    %c0_4 = arith.constant 0 : index
    %c0_5 = arith.constant 0 : index
    %12 = vector.load %arg2[%c0_4, %c0_5] : memref<128x256xbf16, #tpu.memory_space<vmem>>, vector<128x256xbf16>
    %cst_6 = arith.constant dense<0.000000e+00> : vector<64x256xf32>
    %13 = tpu.matmul %11, %12, %cst_6 {dimension_numbers = #tpu.dot_dimension_numbers<[1], [0], [0], [1], [0, 0, 1, 1], [], []>} : vector<64x128xbf16>, vector<128x256xbf16>, vector<64x256xf32> -> vector<64x256xf32>
    %c0_7 = arith.constant 0 : index
    %c0_8 = arith.constant 0 : index
    %14 = vector.load %arg3[%c0_7, %c0_8] : memref<128x256xbf16, #tpu.memory_space<vmem>>, vector<128x256xbf16>
    %cst_9 = arith.constant dense<0.000000e+00> : vector<64x256xf32>
    %15 = tpu.matmul %11, %14, %cst_9 {dimension_numbers = #tpu.dot_dimension_numbers<[1], [0], [0], [1], [0, 0, 1, 1], [], []>} : vector<64x128xbf16>, vector<128x256xbf16>, vector<64x256xf32> -> vector<64x256xf32>
    %c0_10 = arith.constant 0 : index
    %c0_11 = arith.constant 0 : index
    %16 = vector.load %arg5[%c0_10, %c0_11] : memref<1x256xf32, #tpu.memory_space<vmem>>, vector<1x256xf32>
    %17 = vector.extract_strided_slice %13 {offsets = [0, 0], sizes = [8, 256], strides = [1, 1]} : vector<64x256xf32> to vector<8x256xf32>
    %18 = vector.extract_strided_slice %15 {offsets = [56, 0], sizes = [8, 256], strides = [1, 1]} : vector<64x256xf32> to vector<8x256xf32>
    %19 = arith.addf %17, %18 : vector<8x256xf32>
    %20 = vector.broadcast %16 : vector<1x256xf32> to vector<8x256xf32>
    %21 = arith.addf %19, %20 : vector<8x256xf32>
    %22 = vector.extract_strided_slice %13 {offsets = [8, 0], sizes = [8, 256], strides = [1, 1]} : vector<64x256xf32> to vector<8x256xf32>
    %23 = vector.extract_strided_slice %15 {offsets = [48, 0], sizes = [8, 256], strides = [1, 1]} : vector<64x256xf32> to vector<8x256xf32>
    %24 = arith.addf %22, %23 : vector<8x256xf32>
    %25 = vector.broadcast %16 : vector<1x256xf32> to vector<8x256xf32>
    %26 = arith.addf %24, %25 : vector<8x256xf32>
    %27 = vector.extract_strided_slice %13 {offsets = [16, 0], sizes = [8, 256], strides = [1, 1]} : vector<64x256xf32> to vector<8x256xf32>
    %28 = vector.extract_strided_slice %15 {offsets = [40, 0], sizes = [8, 256], strides = [1, 1]} : vector<64x256xf32> to vector<8x256xf32>
    %29 = arith.addf %27, %28 : vector<8x256xf32>
    %30 = vector.broadcast %16 : vector<1x256xf32> to vector<8x256xf32>
    %31 = arith.addf %29, %30 : vector<8x256xf32>
    %32 = vector.extract_strided_slice %13 {offsets = [24, 0], sizes = [8, 256], strides = [1, 1]} : vector<64x256xf32> to vector<8x256xf32>
    %33 = vector.extract_strided_slice %15 {offsets = [32, 0], sizes = [8, 256], strides = [1, 1]} : vector<64x256xf32> to vector<8x256xf32>
    %34 = arith.addf %32, %33 : vector<8x256xf32>
    %35 = vector.broadcast %16 : vector<1x256xf32> to vector<8x256xf32>
    %36 = arith.addf %34, %35 : vector<8x256xf32>
    %37 = vector.extract_strided_slice %13 {offsets = [32, 0], sizes = [8, 256], strides = [1, 1]} : vector<64x256xf32> to vector<8x256xf32>
    %38 = vector.extract_strided_slice %15 {offsets = [24, 0], sizes = [8, 256], strides = [1, 1]} : vector<64x256xf32> to vector<8x256xf32>
    %39 = arith.addf %37, %38 : vector<8x256xf32>
    %40 = vector.broadcast %16 : vector<1x256xf32> to vector<8x256xf32>
    %41 = arith.addf %39, %40 : vector<8x256xf32>
    %42 = vector.extract_strided_slice %13 {offsets = [40, 0], sizes = [8, 256], strides = [1, 1]} : vector<64x256xf32> to vector<8x256xf32>
    %43 = vector.extract_strided_slice %15 {offsets = [16, 0], sizes = [8, 256], strides = [1, 1]} : vector<64x256xf32> to vector<8x256xf32>
    %44 = arith.addf %42, %43 : vector<8x256xf32>
    %45 = vector.broadcast %16 : vector<1x256xf32> to vector<8x256xf32>
    %46 = arith.addf %44, %45 : vector<8x256xf32>
    %47 = vector.extract_strided_slice %13 {offsets = [48, 0], sizes = [8, 256], strides = [1, 1]} : vector<64x256xf32> to vector<8x256xf32>
    %48 = vector.extract_strided_slice %15 {offsets = [8, 0], sizes = [8, 256], strides = [1, 1]} : vector<64x256xf32> to vector<8x256xf32>
    %49 = arith.addf %47, %48 : vector<8x256xf32>
    %50 = vector.broadcast %16 : vector<1x256xf32> to vector<8x256xf32>
    %51 = arith.addf %49, %50 : vector<8x256xf32>
    %52 = vector.extract_strided_slice %13 {offsets = [56, 0], sizes = [8, 256], strides = [1, 1]} : vector<64x256xf32> to vector<8x256xf32>
    %53 = vector.extract_strided_slice %15 {offsets = [0, 0], sizes = [8, 256], strides = [1, 1]} : vector<64x256xf32> to vector<8x256xf32>
    %54 = arith.addf %52, %53 : vector<8x256xf32>
    %55 = vector.broadcast %16 : vector<1x256xf32> to vector<8x256xf32>
    %56 = arith.addf %54, %55 : vector<8x256xf32>
    %c0_12 = arith.constant 0 : index
    %c0_13 = arith.constant 0 : index
    %57 = vector.load %arg4[%c0_12, %c0_13] : memref<64x256xbf16, #tpu.memory_space<vmem>>, vector<64x256xbf16>
    %cst_14 = arith.constant 0.000000e+00 : f32
    %58 = vector.broadcast %cst_14 : f32 to vector<8x64xf32>
    %cst_15 = arith.constant 0.000000e+00 : f32
    %59 = vector.broadcast %cst_15 : f32 to vector<8x64xf32>
    %60 = arith.truncf %58 : vector<8x64xf32> to vector<8x64xbf16>
    %cst_16 = arith.constant dense<0.000000e+00> : vector<8x256xf32>
    %61 = tpu.matmul %60, %57, %cst_16 {dimension_numbers = #tpu.dot_dimension_numbers<[1], [0], [0], [1], [0, 0, 1, 1], [], []>} : vector<8x64xbf16>, vector<64x256xbf16>, vector<8x256xf32> -> vector<8x256xf32>
    %62 = arith.addf %21, %61 : vector<8x256xf32>
    %63 = vector.extract_strided_slice %62 {offsets = [0, 0], sizes = [8, 192], strides = [1, 1]} : vector<8x256xf32> to vector<8x192xf32>
    %64 = arith.negf %63 : vector<8x192xf32>
    %65 = math.exp %64 : vector<8x192xf32>
    %cst_17 = arith.constant 1.000000e+00 : f32
    %66 = vector.broadcast %cst_17 : f32 to vector<8x192xf32>
    %67 = arith.addf %66, %65 : vector<8x192xf32>
    %68 = arith.divf %66, %67 : vector<8x192xf32>
    %69 = vector.extract_strided_slice %62 {offsets = [0, 192], sizes = [8, 64], strides = [1, 1]} : vector<8x256xf32> to vector<8x64xf32>
    %70 = math.tanh %69 : vector<8x64xf32>
    %71 = vector.extract_strided_slice %68 {offsets = [0, 64], sizes = [8, 64], strides = [1, 1]} : vector<8x192xf32> to vector<8x64xf32>
    %72 = arith.mulf %71, %59 : vector<8x64xf32>
    %73 = vector.extract_strided_slice %68 {offsets = [0, 0], sizes = [8, 64], strides = [1, 1]} : vector<8x192xf32> to vector<8x64xf32>
    %74 = arith.mulf %73, %70 : vector<8x64xf32>
    %75 = arith.addf %72, %74 : vector<8x64xf32>
    %76 = vector.extract_strided_slice %68 {offsets = [0, 128], sizes = [8, 64], strides = [1, 1]} : vector<8x192xf32> to vector<8x64xf32>
    %77 = math.tanh %75 : vector<8x64xf32>
    %78 = arith.mulf %76, %77 : vector<8x64xf32>
    %79 = vector.extract_strided_slice %78 {offsets = [0, 0], sizes = [8, 32], strides = [1, 1]} : vector<8x64xf32> to vector<8x32xf32>
    %c0_18 = arith.constant 0 : index
    %c0_19 = arith.constant 0 : index
    %80 = vector.load %arg13[%c0_18, %c0_19] : memref<64x64xf32, #tpu.memory_space<vmem>>, vector<8x32xf32>
    tpu.vector_store %arg13[%c0_18, %c0_19], %79 {strides = array<i32>} : memref<64x64xf32, #tpu.memory_space<vmem>>, vector<8x32xf32>,
    %81 = vector.extract_strided_slice %78 {offsets = [0, 32], sizes = [8, 32], strides = [1, 1]} : vector<8x64xf32> to vector<8x32xf32>
    %c56 = arith.constant 56 : index
    %c32 = arith.constant 32 : index
    %82 = vector.load %arg13[%c56, %c32] : memref<64x64xf32, #tpu.memory_space<vmem>>, vector<8x32xf32>
    tpu.vector_store %arg13[%c56, %c32], %81 {strides = array<i32>} : memref<64x64xf32, #tpu.memory_space<vmem>>, vector<8x32xf32>,
    %83 = arith.truncf %78 : vector<8x64xf32> to vector<8x64xbf16>
    %cst_20 = arith.constant dense<0.000000e+00> : vector<8x256xf32>
    %84 = tpu.matmul %83, %57, %cst_20 {dimension_numbers = #tpu.dot_dimension_numbers<[1], [0], [0], [1], [0, 0, 1, 1], [], []>} : vector<8x64xbf16>, vector<64x256xbf16>, vector<8x256xf32> -> vector<8x256xf32>
    %85 = arith.addf %26, %84 : vector<8x256xf32>
    %86 = vector.extract_strided_slice %85 {offsets = [0, 0], sizes = [8, 192], strides = [1, 1]} : vector<8x256xf32> to vector<8x192xf32>
    %87 = arith.negf %86 : vector<8x192xf32>
    %88 = math.exp %87 : vector<8x192xf32>
    %cst_21 = arith.constant 1.000000e+00 : f32
    %89 = vector.broadcast %cst_21 : f32 to vector<8x192xf32>
    %90 = arith.addf %89, %88 : vector<8x192xf32>
    %91 = arith.divf %89, %90 : vector<8x192xf32>
    %92 = vector.extract_strided_slice %85 {offsets = [0, 192], sizes = [8, 64], strides = [1, 1]} : vector<8x256xf32> to vector<8x64xf32>
    %93 = math.tanh %92 : vector<8x64xf32>
    %94 = vector.extract_strided_slice %91 {offsets = [0, 64], sizes = [8, 64], strides = [1, 1]} : vector<8x192xf32> to vector<8x64xf32>
    %95 = arith.mulf %94, %75 : vector<8x64xf32>
    %96 = vector.extract_strided_slice %91 {offsets = [0, 0], sizes = [8, 64], strides = [1, 1]} : vector<8x192xf32> to vector<8x64xf32>
    %97 = arith.mulf %96, %93 : vector<8x64xf32>
    %98 = arith.addf %95, %97 : vector<8x64xf32>
    %99 = vector.extract_strided_slice %91 {offsets = [0, 128], sizes = [8, 64], strides = [1, 1]} : vector<8x192xf32> to vector<8x64xf32>
    %100 = math.tanh %98 : vector<8x64xf32>
    %101 = arith.mulf %99, %100 : vector<8x64xf32>
    %102 = vector.extract_strided_slice %101 {offsets = [0, 0], sizes = [8, 32], strides = [1, 1]} : vector<8x64xf32> to vector<8x32xf32>
    %c8 = arith.constant 8 : index
    %c0_22 = arith.constant 0 : index
    %103 = vector.load %arg13[%c8, %c0_22] : memref<64x64xf32, #tpu.memory_space<vmem>>, vector<8x32xf32>
    tpu.vector_store %arg13[%c8, %c0_22], %102 {strides = array<i32>} : memref<64x64xf32, #tpu.memory_space<vmem>>, vector<8x32xf32>,
    %104 = vector.extract_strided_slice %101 {offsets = [0, 32], sizes = [8, 32], strides = [1, 1]} : vector<8x64xf32> to vector<8x32xf32>
    %c48 = arith.constant 48 : index
    %c32_23 = arith.constant 32 : index
    %105 = vector.load %arg13[%c48, %c32_23] : memref<64x64xf32, #tpu.memory_space<vmem>>, vector<8x32xf32>
    tpu.vector_store %arg13[%c48, %c32_23], %104 {strides = array<i32>} : memref<64x64xf32, #tpu.memory_space<vmem>>, vector<8x32xf32>,
    %106 = arith.truncf %101 : vector<8x64xf32> to vector<8x64xbf16>
    %cst_24 = arith.constant dense<0.000000e+00> : vector<8x256xf32>
    %107 = tpu.matmul %106, %57, %cst_24 {dimension_numbers = #tpu.dot_dimension_numbers<[1], [0], [0], [1], [0, 0, 1, 1], [], []>} : vector<8x64xbf16>, vector<64x256xbf16>, vector<8x256xf32> -> vector<8x256xf32>
    %108 = arith.addf %31, %107 : vector<8x256xf32>
    %109 = vector.extract_strided_slice %108 {offsets = [0, 0], sizes = [8, 192], strides = [1, 1]} : vector<8x256xf32> to vector<8x192xf32>
    %110 = arith.negf %109 : vector<8x192xf32>
    %111 = math.exp %110 : vector<8x192xf32>
    %cst_25 = arith.constant 1.000000e+00 : f32
    %112 = vector.broadcast %cst_25 : f32 to vector<8x192xf32>
    %113 = arith.addf %112, %111 : vector<8x192xf32>
    %114 = arith.divf %112, %113 : vector<8x192xf32>
    %115 = vector.extract_strided_slice %108 {offsets = [0, 192], sizes = [8, 64], strides = [1, 1]} : vector<8x256xf32> to vector<8x64xf32>
    %116 = math.tanh %115 : vector<8x64xf32>
    %117 = vector.extract_strided_slice %114 {offsets = [0, 64], sizes = [8, 64], strides = [1, 1]} : vector<8x192xf32> to vector<8x64xf32>
    %118 = arith.mulf %117, %98 : vector<8x64xf32>
    %119 = vector.extract_strided_slice %114 {offsets = [0, 0], sizes = [8, 64], strides = [1, 1]} : vector<8x192xf32> to vector<8x64xf32>
    %120 = arith.mulf %119, %116 : vector<8x64xf32>
    %121 = arith.addf %118, %120 : vector<8x64xf32>
    %122 = vector.extract_strided_slice %114 {offsets = [0, 128], sizes = [8, 64], strides = [1, 1]} : vector<8x192xf32> to vector<8x64xf32>
    %123 = math.tanh %121 : vector<8x64xf32>
    %124 = arith.mulf %122, %123 : vector<8x64xf32>
    %125 = vector.extract_strided_slice %124 {offsets = [0, 0], sizes = [8, 32], strides = [1, 1]} : vector<8x64xf32> to vector<8x32xf32>
    %c16 = arith.constant 16 : index
    %c0_26 = arith.constant 0 : index
    %126 = vector.load %arg13[%c16, %c0_26] : memref<64x64xf32, #tpu.memory_space<vmem>>, vector<8x32xf32>
    tpu.vector_store %arg13[%c16, %c0_26], %125 {strides = array<i32>} : memref<64x64xf32, #tpu.memory_space<vmem>>, vector<8x32xf32>,
    %127 = vector.extract_strided_slice %124 {offsets = [0, 32], sizes = [8, 32], strides = [1, 1]} : vector<8x64xf32> to vector<8x32xf32>
    %c40 = arith.constant 40 : index
    %c32_27 = arith.constant 32 : index
    %128 = vector.load %arg13[%c40, %c32_27] : memref<64x64xf32, #tpu.memory_space<vmem>>, vector<8x32xf32>
    tpu.vector_store %arg13[%c40, %c32_27], %127 {strides = array<i32>} : memref<64x64xf32, #tpu.memory_space<vmem>>, vector<8x32xf32>,
    %129 = arith.truncf %124 : vector<8x64xf32> to vector<8x64xbf16>
    %cst_28 = arith.constant dense<0.000000e+00> : vector<8x256xf32>
    %130 = tpu.matmul %129, %57, %cst_28 {dimension_numbers = #tpu.dot_dimension_numbers<[1], [0], [0], [1], [0, 0, 1, 1], [], []>} : vector<8x64xbf16>, vector<64x256xbf16>, vector<8x256xf32> -> vector<8x256xf32>
    %131 = arith.addf %36, %130 : vector<8x256xf32>
    %132 = vector.extract_strided_slice %131 {offsets = [0, 0], sizes = [8, 192], strides = [1, 1]} : vector<8x256xf32> to vector<8x192xf32>
    %133 = arith.negf %132 : vector<8x192xf32>
    %134 = math.exp %133 : vector<8x192xf32>
    %cst_29 = arith.constant 1.000000e+00 : f32
    %135 = vector.broadcast %cst_29 : f32 to vector<8x192xf32>
    %136 = arith.addf %135, %134 : vector<8x192xf32>
    %137 = arith.divf %135, %136 : vector<8x192xf32>
    %138 = vector.extract_strided_slice %131 {offsets = [0, 192], sizes = [8, 64], strides = [1, 1]} : vector<8x256xf32> to vector<8x64xf32>
    %139 = math.tanh %138 : vector<8x64xf32>
    %140 = vector.extract_strided_slice %137 {offsets = [0, 64], sizes = [8, 64], strides = [1, 1]} : vector<8x192xf32> to vector<8x64xf32>
    %141 = arith.mulf %140, %121 : vector<8x64xf32>
    %142 = vector.extract_strided_slice %137 {offsets = [0, 0], sizes = [8, 64], strides = [1, 1]} : vector<8x192xf32> to vector<8x64xf32>
    %143 = arith.mulf %142, %139 : vector<8x64xf32>
    %144 = arith.addf %141, %143 : vector<8x64xf32>
    %145 = vector.extract_strided_slice %137 {offsets = [0, 128], sizes = [8, 64], strides = [1, 1]} : vector<8x192xf32> to vector<8x64xf32>
    %146 = math.tanh %144 : vector<8x64xf32>
    %147 = arith.mulf %145, %146 : vector<8x64xf32>
    %148 = vector.extract_strided_slice %147 {offsets = [0, 0], sizes = [8, 32], strides = [1, 1]} : vector<8x64xf32> to vector<8x32xf32>
    %c24 = arith.constant 24 : index
    %c0_30 = arith.constant 0 : index
    %149 = vector.load %arg13[%c24, %c0_30] : memref<64x64xf32, #tpu.memory_space<vmem>>, vector<8x32xf32>
    tpu.vector_store %arg13[%c24, %c0_30], %148 {strides = array<i32>} : memref<64x64xf32, #tpu.memory_space<vmem>>, vector<8x32xf32>,
    %150 = vector.extract_strided_slice %147 {offsets = [0, 32], sizes = [8, 32], strides = [1, 1]} : vector<8x64xf32> to vector<8x32xf32>
    %c32_31 = arith.constant 32 : index
    %c32_32 = arith.constant 32 : index
    %151 = vector.load %arg13[%c32_31, %c32_32] : memref<64x64xf32, #tpu.memory_space<vmem>>, vector<8x32xf32>
    tpu.vector_store %arg13[%c32_31, %c32_32], %150 {strides = array<i32>} : memref<64x64xf32, #tpu.memory_space<vmem>>, vector<8x32xf32>,
    %152 = arith.truncf %147 : vector<8x64xf32> to vector<8x64xbf16>
    %cst_33 = arith.constant dense<0.000000e+00> : vector<8x256xf32>
    %153 = tpu.matmul %152, %57, %cst_33 {dimension_numbers = #tpu.dot_dimension_numbers<[1], [0], [0], [1], [0, 0, 1, 1], [], []>} : vector<8x64xbf16>, vector<64x256xbf16>, vector<8x256xf32> -> vector<8x256xf32>
    %154 = arith.addf %41, %153 : vector<8x256xf32>
    %155 = vector.extract_strided_slice %154 {offsets = [0, 0], sizes = [8, 192], strides = [1, 1]} : vector<8x256xf32> to vector<8x192xf32>
    %156 = arith.negf %155 : vector<8x192xf32>
    %157 = math.exp %156 : vector<8x192xf32>
    %cst_34 = arith.constant 1.000000e+00 : f32
    %158 = vector.broadcast %cst_34 : f32 to vector<8x192xf32>
    %159 = arith.addf %158, %157 : vector<8x192xf32>
    %160 = arith.divf %158, %159 : vector<8x192xf32>
    %161 = vector.extract_strided_slice %154 {offsets = [0, 192], sizes = [8, 64], strides = [1, 1]} : vector<8x256xf32> to vector<8x64xf32>
    %162 = math.tanh %161 : vector<8x64xf32>
    %163 = vector.extract_strided_slice %160 {offsets = [0, 64], sizes = [8, 64], strides = [1, 1]} : vector<8x192xf32> to vector<8x64xf32>
    %164 = arith.mulf %163, %144 : vector<8x64xf32>
    %165 = vector.extract_strided_slice %160 {offsets = [0, 0], sizes = [8, 64], strides = [1, 1]} : vector<8x192xf32> to vector<8x64xf32>
    %166 = arith.mulf %165, %162 : vector<8x64xf32>
    %167 = arith.addf %164, %166 : vector<8x64xf32>
    %168 = vector.extract_strided_slice %160 {offsets = [0, 128], sizes = [8, 64], strides = [1, 1]} : vector<8x192xf32> to vector<8x64xf32>
    %169 = math.tanh %167 : vector<8x64xf32>
    %170 = arith.mulf %168, %169 : vector<8x64xf32>
    %171 = vector.extract_strided_slice %170 {offsets = [0, 0], sizes = [8, 32], strides = [1, 1]} : vector<8x64xf32> to vector<8x32xf32>
    %c32_35 = arith.constant 32 : index
    %c0_36 = arith.constant 0 : index
    %172 = vector.load %arg13[%c32_35, %c0_36] : memref<64x64xf32, #tpu.memory_space<vmem>>, vector<8x32xf32>
    tpu.vector_store %arg13[%c32_35, %c0_36], %171 {strides = array<i32>} : memref<64x64xf32, #tpu.memory_space<vmem>>, vector<8x32xf32>,
    %173 = vector.extract_strided_slice %170 {offsets = [0, 32], sizes = [8, 32], strides = [1, 1]} : vector<8x64xf32> to vector<8x32xf32>
    %c24_37 = arith.constant 24 : index
    %c32_38 = arith.constant 32 : index
    %174 = vector.load %arg13[%c24_37, %c32_38] : memref<64x64xf32, #tpu.memory_space<vmem>>, vector<8x32xf32>
    tpu.vector_store %arg13[%c24_37, %c32_38], %173 {strides = array<i32>} : memref<64x64xf32, #tpu.memory_space<vmem>>, vector<8x32xf32>,
    %175 = arith.truncf %170 : vector<8x64xf32> to vector<8x64xbf16>
    %cst_39 = arith.constant dense<0.000000e+00> : vector<8x256xf32>
    %176 = tpu.matmul %175, %57, %cst_39 {dimension_numbers = #tpu.dot_dimension_numbers<[1], [0], [0], [1], [0, 0, 1, 1], [], []>} : vector<8x64xbf16>, vector<64x256xbf16>, vector<8x256xf32> -> vector<8x256xf32>
    %177 = arith.addf %46, %176 : vector<8x256xf32>
    %178 = vector.extract_strided_slice %177 {offsets = [0, 0], sizes = [8, 192], strides = [1, 1]} : vector<8x256xf32> to vector<8x192xf32>
    %179 = arith.negf %178 : vector<8x192xf32>
    %180 = math.exp %179 : vector<8x192xf32>
    %cst_40 = arith.constant 1.000000e+00 : f32
    %181 = vector.broadcast %cst_40 : f32 to vector<8x192xf32>
    %182 = arith.addf %181, %180 : vector<8x192xf32>
    %183 = arith.divf %181, %182 : vector<8x192xf32>
    %184 = vector.extract_strided_slice %177 {offsets = [0, 192], sizes = [8, 64], strides = [1, 1]} : vector<8x256xf32> to vector<8x64xf32>
    %185 = math.tanh %184 : vector<8x64xf32>
    %186 = vector.extract_strided_slice %183 {offsets = [0, 64], sizes = [8, 64], strides = [1, 1]} : vector<8x192xf32> to vector<8x64xf32>
    %187 = arith.mulf %186, %167 : vector<8x64xf32>
    %188 = vector.extract_strided_slice %183 {offsets = [0, 0], sizes = [8, 64], strides = [1, 1]} : vector<8x192xf32> to vector<8x64xf32>
    %189 = arith.mulf %188, %185 : vector<8x64xf32>
    %190 = arith.addf %187, %189 : vector<8x64xf32>
    %191 = vector.extract_strided_slice %183 {offsets = [0, 128], sizes = [8, 64], strides = [1, 1]} : vector<8x192xf32> to vector<8x64xf32>
    %192 = math.tanh %190 : vector<8x64xf32>
    %193 = arith.mulf %191, %192 : vector<8x64xf32>
    %194 = vector.extract_strided_slice %193 {offsets = [0, 0], sizes = [8, 32], strides = [1, 1]} : vector<8x64xf32> to vector<8x32xf32>
    %c40_41 = arith.constant 40 : index
    %c0_42 = arith.constant 0 : index
    %195 = vector.load %arg13[%c40_41, %c0_42] : memref<64x64xf32, #tpu.memory_space<vmem>>, vector<8x32xf32>
    tpu.vector_store %arg13[%c40_41, %c0_42], %194 {strides = array<i32>} : memref<64x64xf32, #tpu.memory_space<vmem>>, vector<8x32xf32>,
    %196 = vector.extract_strided_slice %193 {offsets = [0, 32], sizes = [8, 32], strides = [1, 1]} : vector<8x64xf32> to vector<8x32xf32>
    %c16_43 = arith.constant 16 : index
    %c32_44 = arith.constant 32 : index
    %197 = vector.load %arg13[%c16_43, %c32_44] : memref<64x64xf32, #tpu.memory_space<vmem>>, vector<8x32xf32>
    tpu.vector_store %arg13[%c16_43, %c32_44], %196 {strides = array<i32>} : memref<64x64xf32, #tpu.memory_space<vmem>>, vector<8x32xf32>,
    %198 = arith.truncf %193 : vector<8x64xf32> to vector<8x64xbf16>
    %cst_45 = arith.constant dense<0.000000e+00> : vector<8x256xf32>
    %199 = tpu.matmul %198, %57, %cst_45 {dimension_numbers = #tpu.dot_dimension_numbers<[1], [0], [0], [1], [0, 0, 1, 1], [], []>} : vector<8x64xbf16>, vector<64x256xbf16>, vector<8x256xf32> -> vector<8x256xf32>
    %200 = arith.addf %51, %199 : vector<8x256xf32>
    %201 = vector.extract_strided_slice %200 {offsets = [0, 0], sizes = [8, 192], strides = [1, 1]} : vector<8x256xf32> to vector<8x192xf32>
    %202 = arith.negf %201 : vector<8x192xf32>
    %203 = math.exp %202 : vector<8x192xf32>
    %cst_46 = arith.constant 1.000000e+00 : f32
    %204 = vector.broadcast %cst_46 : f32 to vector<8x192xf32>
    %205 = arith.addf %204, %203 : vector<8x192xf32>
    %206 = arith.divf %204, %205 : vector<8x192xf32>
    %207 = vector.extract_strided_slice %200 {offsets = [0, 192], sizes = [8, 64], strides = [1, 1]} : vector<8x256xf32> to vector<8x64xf32>
    %208 = math.tanh %207 : vector<8x64xf32>
    %209 = vector.extract_strided_slice %206 {offsets = [0, 64], sizes = [8, 64], strides = [1, 1]} : vector<8x192xf32> to vector<8x64xf32>
    %210 = arith.mulf %209, %190 : vector<8x64xf32>
    %211 = vector.extract_strided_slice %206 {offsets = [0, 0], sizes = [8, 64], strides = [1, 1]} : vector<8x192xf32> to vector<8x64xf32>
    %212 = arith.mulf %211, %208 : vector<8x64xf32>
    %213 = arith.addf %210, %212 : vector<8x64xf32>
    %214 = vector.extract_strided_slice %206 {offsets = [0, 128], sizes = [8, 64], strides = [1, 1]} : vector<8x192xf32> to vector<8x64xf32>
    %215 = math.tanh %213 : vector<8x64xf32>
    %216 = arith.mulf %214, %215 : vector<8x64xf32>
    %217 = vector.extract_strided_slice %216 {offsets = [0, 0], sizes = [8, 32], strides = [1, 1]} : vector<8x64xf32> to vector<8x32xf32>
    %c48_47 = arith.constant 48 : index
    %c0_48 = arith.constant 0 : index
    %218 = vector.load %arg13[%c48_47, %c0_48] : memref<64x64xf32, #tpu.memory_space<vmem>>, vector<8x32xf32>
    tpu.vector_store %arg13[%c48_47, %c0_48], %217 {strides = array<i32>} : memref<64x64xf32, #tpu.memory_space<vmem>>, vector<8x32xf32>,
    %219 = vector.extract_strided_slice %216 {offsets = [0, 32], sizes = [8, 32], strides = [1, 1]} : vector<8x64xf32> to vector<8x32xf32>
    %c8_49 = arith.constant 8 : index
    %c32_50 = arith.constant 32 : index
    %220 = vector.load %arg13[%c8_49, %c32_50] : memref<64x64xf32, #tpu.memory_space<vmem>>, vector<8x32xf32>
    tpu.vector_store %arg13[%c8_49, %c32_50], %219 {strides = array<i32>} : memref<64x64xf32, #tpu.memory_space<vmem>>, vector<8x32xf32>,
    %221 = arith.truncf %216 : vector<8x64xf32> to vector<8x64xbf16>
    %cst_51 = arith.constant dense<0.000000e+00> : vector<8x256xf32>
    %222 = tpu.matmul %221, %57, %cst_51 {dimension_numbers = #tpu.dot_dimension_numbers<[1], [0], [0], [1], [0, 0, 1, 1], [], []>} : vector<8x64xbf16>, vector<64x256xbf16>, vector<8x256xf32> -> vector<8x256xf32>
    %223 = arith.addf %56, %222 : vector<8x256xf32>
    %224 = vector.extract_strided_slice %223 {offsets = [0, 0], sizes = [8, 192], strides = [1, 1]} : vector<8x256xf32> to vector<8x192xf32>
    %225 = arith.negf %224 : vector<8x192xf32>
    %226 = math.exp %225 : vector<8x192xf32>
    %cst_52 = arith.constant 1.000000e+00 : f32
    %227 = vector.broadcast %cst_52 : f32 to vector<8x192xf32>
    %228 = arith.addf %227, %226 : vector<8x192xf32>
    %229 = arith.divf %227, %228 : vector<8x192xf32>
    %230 = vector.extract_strided_slice %223 {offsets = [0, 192], sizes = [8, 64], strides = [1, 1]} : vector<8x256xf32> to vector<8x64xf32>
    %231 = math.tanh %230 : vector<8x64xf32>
    %232 = vector.extract_strided_slice %229 {offsets = [0, 64], sizes = [8, 64], strides = [1, 1]} : vector<8x192xf32> to vector<8x64xf32>
    %233 = arith.mulf %232, %213 : vector<8x64xf32>
    %234 = vector.extract_strided_slice %229 {offsets = [0, 0], sizes = [8, 64], strides = [1, 1]} : vector<8x192xf32> to vector<8x64xf32>
    %235 = arith.mulf %234, %231 : vector<8x64xf32>
    %236 = arith.addf %233, %235 : vector<8x64xf32>
    %237 = vector.extract_strided_slice %229 {offsets = [0, 128], sizes = [8, 64], strides = [1, 1]} : vector<8x192xf32> to vector<8x64xf32>
    %238 = math.tanh %236 : vector<8x64xf32>
    %239 = arith.mulf %237, %238 : vector<8x64xf32>
    %240 = vector.extract_strided_slice %239 {offsets = [0, 0], sizes = [8, 32], strides = [1, 1]} : vector<8x64xf32> to vector<8x32xf32>
    %c56_53 = arith.constant 56 : index
    %c0_54 = arith.constant 0 : index
    %241 = vector.load %arg13[%c56_53, %c0_54] : memref<64x64xf32, #tpu.memory_space<vmem>>, vector<8x32xf32>
    tpu.vector_store %arg13[%c56_53, %c0_54], %240 {strides = array<i32>} : memref<64x64xf32, #tpu.memory_space<vmem>>, vector<8x32xf32>,
    %242 = vector.extract_strided_slice %239 {offsets = [0, 32], sizes = [8, 32], strides = [1, 1]} : vector<8x64xf32> to vector<8x32xf32>
    %c0_55 = arith.constant 0 : index
    %c32_56 = arith.constant 32 : index
    %243 = vector.load %arg13[%c0_55, %c32_56] : memref<64x64xf32, #tpu.memory_space<vmem>>, vector<8x32xf32>
    tpu.vector_store %arg13[%c0_55, %c32_56], %242 {strides = array<i32>} : memref<64x64xf32, #tpu.memory_space<vmem>>, vector<8x32xf32>,
    %c0_57 = arith.constant 0 : index
    %c0_58 = arith.constant 0 : index
    %244 = vector.load %arg13[%c0_57, %c0_58] : memref<64x64xf32, #tpu.memory_space<vmem>>, vector<64x64xf32>
    %245 = arith.truncf %244 : vector<64x64xf32> to vector<64x64xbf16>
    %c0_59 = arith.constant 0 : index
    %c0_60 = arith.constant 0 : index
    %246 = vector.load %arg6[%c0_59, %c0_60] : memref<64x256xbf16, #tpu.memory_space<vmem>>, vector<64x256xbf16>
    %cst_61 = arith.constant dense<0.000000e+00> : vector<64x256xf32>
    %247 = tpu.matmul %245, %246, %cst_61 {dimension_numbers = #tpu.dot_dimension_numbers<[1], [0], [0], [1], [0, 0, 1, 1], [], []>} : vector<64x64xbf16>, vector<64x256xbf16>, vector<64x256xf32> -> vector<64x256xf32>
    %c0_62 = arith.constant 0 : index
    %c0_63 = arith.constant 0 : index
    %248 = vector.load %arg7[%c0_62, %c0_63] : memref<64x256xbf16, #tpu.memory_space<vmem>>, vector<64x256xbf16>
    %cst_64 = arith.constant dense<0.000000e+00> : vector<64x256xf32>
    %249 = tpu.matmul %245, %248, %cst_64 {dimension_numbers = #tpu.dot_dimension_numbers<[1], [0], [0], [1], [0, 0, 1, 1], [], []>} : vector<64x64xbf16>, vector<64x256xbf16>, vector<64x256xf32> -> vector<64x256xf32>
    %c0_65 = arith.constant 0 : index
    %c0_66 = arith.constant 0 : index
    %250 = vector.load %arg9[%c0_65, %c0_66] : memref<1x256xf32, #tpu.memory_space<vmem>>, vector<1x256xf32>
    %251 = vector.extract_strided_slice %247 {offsets = [0, 0], sizes = [8, 256], strides = [1, 1]} : vector<64x256xf32> to vector<8x256xf32>
    %252 = vector.extract_strided_slice %249 {offsets = [56, 0], sizes = [8, 256], strides = [1, 1]} : vector<64x256xf32> to vector<8x256xf32>
    %253 = arith.addf %251, %252 : vector<8x256xf32>
    %254 = vector.broadcast %250 : vector<1x256xf32> to vector<8x256xf32>
    %255 = arith.addf %253, %254 : vector<8x256xf32>
    %256 = vector.extract_strided_slice %247 {offsets = [8, 0], sizes = [8, 256], strides = [1, 1]} : vector<64x256xf32> to vector<8x256xf32>
    %257 = vector.extract_strided_slice %249 {offsets = [48, 0], sizes = [8, 256], strides = [1, 1]} : vector<64x256xf32> to vector<8x256xf32>
    %258 = arith.addf %256, %257 : vector<8x256xf32>
    %259 = vector.broadcast %250 : vector<1x256xf32> to vector<8x256xf32>
    %260 = arith.addf %258, %259 : vector<8x256xf32>
    %261 = vector.extract_strided_slice %247 {offsets = [16, 0], sizes = [8, 256], strides = [1, 1]} : vector<64x256xf32> to vector<8x256xf32>
    %262 = vector.extract_strided_slice %249 {offsets = [40, 0], sizes = [8, 256], strides = [1, 1]} : vector<64x256xf32> to vector<8x256xf32>
    %263 = arith.addf %261, %262 : vector<8x256xf32>
    %264 = vector.broadcast %250 : vector<1x256xf32> to vector<8x256xf32>
    %265 = arith.addf %263, %264 : vector<8x256xf32>
    %266 = vector.extract_strided_slice %247 {offsets = [24, 0], sizes = [8, 256], strides = [1, 1]} : vector<64x256xf32> to vector<8x256xf32>
    %267 = vector.extract_strided_slice %249 {offsets = [32, 0], sizes = [8, 256], strides = [1, 1]} : vector<64x256xf32> to vector<8x256xf32>
    %268 = arith.addf %266, %267 : vector<8x256xf32>
    %269 = vector.broadcast %250 : vector<1x256xf32> to vector<8x256xf32>
    %270 = arith.addf %268, %269 : vector<8x256xf32>
    %271 = vector.extract_strided_slice %247 {offsets = [32, 0], sizes = [8, 256], strides = [1, 1]} : vector<64x256xf32> to vector<8x256xf32>
    %272 = vector.extract_strided_slice %249 {offsets = [24, 0], sizes = [8, 256], strides = [1, 1]} : vector<64x256xf32> to vector<8x256xf32>
    %273 = arith.addf %271, %272 : vector<8x256xf32>
    %274 = vector.broadcast %250 : vector<1x256xf32> to vector<8x256xf32>
    %275 = arith.addf %273, %274 : vector<8x256xf32>
    %276 = vector.extract_strided_slice %247 {offsets = [40, 0], sizes = [8, 256], strides = [1, 1]} : vector<64x256xf32> to vector<8x256xf32>
    %277 = vector.extract_strided_slice %249 {offsets = [16, 0], sizes = [8, 256], strides = [1, 1]} : vector<64x256xf32> to vector<8x256xf32>
    %278 = arith.addf %276, %277 : vector<8x256xf32>
    %279 = vector.broadcast %250 : vector<1x256xf32> to vector<8x256xf32>
    %280 = arith.addf %278, %279 : vector<8x256xf32>
    %281 = vector.extract_strided_slice %247 {offsets = [48, 0], sizes = [8, 256], strides = [1, 1]} : vector<64x256xf32> to vector<8x256xf32>
    %282 = vector.extract_strided_slice %249 {offsets = [8, 0], sizes = [8, 256], strides = [1, 1]} : vector<64x256xf32> to vector<8x256xf32>
    %283 = arith.addf %281, %282 : vector<8x256xf32>
    %284 = vector.broadcast %250 : vector<1x256xf32> to vector<8x256xf32>
    %285 = arith.addf %283, %284 : vector<8x256xf32>
    %286 = vector.extract_strided_slice %247 {offsets = [56, 0], sizes = [8, 256], strides = [1, 1]} : vector<64x256xf32> to vector<8x256xf32>
    %287 = vector.extract_strided_slice %249 {offsets = [0, 0], sizes = [8, 256], strides = [1, 1]} : vector<64x256xf32> to vector<8x256xf32>
    %288 = arith.addf %286, %287 : vector<8x256xf32>
    %289 = vector.broadcast %250 : vector<1x256xf32> to vector<8x256xf32>
    %290 = arith.addf %288, %289 : vector<8x256xf32>
    %c0_67 = arith.constant 0 : index
    %c0_68 = arith.constant 0 : index
    %291 = vector.load %arg8[%c0_67, %c0_68] : memref<64x256xbf16, #tpu.memory_space<vmem>>, vector<64x256xbf16>
    %cst_69 = arith.constant 0.000000e+00 : f32
    %292 = vector.broadcast %cst_69 : f32 to vector<8x64xf32>
    %cst_70 = arith.constant 0.000000e+00 : f32
    %293 = vector.broadcast %cst_70 : f32 to vector<8x64xf32>
    %294 = arith.truncf %292 : vector<8x64xf32> to vector<8x64xbf16>
    %cst_71 = arith.constant dense<0.000000e+00> : vector<8x256xf32>
    %295 = tpu.matmul %294, %291, %cst_71 {dimension_numbers = #tpu.dot_dimension_numbers<[1], [0], [0], [1], [0, 0, 1, 1], [], []>} : vector<8x64xbf16>, vector<64x256xbf16>, vector<8x256xf32> -> vector<8x256xf32>
    %296 = arith.addf %255, %295 : vector<8x256xf32>
    %297 = vector.extract_strided_slice %296 {offsets = [0, 0], sizes = [8, 192], strides = [1, 1]} : vector<8x256xf32> to vector<8x192xf32>
    %298 = arith.negf %297 : vector<8x192xf32>
    %299 = math.exp %298 : vector<8x192xf32>
    %cst_72 = arith.constant 1.000000e+00 : f32
    %300 = vector.broadcast %cst_72 : f32 to vector<8x192xf32>
    %301 = arith.addf %300, %299 : vector<8x192xf32>
    %302 = arith.divf %300, %301 : vector<8x192xf32>
    %303 = vector.extract_strided_slice %296 {offsets = [0, 192], sizes = [8, 64], strides = [1, 1]} : vector<8x256xf32> to vector<8x64xf32>
    %304 = math.tanh %303 : vector<8x64xf32>
    %305 = vector.extract_strided_slice %302 {offsets = [0, 64], sizes = [8, 64], strides = [1, 1]} : vector<8x192xf32> to vector<8x64xf32>
    %306 = arith.mulf %305, %293 : vector<8x64xf32>
    %307 = vector.extract_strided_slice %302 {offsets = [0, 0], sizes = [8, 64], strides = [1, 1]} : vector<8x192xf32> to vector<8x64xf32>
    %308 = arith.mulf %307, %304 : vector<8x64xf32>
    %309 = arith.addf %306, %308 : vector<8x64xf32>
    %310 = vector.extract_strided_slice %302 {offsets = [0, 128], sizes = [8, 64], strides = [1, 1]} : vector<8x192xf32> to vector<8x64xf32>
    %311 = math.tanh %309 : vector<8x64xf32>
    %312 = arith.mulf %310, %311 : vector<8x64xf32>
    %313 = arith.truncf %312 : vector<8x64xf32> to vector<8x64xbf16>
    %cst_73 = arith.constant dense<0.000000e+00> : vector<8x256xf32>
    %314 = tpu.matmul %313, %291, %cst_73 {dimension_numbers = #tpu.dot_dimension_numbers<[1], [0], [0], [1], [0, 0, 1, 1], [], []>} : vector<8x64xbf16>, vector<64x256xbf16>, vector<8x256xf32> -> vector<8x256xf32>
    %315 = arith.addf %260, %314 : vector<8x256xf32>
    %316 = vector.extract_strided_slice %315 {offsets = [0, 0], sizes = [8, 192], strides = [1, 1]} : vector<8x256xf32> to vector<8x192xf32>
    %317 = arith.negf %316 : vector<8x192xf32>
    %318 = math.exp %317 : vector<8x192xf32>
    %cst_74 = arith.constant 1.000000e+00 : f32
    %319 = vector.broadcast %cst_74 : f32 to vector<8x192xf32>
    %320 = arith.addf %319, %318 : vector<8x192xf32>
    %321 = arith.divf %319, %320 : vector<8x192xf32>
    %322 = vector.extract_strided_slice %315 {offsets = [0, 192], sizes = [8, 64], strides = [1, 1]} : vector<8x256xf32> to vector<8x64xf32>
    %323 = math.tanh %322 : vector<8x64xf32>
    %324 = vector.extract_strided_slice %321 {offsets = [0, 64], sizes = [8, 64], strides = [1, 1]} : vector<8x192xf32> to vector<8x64xf32>
    %325 = arith.mulf %324, %309 : vector<8x64xf32>
    %326 = vector.extract_strided_slice %321 {offsets = [0, 0], sizes = [8, 64], strides = [1, 1]} : vector<8x192xf32> to vector<8x64xf32>
    %327 = arith.mulf %326, %323 : vector<8x64xf32>
    %328 = arith.addf %325, %327 : vector<8x64xf32>
    %329 = vector.extract_strided_slice %321 {offsets = [0, 128], sizes = [8, 64], strides = [1, 1]} : vector<8x192xf32> to vector<8x64xf32>
    %330 = math.tanh %328 : vector<8x64xf32>
    %331 = arith.mulf %329, %330 : vector<8x64xf32>
    %332 = arith.truncf %331 : vector<8x64xf32> to vector<8x64xbf16>
    %cst_75 = arith.constant dense<0.000000e+00> : vector<8x256xf32>
    %333 = tpu.matmul %332, %291, %cst_75 {dimension_numbers = #tpu.dot_dimension_numbers<[1], [0], [0], [1], [0, 0, 1, 1], [], []>} : vector<8x64xbf16>, vector<64x256xbf16>, vector<8x256xf32> -> vector<8x256xf32>
    %334 = arith.addf %265, %333 : vector<8x256xf32>
    %335 = vector.extract_strided_slice %334 {offsets = [0, 0], sizes = [8, 192], strides = [1, 1]} : vector<8x256xf32> to vector<8x192xf32>
    %336 = arith.negf %335 : vector<8x192xf32>
    %337 = math.exp %336 : vector<8x192xf32>
    %cst_76 = arith.constant 1.000000e+00 : f32
    %338 = vector.broadcast %cst_76 : f32 to vector<8x192xf32>
    %339 = arith.addf %338, %337 : vector<8x192xf32>
    %340 = arith.divf %338, %339 : vector<8x192xf32>
    %341 = vector.extract_strided_slice %334 {offsets = [0, 192], sizes = [8, 64], strides = [1, 1]} : vector<8x256xf32> to vector<8x64xf32>
    %342 = math.tanh %341 : vector<8x64xf32>
    %343 = vector.extract_strided_slice %340 {offsets = [0, 64], sizes = [8, 64], strides = [1, 1]} : vector<8x192xf32> to vector<8x64xf32>
    %344 = arith.mulf %343, %328 : vector<8x64xf32>
    %345 = vector.extract_strided_slice %340 {offsets = [0, 0], sizes = [8, 64], strides = [1, 1]} : vector<8x192xf32> to vector<8x64xf32>
    %346 = arith.mulf %345, %342 : vector<8x64xf32>
    %347 = arith.addf %344, %346 : vector<8x64xf32>
    %348 = vector.extract_strided_slice %340 {offsets = [0, 128], sizes = [8, 64], strides = [1, 1]} : vector<8x192xf32> to vector<8x64xf32>
    %349 = math.tanh %347 : vector<8x64xf32>
    %350 = arith.mulf %348, %349 : vector<8x64xf32>
    %351 = arith.truncf %350 : vector<8x64xf32> to vector<8x64xbf16>
    %cst_77 = arith.constant dense<0.000000e+00> : vector<8x256xf32>
    %352 = tpu.matmul %351, %291, %cst_77 {dimension_numbers = #tpu.dot_dimension_numbers<[1], [0], [0], [1], [0, 0, 1, 1], [], []>} : vector<8x64xbf16>, vector<64x256xbf16>, vector<8x256xf32> -> vector<8x256xf32>
    %353 = arith.addf %270, %352 : vector<8x256xf32>
    %354 = vector.extract_strided_slice %353 {offsets = [0, 0], sizes = [8, 192], strides = [1, 1]} : vector<8x256xf32> to vector<8x192xf32>
    %355 = arith.negf %354 : vector<8x192xf32>
    %356 = math.exp %355 : vector<8x192xf32>
    %cst_78 = arith.constant 1.000000e+00 : f32
    %357 = vector.broadcast %cst_78 : f32 to vector<8x192xf32>
    %358 = arith.addf %357, %356 : vector<8x192xf32>
    %359 = arith.divf %357, %358 : vector<8x192xf32>
    %360 = vector.extract_strided_slice %353 {offsets = [0, 192], sizes = [8, 64], strides = [1, 1]} : vector<8x256xf32> to vector<8x64xf32>
    %361 = math.tanh %360 : vector<8x64xf32>
    %362 = vector.extract_strided_slice %359 {offsets = [0, 64], sizes = [8, 64], strides = [1, 1]} : vector<8x192xf32> to vector<8x64xf32>
    %363 = arith.mulf %362, %347 : vector<8x64xf32>
    %364 = vector.extract_strided_slice %359 {offsets = [0, 0], sizes = [8, 64], strides = [1, 1]} : vector<8x192xf32> to vector<8x64xf32>
    %365 = arith.mulf %364, %361 : vector<8x64xf32>
    %366 = arith.addf %363, %365 : vector<8x64xf32>
    %367 = vector.extract_strided_slice %359 {offsets = [0, 128], sizes = [8, 64], strides = [1, 1]} : vector<8x192xf32> to vector<8x64xf32>
    %368 = math.tanh %366 : vector<8x64xf32>
    %369 = arith.mulf %367, %368 : vector<8x64xf32>
    %370 = arith.truncf %369 : vector<8x64xf32> to vector<8x64xbf16>
    %cst_79 = arith.constant dense<0.000000e+00> : vector<8x256xf32>
    %371 = tpu.matmul %370, %291, %cst_79 {dimension_numbers = #tpu.dot_dimension_numbers<[1], [0], [0], [1], [0, 0, 1, 1], [], []>} : vector<8x64xbf16>, vector<64x256xbf16>, vector<8x256xf32> -> vector<8x256xf32>
    %372 = arith.addf %275, %371 : vector<8x256xf32>
    %373 = vector.extract_strided_slice %372 {offsets = [0, 0], sizes = [8, 192], strides = [1, 1]} : vector<8x256xf32> to vector<8x192xf32>
    %374 = arith.negf %373 : vector<8x192xf32>
    %375 = math.exp %374 : vector<8x192xf32>
    %cst_80 = arith.constant 1.000000e+00 : f32
    %376 = vector.broadcast %cst_80 : f32 to vector<8x192xf32>
    %377 = arith.addf %376, %375 : vector<8x192xf32>
    %378 = arith.divf %376, %377 : vector<8x192xf32>
    %379 = vector.extract_strided_slice %372 {offsets = [0, 192], sizes = [8, 64], strides = [1, 1]} : vector<8x256xf32> to vector<8x64xf32>
    %380 = math.tanh %379 : vector<8x64xf32>
    %381 = vector.extract_strided_slice %378 {offsets = [0, 64], sizes = [8, 64], strides = [1, 1]} : vector<8x192xf32> to vector<8x64xf32>
    %382 = arith.mulf %381, %366 : vector<8x64xf32>
    %383 = vector.extract_strided_slice %378 {offsets = [0, 0], sizes = [8, 64], strides = [1, 1]} : vector<8x192xf32> to vector<8x64xf32>
    %384 = arith.mulf %383, %380 : vector<8x64xf32>
    %385 = arith.addf %382, %384 : vector<8x64xf32>
    %386 = vector.extract_strided_slice %378 {offsets = [0, 128], sizes = [8, 64], strides = [1, 1]} : vector<8x192xf32> to vector<8x64xf32>
    %387 = math.tanh %385 : vector<8x64xf32>
    %388 = arith.mulf %386, %387 : vector<8x64xf32>
    %389 = arith.truncf %388 : vector<8x64xf32> to vector<8x64xbf16>
    %cst_81 = arith.constant dense<0.000000e+00> : vector<8x256xf32>
    %390 = tpu.matmul %389, %291, %cst_81 {dimension_numbers = #tpu.dot_dimension_numbers<[1], [0], [0], [1], [0, 0, 1, 1], [], []>} : vector<8x64xbf16>, vector<64x256xbf16>, vector<8x256xf32> -> vector<8x256xf32>
    %391 = arith.addf %280, %390 : vector<8x256xf32>
    %392 = vector.extract_strided_slice %391 {offsets = [0, 0], sizes = [8, 192], strides = [1, 1]} : vector<8x256xf32> to vector<8x192xf32>
    %393 = arith.negf %392 : vector<8x192xf32>
    %394 = math.exp %393 : vector<8x192xf32>
    %cst_82 = arith.constant 1.000000e+00 : f32
    %395 = vector.broadcast %cst_82 : f32 to vector<8x192xf32>
    %396 = arith.addf %395, %394 : vector<8x192xf32>
    %397 = arith.divf %395, %396 : vector<8x192xf32>
    %398 = vector.extract_strided_slice %391 {offsets = [0, 192], sizes = [8, 64], strides = [1, 1]} : vector<8x256xf32> to vector<8x64xf32>
    %399 = math.tanh %398 : vector<8x64xf32>
    %400 = vector.extract_strided_slice %397 {offsets = [0, 64], sizes = [8, 64], strides = [1, 1]} : vector<8x192xf32> to vector<8x64xf32>
    %401 = arith.mulf %400, %385 : vector<8x64xf32>
    %402 = vector.extract_strided_slice %397 {offsets = [0, 0], sizes = [8, 64], strides = [1, 1]} : vector<8x192xf32> to vector<8x64xf32>
    %403 = arith.mulf %402, %399 : vector<8x64xf32>
    %404 = arith.addf %401, %403 : vector<8x64xf32>
    %405 = vector.extract_strided_slice %397 {offsets = [0, 128], sizes = [8, 64], strides = [1, 1]} : vector<8x192xf32> to vector<8x64xf32>
    %406 = math.tanh %404 : vector<8x64xf32>
    %407 = arith.mulf %405, %406 : vector<8x64xf32>
    %408 = arith.truncf %407 : vector<8x64xf32> to vector<8x64xbf16>
    %cst_83 = arith.constant dense<0.000000e+00> : vector<8x256xf32>
    %409 = tpu.matmul %408, %291, %cst_83 {dimension_numbers = #tpu.dot_dimension_numbers<[1], [0], [0], [1], [0, 0, 1, 1], [], []>} : vector<8x64xbf16>, vector<64x256xbf16>, vector<8x256xf32> -> vector<8x256xf32>
    %410 = arith.addf %285, %409 : vector<8x256xf32>
    %411 = vector.extract_strided_slice %410 {offsets = [0, 0], sizes = [8, 192], strides = [1, 1]} : vector<8x256xf32> to vector<8x192xf32>
    %412 = arith.negf %411 : vector<8x192xf32>
    %413 = math.exp %412 : vector<8x192xf32>
    %cst_84 = arith.constant 1.000000e+00 : f32
    %414 = vector.broadcast %cst_84 : f32 to vector<8x192xf32>
    %415 = arith.addf %414, %413 : vector<8x192xf32>
    %416 = arith.divf %414, %415 : vector<8x192xf32>
    %417 = vector.extract_strided_slice %410 {offsets = [0, 192], sizes = [8, 64], strides = [1, 1]} : vector<8x256xf32> to vector<8x64xf32>
    %418 = math.tanh %417 : vector<8x64xf32>
    %419 = vector.extract_strided_slice %416 {offsets = [0, 64], sizes = [8, 64], strides = [1, 1]} : vector<8x192xf32> to vector<8x64xf32>
    %420 = arith.mulf %419, %404 : vector<8x64xf32>
    %421 = vector.extract_strided_slice %416 {offsets = [0, 0], sizes = [8, 64], strides = [1, 1]} : vector<8x192xf32> to vector<8x64xf32>
    %422 = arith.mulf %421, %418 : vector<8x64xf32>
    %423 = arith.addf %420, %422 : vector<8x64xf32>
    %424 = vector.extract_strided_slice %416 {offsets = [0, 128], sizes = [8, 64], strides = [1, 1]} : vector<8x192xf32> to vector<8x64xf32>
    %425 = math.tanh %423 : vector<8x64xf32>
    %426 = arith.mulf %424, %425 : vector<8x64xf32>
    %427 = arith.truncf %426 : vector<8x64xf32> to vector<8x64xbf16>
    %cst_85 = arith.constant dense<0.000000e+00> : vector<8x256xf32>
    %428 = tpu.matmul %427, %291, %cst_85 {dimension_numbers = #tpu.dot_dimension_numbers<[1], [0], [0], [1], [0, 0, 1, 1], [], []>} : vector<8x64xbf16>, vector<64x256xbf16>, vector<8x256xf32> -> vector<8x256xf32>
    %429 = arith.addf %290, %428 : vector<8x256xf32>
    %430 = vector.extract_strided_slice %429 {offsets = [0, 0], sizes = [8, 192], strides = [1, 1]} : vector<8x256xf32> to vector<8x192xf32>
    %431 = arith.negf %430 : vector<8x192xf32>
    %432 = math.exp %431 : vector<8x192xf32>
    %cst_86 = arith.constant 1.000000e+00 : f32
    %433 = vector.broadcast %cst_86 : f32 to vector<8x192xf32>
    %434 = arith.addf %433, %432 : vector<8x192xf32>
    %435 = arith.divf %433, %434 : vector<8x192xf32>
    %436 = vector.extract_strided_slice %429 {offsets = [0, 192], sizes = [8, 64], strides = [1, 1]} : vector<8x256xf32> to vector<8x64xf32>
    %437 = math.tanh %436 : vector<8x64xf32>
    %438 = vector.extract_strided_slice %435 {offsets = [0, 64], sizes = [8, 64], strides = [1, 1]} : vector<8x192xf32> to vector<8x64xf32>
    %439 = arith.mulf %438, %423 : vector<8x64xf32>
    %440 = vector.extract_strided_slice %435 {offsets = [0, 0], sizes = [8, 64], strides = [1, 1]} : vector<8x192xf32> to vector<8x64xf32>
    %441 = arith.mulf %440, %437 : vector<8x64xf32>
    %442 = arith.addf %439, %441 : vector<8x64xf32>
    %443 = vector.extract_strided_slice %435 {offsets = [0, 128], sizes = [8, 64], strides = [1, 1]} : vector<8x192xf32> to vector<8x64xf32>
    %444 = math.tanh %442 : vector<8x64xf32>
    %445 = arith.mulf %443, %444 : vector<8x64xf32>
    %446 = tpu.concatenate %239, %445 in 1 : vector<8x64xf32>, vector<8x64xf32> -> vector<8x128xf32>
    %c0_87 = arith.constant 0 : index
    %c0_88 = arith.constant 0 : index
    %447 = vector.load %arg10[%c0_87, %c0_88] : memref<128x4xf32, #tpu.memory_space<vmem>>, vector<128x4xf32>
    %cst_89 = arith.constant dense<0.000000e+00> : vector<8x4xf32>
    %448 = tpu.matmul %446, %447, %cst_89 {dimension_numbers = #tpu.dot_dimension_numbers<[1], [0], [0], [1], [0, 0, 1, 1], [], []>} : vector<8x128xf32>, vector<128x4xf32>, vector<8x4xf32> -> vector<8x4xf32>
    %c0_90 = arith.constant 0 : index
    %c0_91 = arith.constant 0 : index
    %449 = vector.load %arg11[%c0_90, %c0_91] : memref<1x4xf32, #tpu.memory_space<vmem>>, vector<1x4xf32>
    %450 = vector.broadcast %449 : vector<1x4xf32> to vector<8x4xf32>
    %451 = arith.addf %448, %450 : vector<8x4xf32>
    %452 = vector.extract_strided_slice %451 {offsets = [0, 0], sizes = [4, 4], strides = [1, 1]} : vector<8x4xf32> to vector<4x4xf32>
    %c0_92 = arith.constant 0 : index
    %c0_93 = arith.constant 0 : index
    %453 = vector.load %arg12[%c0_92, %c0_93] : memref<4x4xf32, #tpu.memory_space<vmem>>, vector<4x4xf32>
    tpu.vector_store %arg12[%c0_92, %c0_93], %452 {strides = array<i32>} : memref<4x4xf32, #tpu.memory_space<vmem>>, vector<4x4xf32>,
    return
  }
}

</mosaic_0001>

<llo_original>
// kernel: bilstm_forward.1
$region0: #{bilstm_forward.1}
  #allocation0 [shape = 'u32[]', space=smem, size = 0x4, offset = 0x4, fixed_abs, tag = 'smem constant byte address 0x4 - core index']
  #allocation1 [shape = 'u32[144,128]{1,0:T(1,128)}', space=vmem, size = 0x12000, scoped, tag = 'internal scratch']
  #allocation2 [shape = 'f32[64,64]{1,0:T(8,128)}', space=vmem, size = 0x8000, scoped, tag = 'scratch operand']
  %s0 = inlined_call_operand.vmem [shape: s32[64,1], index: 0, kind: input, shape index: {}]
  %s1 = inlined_call_operand.vmem [shape: s32[64,1], index: 1, kind: input, shape index: {}]
  %s2 = inlined_call_operand.vmem [shape: bf16[128,256], index: 2, kind: input, shape index: {}]
  %s3 = inlined_call_operand.vmem [shape: bf16[128,256], index: 3, kind: input, shape index: {}]
  %s4 = inlined_call_operand.vmem [shape: bf16[64,256], index: 4, kind: input, shape index: {}]
  %s5 = inlined_call_operand.vmem [shape: f32[1,256], index: 5, kind: input, shape index: {}]
  %s6 = inlined_call_operand.hbm [shape: bf16[64,256], index: 6, kind: input, shape index: {}]
  %s7 = inlined_call_operand.hbm [shape: bf16[64,256], index: 7, kind: input, shape index: {}]
  %s8 = inlined_call_operand.hbm [shape: bf16[64,256], index: 8, kind: input, shape index: {}]
  %s9 = inlined_call_operand.vmem [shape: f32[1,256], index: 9, kind: input, shape index: {}]
  %s10 = inlined_call_operand.vmem [shape: f32[128,4], index: 10, kind: input, shape index: {}]
  %s11 = inlined_call_operand.vmem [shape: f32[1,4], index: 11, kind: input, shape index: {}]
  %s12 = inlined_call_operand.hbm [shape: f32[4,4], index: 12, kind: output, shape index: {}]
  %s13 = sld [smem:[#allocation0]]
  $region70: #{bilstm_forward.1} parent=0
    _
  %s15 = ssub.s32 1, %s13
  %s16 = scalar_select 0, %s15, %s13
  $region1: #{bilstm_forward.1} parent=0
    #allocation3 [shape = 'u8[32768]{0}', space=vmem, size = 0x8000, scoped, tag = 'input window, operand 6, single buffered']
    #allocation4 [shape = 's32[1]{0}', space=sflag, size = 0x4, scoped, tag = 'scoped memory for bilstm_forward.1']
    #allocation5 [shape = 's32[1]{0}', space=sflag, size = 0x4, scoped, tag = 'scoped memory for bilstm_forward.1']
    #allocation6 [shape = 'u8[32768]{0}', space=vmem, size = 0x8000, scoped, tag = 'input window, operand 7, single buffered']
    #allocation7 [shape = 's32[1]{0}', space=sflag, size = 0x4, scoped, tag = 'scoped memory for bilstm_forward.1']
    #allocation8 [shape = 'u8[32768]{0}', space=vmem, size = 0x8000, scoped, tag = 'input window, operand 8, single buffered']
    #allocation9 [shape = 'u8[2048]{0}', space=vmem, size = 0x800, scoped, tag = 'output window, operand 0, single buffered']
    %17 = vsyncpa [#allocation4], 0
    %18 = vsyncpa [#allocation7], 0
    %19 = vsyncpa [#allocation5], 0
    // Predicated region
    $region2: #{bilstm_forward.1} parent=1 // pred_check
      _
    $region3: #{bilstm_forward.1} parent=1 // pred_check_branch
      %21 = sbr.rel (0) target = $region5
    $region4: #{bilstm_forward.1} parent=1 // pred_region
      _
    $region5: #{bilstm_forward.1} parent=1 // pred_fallthru
      _
    // Predicated region
    $region6: #{bilstm_forward.1} parent=1 // pred_check
      _
    $region7: #{bilstm_forward.1} parent=1 // pred_check_branch
      %23 = sbr.rel (0) target = $region9
    $region8: #{bilstm_forward.1} parent=1 // pred_region
      _
    $region9: #{bilstm_forward.1} parent=1 // pred_fallthru
      _
    // Predicated region
    $region10: #{bilstm_forward.1} parent=1 // pred_check
      _
    $region11: #{bilstm_forward.1} parent=1 // pred_check_branch
      %25 = sbr.rel (0) target = $region13
    $region12: #{bilstm_forward.1} parent=1 // pred_region
      _
    $region13: #{bilstm_forward.1} parent=1 // pred_fallthru
      _
    // Predicated region
    $region14: #{bilstm_forward.1} parent=1 // pred_check
      _
    $region15: #{bilstm_forward.1} parent=1 // pred_check_branch
      %27 = sbr.rel (0) target = $region17
    $region16: #{bilstm_forward.1} parent=1 // pred_region
      _
    $region17: #{bilstm_forward.1} parent=1 // pred_fallthru
      _
    // Predicated region
    $region18: #{bilstm_forward.1} parent=1 // pred_check
      _
    $region19: #{bilstm_forward.1} parent=1 // pred_check_branch
      %29 = sbr.rel (0) target = $region21
    $region20: #{bilstm_forward.1} parent=1 // pred_region
      _
    $region21: #{bilstm_forward.1} parent=1 // pred_fallthru
      _
    // Predicated region
    $region22: #{bilstm_forward.1} parent=1 // pred_check
      _
    $region23: #{bilstm_forward.1} parent=1 // pred_check_branch
      %31 = sbr.rel (0) target = $region25
    $region24: #{bilstm_forward.1} parent=1 // pred_region
      _
    $region25: #{bilstm_forward.1} parent=1 // pred_fallthru
      _
    // Predicated region
    $region26: #{bilstm_forward.1} parent=1 // pred_check
      _
    $region27: #{bilstm_forward.1} parent=1 // pred_check_branch
      %33 = sbr.rel (0) target = $region29
    $region28: #{bilstm_forward.1} parent=1 // pred_region
      %s35 = ssub.s32 1024, 1024
      %36 = vsyncadd [#allocation4], %s35
      %s37 = sshll.u32 [#allocation3], 4
      %s38 = int_to_ptr.vmem [resolvable:$true] %s37
      %43 = dma.hbm_to_vmem [thread:$0]  %s6, 1024, %s38, [#allocation4], 128, 128, 8
    $region29: #{bilstm_forward.1} parent=1 // pred_fallthru
      _
    // Predicated region
    $region30: #{bilstm_forward.1} parent=1 // pred_check
      _
    $region31: #{bilstm_forward.1} parent=1 // pred_check_branch
      %45 = sbr.rel (0) target = $region33
    $region32: #{bilstm_forward.1} parent=1 // pred_region
      %s47 = ssub.s32 1024, 1024
      %48 = vsyncadd [#allocation7], %s47
      %s49 = sshll.u32 [#allocation6], 4
      %s50 = int_to_ptr.vmem [resolvable:$true] %s49
      %55 = dma.hbm_to_vmem [thread:$0]  %s7, 1024, %s50, [#allocation7], 128, 128, 8
    $region33: #{bilstm_forward.1} parent=1 // pred_fallthru
      _
    // Predicated region
    $region34: #{bilstm_forward.1} parent=1 // pred_check
      _
    $region35: #{bilstm_forward.1} parent=1 // pred_check_branch
      %57 = sbr.rel (0) target = $region37
    $region36: #{bilstm_forward.1} parent=1 // pred_region
      %s59 = ssub.s32 1024, 1024
      %60 = vsyncadd [#allocation7], %s59
      %s61 = sshll.u32 [#allocation8], 4
      %s62 = int_to_ptr.vmem [resolvable:$true] %s61
      %67 = dma.hbm_to_vmem [thread:$0]  %s8, 1024, %s62, [#allocation7], 128, 128, 8
    $region37: #{bilstm_forward.1} parent=1 // pred_fallthru
      _
    // Predicated region
    $region38: #{bilstm_forward.1} parent=1 // pred_check
      _
    $region39: #{bilstm_forward.1} parent=1 // pred_check_branch
      %69 = sbr.rel (0) target = $region41
    $region40: #{bilstm_forward.1} parent=1 // pred_region
      _
    $region41: #{bilstm_forward.1} parent=1 // pred_fallthru
      _
    // Predicated region
    $region42: #{bilstm_forward.1} parent=1 // pred_check
      _
    $region43: #{bilstm_forward.1} parent=1 // pred_check_branch
      %71 = sbr.rel (0) target = $region45
    $region44: #{bilstm_forward.1} parent=1 // pred_region
      _
    $region45: #{bilstm_forward.1} parent=1 // pred_fallthru
      _
    // Predicated region
    $region46: #{bilstm_forward.1} parent=1 // pred_check
      _
    $region47: #{bilstm_forward.1} parent=1 // pred_check_branch
      %73 = sbr.rel (0) target = $region49
    $region48: #{bilstm_forward.1} parent=1 // pred_region
      _
    $region49: #{bilstm_forward.1} parent=1 // pred_fallthru
      _
    // Predicated region
    $region50: #{bilstm_forward.1} parent=1 // pred_check
      _
    $region51: #{bilstm_forward.1} parent=1 // pred_check_branch
      %75 = sbr.rel (0) target = $region53
    $region52: #{bilstm_forward.1} parent=1 // pred_region
      %76 = dma.done [#allocation4], 1024
    $region53: #{bilstm_forward.1} parent=1 // pred_fallthru
      _
    // Predicated region
    $region54: #{bilstm_forward.1} parent=1 // pred_check
      _
    $region55: #{bilstm_forward.1} parent=1 // pred_check_branch
      %78 = sbr.rel (0) target = $region57
    $region56: #{bilstm_forward.1} parent=1 // pred_region
      %79 = dma.done [#allocation7], 1024
    $region57: #{bilstm_forward.1} parent=1 // pred_fallthru
      _
    // Predicated region
    $region58: #{bilstm_forward.1} parent=1 // pred_check
      _
    $region59: #{bilstm_forward.1} parent=1 // pred_check_branch
      %81 = sbr.rel (0) target = $region61
    $region60: #{bilstm_forward.1} parent=1 // pred_region
      %82 = dma.done [#allocation7], 1024
    $region61: #{bilstm_forward.1} parent=1 // pred_fallthru
      _
    %v84 = vlaneseq
    %v85 = vand.u32 %v84, 127
    %v86 = vld [vmem:[%s0] sm:$0xff]
    %v87 = vld [vmem:[%s0 + $0x8] sm:$0xff]
    %v88 = vld [vmem:[%s0 + $0x10] sm:$0xff]
    %v89 = vld [vmem:[%s0 + $0x18] sm:$0xff]
    %v90 = vld [vmem:[%s0 + $0x20] sm:$0xff]
    %v91 = vld [vmem:[%s0 + $0x28] sm:$0xff]
    %v92 = vld [vmem:[%s0 + $0x30] sm:$0xff]
    %v93 = vld [vmem:[%s0 + $0x38] sm:$0xff]
    %94 = vset.pattern.permute.xlu0 0
    %95 = vperm.xlu0 %94, %v86
    %v96 = vpop.permute.xlu0 %95
    %97 = vset.pattern.permute.xlu0 0
    %98 = vperm.xlu0 %97, %v87
    %v99 = vpop.permute.xlu0 %98
    %100 = vset.pattern.permute.xlu0 0
    %101 = vperm.xlu0 %100, %v88
    %v102 = vpop.permute.xlu0 %101
    %103 = vset.pattern.permute.xlu0 0
    %104 = vperm.xlu0 %103, %v89
    %v105 = vpop.permute.xlu0 %104
    %106 = vset.pattern.permute.xlu0 0
    %107 = vperm.xlu0 %106, %v90
    %v108 = vpop.permute.xlu0 %107
    %109 = vset.pattern.permute.xlu0 0
    %110 = vperm.xlu0 %109, %v91
    %v111 = vpop.permute.xlu0 %110
    %112 = vset.pattern.permute.xlu0 0
    %113 = vperm.xlu0 %112, %v92
    %v114 = vpop.permute.xlu0 %113
    %115 = vset.pattern.permute.xlu0 0
    %116 = vperm.xlu0 %115, %v93
    %v117 = vpop.permute.xlu0 %116
    %vm118 = vcmp.eq.s32.totalorder %v85, %v96
    %vm119 = vcmp.eq.s32.totalorder %v85, %v99
    %vm120 = vcmp.eq.s32.totalorder %v85, %v102
    %vm121 = vcmp.eq.s32.totalorder %v85, %v105
    %vm122 = vcmp.eq.s32.totalorder %v85, %v108
    %vm123 = vcmp.eq.s32.totalorder %v85, %v111
    %vm124 = vcmp.eq.s32.totalorder %v85, %v114
    %vm125 = vcmp.eq.s32.totalorder %v85, %v117
    %v126 = vld [vmem:[%s1] sm:$0xff]
    %v127 = vld [vmem:[%s1 + $0x8] sm:$0xff]
    %v128 = vld [vmem:[%s1 + $0x10] sm:$0xff]
    %v129 = vld [vmem:[%s1 + $0x18] sm:$0xff]
    %v130 = vld [vmem:[%s1 + $0x20] sm:$0xff]
    %v131 = vld [vmem:[%s1 + $0x28] sm:$0xff]
    %v132 = vld [vmem:[%s1 + $0x30] sm:$0xff]
    %v133 = vld [vmem:[%s1 + $0x38] sm:$0xff]
    %134 = vset.pattern.permute.xlu0 0
    %135 = vperm.xlu0 %134, %v126
    %v136 = vpop.permute.xlu0 %135
    %137 = vset.pattern.permute.xlu0 0
    %138 = vperm.xlu0 %137, %v127
    %v139 = vpop.permute.xlu0 %138
    %140 = vset.pattern.permute.xlu0 0
    %141 = vperm.xlu0 %140, %v128
    %v142 = vpop.permute.xlu0 %141
    %143 = vset.pattern.permute.xlu0 0
    %144 = vperm.xlu0 %143, %v129
    %v145 = vpop.permute.xlu0 %144
    %146 = vset.pattern.permute.xlu0 0
    %147 = vperm.xlu0 %146, %v130
    %v148 = vpop.permute.xlu0 %147
    %149 = vset.pattern.permute.xlu0 0
    %150 = vperm.xlu0 %149, %v131
    %v151 = vpop.permute.xlu0 %150
    %152 = vset.pattern.permute.xlu0 0
    %153 = vperm.xlu0 %152, %v132
    %v154 = vpop.permute.xlu0 %153
    %155 = vset.pattern.permute.xlu0 0
    %156 = vperm.xlu0 %155, %v133
    %v157 = vpop.permute.xlu0 %156
    %vm158 = vcmp.eq.s32.totalorder %v85, %v136
    %vm159 = vcmp.eq.s32.totalorder %v85, %v139
    %vm160 = vcmp.eq.s32.totalorder %v85, %v142
    %vm161 = vcmp.eq.s32.totalorder %v85, %v145
    %vm162 = vcmp.eq.s32.totalorder %v85, %v148
    %vm163 = vcmp.eq.s32.totalorder %v85, %v151
    %vm164 = vcmp.eq.s32.totalorder %v85, %v154
    %vm165 = vcmp.eq.s32.totalorder %v85, %v157
    %vm166 = vmor %vm118, %vm158
    %vm167 = vmor %vm119, %vm159
    %vm168 = vmor %vm120, %vm160
    %vm169 = vmor %vm121, %vm161
    %vm170 = vmor %vm122, %vm162
    %vm171 = vmor %vm123, %vm163
    %vm172 = vmor %vm124, %vm164
    %vm173 = vmor %vm125, %vm165
    %v174 = vsel %vm166, 1.0, 0.0
    %v175 = vsel %vm167, 1.0, 0.0
    %v176 = vsel %vm168, 1.0, 0.0
    %v177 = vsel %vm169, 1.0, 0.0
    %v178 = vsel %vm170, 1.0, 0.0
    %v179 = vsel %vm171, 1.0, 0.0
    %v180 = vsel %vm172, 1.0, 0.0
    %v181 = vsel %vm173, 1.0, 0.0
    %v182 = vpack.c.bf16 %v175, %v174
    %v183 = vpack.c.bf16 %v177, %v176
    %v184 = vpack.c.bf16 %v179, %v178
    %v185 = vpack.c.bf16 %v181, %v180
    %v186 = vld [vmem:[%s2] sm:$0xff]
    %v187 = vld [vmem:[%s2 + $0x8] sm:$0xff]
    %v188 = vld [vmem:[%s2 + $0x10] sm:$0xff]
    %v189 = vld [vmem:[%s2 + $0x18] sm:$0xff]
    %v190 = vld [vmem:[%s2 + $0x20] sm:$0xff]
    %v191 = vld [vmem:[%s2 + $0x28] sm:$0xff]
    %v192 = vld [vmem:[%s2 + $0x30] sm:$0xff]
    %v193 = vld [vmem:[%s2 + $0x38] sm:$0xff]
    %v194 = vld [vmem:[%s2 + $0x40] sm:$0xff]
    %v195 = vld [vmem:[%s2 + $0x48] sm:$0xff]
    %v196 = vld [vmem:[%s2 + $0x50] sm:$0xff]
    %v197 = vld [vmem:[%s2 + $0x58] sm:$0xff]
    %v198 = vld [vmem:[%s2 + $0x60] sm:$0xff]
    %v199 = vld [vmem:[%s2 + $0x68] sm:$0xff]
    %v200 = vld [vmem:[%s2 + $0x70] sm:$0xff]
    %v201 = vld [vmem:[%s2 + $0x78] sm:$0xff]
    %v218 = vunpack.c.l.b16 %v186
    %v219 = vunpack.c.h.b16 %v186
    %v220 = vunpack.c.l.b16 %v187
    %v221 = vunpack.c.h.b16 %v187
    %v222 = vunpack.c.l.b16 %v188
    %v223 = vunpack.c.h.b16 %v188
    %v224 = vunpack.c.l.b16 %v189
    %v225 = vunpack.c.h.b16 %v189
    %v226 = vunpack.c.l.b16 %v190
    %v227 = vunpack.c.h.b16 %v190
    %v228 = vunpack.c.l.b16 %v191
    %v229 = vunpack.c.h.b16 %v191
    %v230 = vunpack.c.l.b16 %v192
    %v231 = vunpack.c.h.b16 %v192
    %v232 = vunpack.c.l.b16 %v193
    %v233 = vunpack.c.h.b16 %v193
    %v234 = vunpack.c.l.b16 %v194
    %v235 = vunpack.c.h.b16 %v194
    %v236 = vunpack.c.l.b16 %v195
    %v237 = vunpack.c.h.b16 %v195
    %v238 = vunpack.c.l.b16 %v196
    %v239 = vunpack.c.h.b16 %v196
    %v240 = vunpack.c.l.b16 %v197
    %v241 = vunpack.c.h.b16 %v197
    %v242 = vunpack.c.l.b16 %v198
    %v243 = vunpack.c.h.b16 %v198
    %v244 = vunpack.c.l.b16 %v199
    %v245 = vunpack.c.h.b16 %v199
    %v246 = vunpack.c.l.b16 %v200
    %v247 = vunpack.c.h.b16 %v200
    %v248 = vunpack.c.l.b16 %v201
    %v249 = vunpack.c.h.b16 %v201
    %v250 = vpack.c.b16 %v220, %v218
    %v251 = vpack.c.b16 %v221, %v219
    %v252 = vpack.c.b16 %v224, %v222
    %v253 = vpack.c.b16 %v225, %v223
    %v254 = vpack.c.b16 %v228, %v226
    %v255 = vpack.c.b16 %v229, %v227
    %v256 = vpack.c.b16 %v232, %v230
    %v257 = vpack.c.b16 %v233, %v231
    %v258 = vpack.c.b16 %v236, %v234
    %v259 = vpack.c.b16 %v237, %v235
    %v260 = vpack.c.b16 %v240, %v238
    %v261 = vpack.c.b16 %v241, %v239
    %v262 = vpack.c.b16 %v244, %v242
    %v263 = vpack.c.b16 %v245, %v243
    %v264 = vpack.c.b16 %v248, %v246
    %v265 = vpack.c.b16 %v249, %v247
    %282 = vmatprep.subr.bf16.mxu0 %v265
    %283 = vmatpush1.bf16.msra.mxu0 %v264
    %284 = vmatprep.subr.bf16.mxu0 %v263
    %285 = vmatpush1.bf16.msra.mxu0 %v262
    %286 = vmatprep.subr.bf16.mxu0 %v261
    %287 = vmatpush1.bf16.msra.mxu0 %v260
    %288 = vmatprep.subr.bf16.mxu0 %v259
    %289 = vmatpush1.bf16.msra.mxu0 %v258
    %290 = vmatprep.subr.bf16.mxu0 %v257
    %291 = vmatpush1.bf16.msra.mxu0 %v256
    %292 = vmatprep.subr.bf16.mxu0 %v255
    %293 = vmatpush1.bf16.msra.mxu0 %v254
    %294 = vmatprep.subr.bf16.mxu0 %v253
    %295 = vmatpush1.bf16.msra.mxu0 %v252
    %296 = vmatprep.subr.bf16.mxu0 %v251
    %297 = vmatpush1.bf16.msra.mxu0 %v250
    %298 = vmatprep.subr.bf16.mxu0 0
    %299 = vmatpush2.bf16.msra.mxu0 0
    %300 = vmatprep.subr.bf16.mxu0 0
    %301 = vmatpush2.bf16.msra.mxu0 0
    %302 = vmatprep.subr.bf16.mxu0 0
    %303 = vmatpush2.bf16.msra.mxu0 0
    %304 = vmatprep.subr.bf16.mxu0 0
    %305 = vmatpush2.bf16.msra.mxu0 0
    %306 = vmatprep.subr.bf16.mxu0 0
    %307 = vmatpush2.bf16.msra.mxu0 0
    %308 = vmatprep.subr.bf16.mxu0 0
    %309 = vmatpush2.bf16.msra.mxu0 0
    %310 = vmatprep.subr.bf16.mxu0 0
    %311 = vmatpush2.bf16.msra.mxu0 0
    %312 = vmatprep.subr.bf16.mxu0 0
    %313 = vmatpush2.bf16.msra.mxu0 0
    %314 = vmatprep.mubr.bf16.mxu0 0
    %315 = vmatmul.mubr.bf16.gmra.mxu0 %v182
    %v316 = vpop.f32.mrf.mxu0
    %v317 = vadd.f32 0.0, %v316
    %v318 = vpop.f32.mrf.mxu0
    %v319 = vadd.f32 0.0, %v318
    %v320 = vpop.f32.mrf.mxu0
    %v321 = vadd.f32 0.0, %v320
    %v322 = vpop.f32.mrf.mxu0
    %v323 = vadd.f32 0.0, %v322
    %324 = vmatprep.mubr.bf16.mxu0 0
    %325 = vmatmul.mubr.bf16.gmra.mxu0 %v183
    %v326 = vpop.f32.mrf.mxu0
    %v327 = vadd.f32 0.0, %v326
    %v328 = vpop.f32.mrf.mxu0
    %v329 = vadd.f32 0.0, %v328
    %v330 = vpop.f32.mrf.mxu0
    %v331 = vadd.f32 0.0, %v330
    %v332 = vpop.f32.mrf.mxu0
    %v333 = vadd.f32 0.0, %v332
    %334 = vmatprep.mubr.bf16.mxu0 0
    %335 = vmatmul.mubr.bf16.gmra.mxu0 %v184
    %v336 = vpop.f32.mrf.mxu0
    %v337 = vadd.f32 0.0, %v336
    %v338 = vpop.f32.mrf.mxu0
    %v339 = vadd.f32 0.0, %v338
    %v340 = vpop.f32.mrf.mxu0
    %v341 = vadd.f32 0.0, %v340
    %v342 = vpop.f32.mrf.mxu0
    %v343 = vadd.f32 0.0, %v342
    %344 = vmatprep.mubr.bf16.mxu0 0
    %345 = vmatmul.mubr.bf16.gmra.mxu0 %v185
    %v346 = vpop.f32.mrf.mxu0
    %v347 = vadd.f32 0.0, %v346
    %v348 = vpop.f32.mrf.mxu0
    %v349 = vadd.f32 0.0, %v348
    %v350 = vpop.f32.mrf.mxu0
    %v351 = vadd.f32 0.0, %v350
    %v352 = vpop.f32.mrf.mxu0
    %v353 = vadd.f32 0.0, %v352
    %354 = vdwg.mxu0
    %v355 = vld [vmem:[%s3] sm:$0xff]
    %v356 = vld [vmem:[%s3 + $0x8] sm:$0xff]
    %v357 = vld [vmem:[%s3 + $0x10] sm:$0xff]
    %v358 = vld [vmem:[%s3 + $0x18] sm:$0xff]
    %v359 = vld [vmem:[%s3 + $0x20] sm:$0xff]
    %v360 = vld [vmem:[%s3 + $0x28] sm:$0xff]
    %v361 = vld [vmem:[%s3 + $0x30] sm:$0xff]
    %v362 = vld [vmem:[%s3 + $0x38] sm:$0xff]
    %v363 = vld [vmem:[%s3 + $0x40] sm:$0xff]
    %v364 = vld [vmem:[%s3 + $0x48] sm:$0xff]
    %v365 = vld [vmem:[%s3 + $0x50] sm:$0xff]
    %v366 = vld [vmem:[%s3 + $0x58] sm:$0xff]
    %v367 = vld [vmem:[%s3 + $0x60] sm:$0xff]
    %v368 = vld [vmem:[%s3 + $0x68] sm:$0xff]
    %v369 = vld [vmem:[%s3 + $0x70] sm:$0xff]
    %v370 = vld [vmem:[%s3 + $0x78] sm:$0xff]
    %v387 = vunpack.c.l.b16 %v355
    %v388 = vunpack.c.h.b16 %v355
    %v389 = vunpack.c.l.b16 %v356
    %v390 = vunpack.c.h.b16 %v356
    %v391 = vunpack.c.l.b16 %v357
    %v392 = vunpack.c.h.b16 %v357
    %v393 = vunpack.c.l.b16 %v358
    %v394 = vunpack.c.h.b16 %v358
    %v395 = vunpack.c.l.b16 %v359
    %v396 = vunpack.c.h.b16 %v359
    %v397 = vunpack.c.l.b16 %v360
    %v398 = vunpack.c.h.b16 %v360
    %v399 = vunpack.c.l.b16 %v361
    %v400 = vunpack.c.h.b16 %v361
    %v401 = vunpack.c.l.b16 %v362
    %v402 = vunpack.c.h.b16 %v362
    %v403 = vunpack.c.l.b16 %v363
    %v404 = vunpack.c.h.b16 %v363
    %v405 = vunpack.c.l.b16 %v364
    %v406 = vunpack.c.h.b16 %v364
    %v407 = vunpack.c.l.b16 %v365
    %v408 = vunpack.c.h.b16 %v365
    %v409 = vunpack.c.l.b16 %v366
    %v410 = vunpack.c.h.b16 %v366
    %v411 = vunpack.c.l.b16 %v367
    %v412 = vunpack.c.h.b16 %v367
    %v413 = vunpack.c.l.b16 %v368
    %v414 = vunpack.c.h.b16 %v368
    %v415 = vunpack.c.l.b16 %v369
    %v416 = vunpack.c.h.b16 %v369
    %v417 = vunpack.c.l.b16 %v370
    %v418 = vunpack.c.h.b16 %v370
    %v419 = vpack.c.b16 %v389, %v387
    %v420 = vpack.c.b16 %v390, %v388
    %v421 = vpack.c.b16 %v393, %v391
    %v422 = vpack.c.b16 %v394, %v392
    %v423 = vpack.c.b16 %v397, %v395
    %v424 = vpack.c.b16 %v398, %v396
    %v425 = vpack.c.b16 %v401, %v399
    %v426 = vpack.c.b16 %v402, %v400
    %v427 = vpack.c.b16 %v405, %v403
    %v428 = vpack.c.b16 %v406, %v404
    %v429 = vpack.c.b16 %v409, %v407
    %v430 = vpack.c.b16 %v410, %v408
    %v431 = vpack.c.b16 %v413, %v411
    %v432 = vpack.c.b16 %v414, %v412
    %v433 = vpack.c.b16 %v417, %v415
    %v434 = vpack.c.b16 %v418, %v416
    %451 = vmatprep.subr.bf16.mxu0 %v434
    %452 = vmatpush1.bf16.msra.mxu0 %v433
    %453 = vmatprep.subr.bf16.mxu0 %v432
    %454 = vmatpush1.bf16.msra.mxu0 %v431
    %455 = vmatprep.subr.bf16.mxu0 %v430
    %456 = vmatpush1.bf16.msra.mxu0 %v429
    %457 = vmatprep.subr.bf16.mxu0 %v428
    %458 = vmatpush1.bf16.msra.mxu0 %v427
    %459 = vmatprep.subr.bf16.mxu0 %v426
    %460 = vmatpush1.bf16.msra.mxu0 %v425
    %461 = vmatprep.subr.bf16.mxu0 %v424
    %462 = vmatpush1.bf16.msra.mxu0 %v423
    %463 = vmatprep.subr.bf16.mxu0 %v422
    %464 = vmatpush1.bf16.msra.mxu0 %v421
    %465 = vmatprep.subr.bf16.mxu0 %v420
    %466 = vmatpush1.bf16.msra.mxu0 %v419
    %467 = vmatprep.subr.bf16.mxu0 0
    %468 = vmatpush2.bf16.msra.mxu0 0
    %469 = vmatprep.subr.bf16.mxu0 0
    %470 = vmatpush2.bf16.msra.mxu0 0
    %471 = vmatprep.subr.bf16.mxu0 0
    %472 = vmatpush2.bf16.msra.mxu0 0
    %473 = vmatprep.subr.bf16.mxu0 0
    %474 = vmatpush2.bf16.msra.mxu0 0
    %475 = vmatprep.subr.bf16.mxu0 0
    %476 = vmatpush2.bf16.msra.mxu0 0
    %477 = vmatprep.subr.bf16.mxu0 0
    %478 = vmatpush2.bf16.msra.mxu0 0
    %479 = vmatprep.subr.bf16.mxu0 0
    %480 = vmatpush2.bf16.msra.mxu0 0
    %481 = vmatprep.subr.bf16.mxu0 0
    %482 = vmatpush2.bf16.msra.mxu0 0
    %483 = vmatprep.mubr.bf16.mxu0 0
    %484 = vmatmul.mubr.bf16.gmra.mxu0 %v182
    %v485 = vpop.f32.mrf.mxu0
    %v486 = vadd.f32 0.0, %v485
    %v487 = vpop.f32.mrf.mxu0
    %v488 = vadd.f32 0.0, %v487
    %v489 = vpop.f32.mrf.mxu0
    %v490 = vadd.f32 0.0, %v489
    %v491 = vpop.f32.mrf.mxu0
    %v492 = vadd.f32 0.0, %v491
    %493 = vmatprep.mubr.bf16.mxu0 0
    %494 = vmatmul.mubr.bf16.gmra.mxu0 %v183
    %v495 = vpop.f32.mrf.mxu0
    %v496 = vadd.f32 0.0, %v495
    %v497 = vpop.f32.mrf.mxu0
    %v498 = vadd.f32 0.0, %v497
    %v499 = vpop.f32.mrf.mxu0
    %v500 = vadd.f32 0.0, %v499
    %v501 = vpop.f32.mrf.mxu0
    %v502 = vadd.f32 0.0, %v501
    %503 = vmatprep.mubr.bf16.mxu0 0
    %504 = vmatmul.mubr.bf16.gmra.mxu0 %v184
    %v505 = vpop.f32.mrf.mxu0
    %v506 = vadd.f32 0.0, %v505
    %v507 = vpop.f32.mrf.mxu0
    %v508 = vadd.f32 0.0, %v507
    %v509 = vpop.f32.mrf.mxu0
    %v510 = vadd.f32 0.0, %v509
    %v511 = vpop.f32.mrf.mxu0
    %v512 = vadd.f32 0.0, %v511
    %513 = vmatprep.mubr.bf16.mxu0 0
    %514 = vmatmul.mubr.bf16.gmra.mxu0 %v185
    %v515 = vpop.f32.mrf.mxu0
    %v516 = vadd.f32 0.0, %v515
    %v517 = vpop.f32.mrf.mxu0
    %v518 = vadd.f32 0.0, %v517
    %v519 = vpop.f32.mrf.mxu0
    %v520 = vadd.f32 0.0, %v519
    %v521 = vpop.f32.mrf.mxu0
    %v522 = vadd.f32 0.0, %v521
    %523 = vdwg.mxu0
    %v524 = vld [vmem:[%s5] sm:$0x3]
    %v525 = vadd.f32 %v317, %v520
    %v526 = vadd.f32 %v319, %v522
    %v528 = vlaneseq
    %v529 = vshrl.u32 %v528, 7
    %v530 = vsub.s32 0, %v529
    %v531 = vrot.slane %v524, %v530
    %v532 = vlaneseq
    %v533 = vshrl.u32 %v532, 7
    %v534 = vsub.s32 1, %v533
    %v535 = vrot.slane %v524, %v534
    %v538 = vadd.f32 %v525, %v531
    %v539 = vadd.f32 %v526, %v535
    %v540 = vadd.f32 %v321, %v516
    %v541 = vadd.f32 %v323, %v518
    %v542 = vadd.f32 %v540, %v531
    %v543 = vadd.f32 %v541, %v535
    %v544 = vadd.f32 %v327, %v510
    %v545 = vadd.f32 %v329, %v512
    %v546 = vadd.f32 %v544, %v531
    %v547 = vadd.f32 %v545, %v535
    %v548 = vadd.f32 %v331, %v506
    %v549 = vadd.f32 %v333, %v508
    %v550 = vadd.f32 %v548, %v531
    %v551 = vadd.f32 %v549, %v535
    %v552 = vadd.f32 %v337, %v500
    %v553 = vadd.f32 %v339, %v502
    %v554 = vadd.f32 %v552, %v531
    %v555 = vadd.f32 %v553, %v535
    %v556 = vadd.f32 %v341, %v496
    %v557 = vadd.f32 %v343, %v498
    %v558 = vadd.f32 %v556, %v531
    %v559 = vadd.f32 %v557, %v535
    %v560 = vadd.f32 %v347, %v490
    %v561 = vadd.f32 %v349, %v492
    %v562 = vadd.f32 %v560, %v531
    %v563 = vadd.f32 %v561, %v535
    %v564 = vadd.f32 %v351, %v486
    %v565 = vadd.f32 %v353, %v488
    %v566 = vadd.f32 %v564, %v531
    %v567 = vadd.f32 %v565, %v535
    %v568 = vld [vmem:[%s4] sm:$0xff]
    %v569 = vld [vmem:[%s4 + $0x8] sm:$0xff]
    %v570 = vld [vmem:[%s4 + $0x10] sm:$0xff]
    %v571 = vld [vmem:[%s4 + $0x18] sm:$0xff]
    %v572 = vld [vmem:[%s4 + $0x20] sm:$0xff]
    %v573 = vld [vmem:[%s4 + $0x28] sm:$0xff]
    %v574 = vld [vmem:[%s4 + $0x30] sm:$0xff]
    %v575 = vld [vmem:[%s4 + $0x38] sm:$0xff]
    %v584 = vunpack.c.l.b16 %v568
    %v585 = vunpack.c.h.b16 %v568
    %v586 = vunpack.c.l.b16 %v569
    %v587 = vunpack.c.h.b16 %v569
    %v588 = vunpack.c.l.b16 %v570
    %v589 = vunpack.c.h.b16 %v570
    %v590 = vunpack.c.l.b16 %v571
    %v591 = vunpack.c.h.b16 %v571
    %v592 = vunpack.c.l.b16 %v572
    %v593 = vunpack.c.h.b16 %v572
    %v594 = vunpack.c.l.b16 %v573
    %v595 = vunpack.c.h.b16 %v573
    %v596 = vunpack.c.l.b16 %v574
    %v597 = vunpack.c.h.b16 %v574
    %v598 = vunpack.c.l.b16 %v575
    %v599 = vunpack.c.h.b16 %v575
    %v600 = vpack.c.b16 %v586, %v584
    %v601 = vpack.c.b16 %v587, %v585
    %v602 = vpack.c.b16 %v590, %v588
    %v603 = vpack.c.b16 %v591, %v589
    %v604 = vpack.c.b16 %v594, %v592
    %v605 = vpack.c.b16 %v595, %v593
    %v606 = vpack.c.b16 %v598, %v596
    %v607 = vpack.c.b16 %v599, %v597
    %vm616 = vcmask 523264
    %v618 = vsel %vm616, 0, 0
    %620 = vmatprep.subr.bf16.mxu0 0
    %621 = vmatpush1.bf16.msra.mxu0 0
    %622 = vmatprep.subr.bf16.mxu0 0
    %623 = vmatpush1.bf16.msra.mxu0 0
    %624 = vmatprep.subr.bf16.mxu0 0
    %625 = vmatpush1.bf16.msra.mxu0 0
    %626 = vmatprep.subr.bf16.mxu0 0
    %627 = vmatpush1.bf16.msra.mxu0 0
    %628 = vmatprep.subr.bf16.mxu0 %v607
    %629 = vmatpush1.bf16.msra.mxu0 %v606
    %630 = vmatprep.subr.bf16.mxu0 %v605
    %631 = vmatpush1.bf16.msra.mxu0 %v604
    %632 = vmatprep.subr.bf16.mxu0 %v603
    %633 = vmatpush1.bf16.msra.mxu0 %v602
    %634 = vmatprep.subr.bf16.mxu0 %v601
    %635 = vmatpush1.bf16.msra.mxu0 %v600
    %636 = vmatprep.subr.bf16.mxu0 0
    %637 = vmatpush2.bf16.msra.mxu0 0
    %638 = vmatprep.subr.bf16.mxu0 0
    %639 = vmatpush2.bf16.msra.mxu0 0
    %640 = vmatprep.subr.bf16.mxu0 0
    %641 = vmatpush2.bf16.msra.mxu0 0
    %642 = vmatprep.subr.bf16.mxu0 0
    %643 = vmatpush2.bf16.msra.mxu0 0
    %644 = vmatprep.subr.bf16.mxu0 0
    %645 = vmatpush2.bf16.msra.mxu0 0
    %646 = vmatprep.subr.bf16.mxu0 0
    %647 = vmatpush2.bf16.msra.mxu0 0
    %648 = vmatprep.subr.bf16.mxu0 0
    %649 = vmatpush2.bf16.msra.mxu0 0
    %650 = vmatprep.subr.bf16.mxu0 0
    %651 = vmatpush2.bf16.msra.mxu0 0
    %652 = vmatprep.mubr.bf16.mxu0 0
    %653 = vmatmul.mubr.bf16.gmra.mxu0 %v618
    %v654 = vpop.f32.mrf.mxu0
    %v655 = vadd.f32 0.0, %v654
    %v656 = vpop.f32.mrf.mxu0
    %v657 = vadd.f32 0.0, %v656
    %v658 = vpop.f32.mrf.mxu0
    %v659 = vpop.f32.mrf.mxu0
    %660 = vdwg.mxu0
    %v661 = vadd.f32 %v538, %v655
    %v662 = vadd.f32 %v539, %v657
    %v663 = vxor.u32 %v661, 2147483648
    %v664 = vxor.u32 %v662, 2147483648
    %v665 = vmul.f32 %v663, 1.442695
    %v666 = vpow.pop %v665
    %v667 = vmul.f32 %v664, 1.442695
    %v668 = vpow.pop %v667
    %v669 = vadd.f32 %v666, 1.0
    %v670 = vadd.f32 %v668, 1.0
    %v671 = vrcp.pop %v669
    %v672 = vmul.f32 1.0, %v671
    %v673 = vrcp.pop %v670
    %v674 = vmul.f32 1.0, %v673
    %v675 = vtanh.pop %v662
    %v676 = vmul.f32 %v672, 0.0
    %678 = vrot.lane.b32.xlu0 %v675, 64
    %v679 = vpop.permute.xlu0 %678
    %v681 = vmul.f32 %v672, %v679
    %683 = vrot.lane.b32.xlu0 %v681, 64
    %v684 = vpop.permute.xlu0 %683
    %v686 = vadd.f32 %v676, %v684
    %v687 = vtanh.pop %v686
    %689 = vrot.lane.b32.xlu0 %v687, 64
    %v690 = vpop.permute.xlu0 %689
    %v692 = vmul.f32 %v674, %v690
    %vm693 = vcmask 261120
    %694 = vst.msk [vmem:[#allocation2] sm:$0xff] %vm693, %v692
    %vm695 = vcmask 523520
    %696 = vst.msk [vmem:[#allocation2 + $0x38] sm:$0xff] %vm695, %v692
    %v697 = vpack.c.bf16 %v692, %v692
    %v699 = vsel %vm616, %v697, 0
    %701 = vmatprep.subr.bf16.mxu0 0
    %702 = vmatpush1.bf16.msra.mxu0 0
    %703 = vmatprep.subr.bf16.mxu0 0
    %704 = vmatpush1.bf16.msra.mxu0 0
    %705 = vmatprep.subr.bf16.mxu0 0
    %706 = vmatpush1.bf16.msra.mxu0 0
    %707 = vmatprep.subr.bf16.mxu0 0
    %708 = vmatpush1.bf16.msra.mxu0 0
    %709 = vmatprep.subr.bf16.mxu0 %v607
    %710 = vmatpush1.bf16.msra.mxu0 %v606
    %711 = vmatprep.subr.bf16.mxu0 %v605
    %712 = vmatpush1.bf16.msra.mxu0 %v604
    %713 = vmatprep.subr.bf16.mxu0 %v603
    %714 = vmatpush1.bf16.msra.mxu0 %v602
    %715 = vmatprep.subr.bf16.mxu0 %v601
    %716 = vmatpush1.bf16.msra.mxu0 %v600
    %717 = vmatprep.subr.bf16.mxu0 0
    %718 = vmatpush2.bf16.msra.mxu0 0
    %719 = vmatprep.subr.bf16.mxu0 0
    %720 = vmatpush2.bf16.msra.mxu0 0
    %721 = vmatprep.subr.bf16.mxu0 0
    %722 = vmatpush2.bf16.msra.mxu0 0
    %723 = vmatprep.subr.bf16.mxu0 0
    %724 = vmatpush2.bf16.msra.mxu0 0
    %725 = vmatprep.subr.bf16.mxu0 0
    %726 = vmatpush2.bf16.msra.mxu0 0
    %727 = vmatprep.subr.bf16.mxu0 0
    %728 = vmatpush2.bf16.msra.mxu0 0
    %729 = vmatprep.subr.bf16.mxu0 0
    %730 = vmatpush2.bf16.msra.mxu0 0
    %731 = vmatprep.subr.bf16.mxu0 0
    %732 = vmatpush2.bf16.msra.mxu0 0
    %733 = vmatprep.mubr.bf16.mxu0 0
    %734 = vmatmul.mubr.bf16.gmra.mxu0 %v699
    %v735 = vpop.f32.mrf.mxu0
    %v736 = vadd.f32 0.0, %v735
    %v737 = vpop.f32.mrf.mxu0
    %v738 = vadd.f32 0.0, %v737
    %v739 = vpop.f32.mrf.mxu0
    %v740 = vpop.f32.mrf.mxu0
    %741 = vdwg.mxu0
    %v742 = vadd.f32 %v542, %v736
    %v743 = vadd.f32 %v543, %v738
    %v744 = vxor.u32 %v742, 2147483648
    %v745 = vxor.u32 %v743, 2147483648
    %v746 = vmul.f32 %v744, 1.442695
    %v747 = vpow.pop %v746
    %v748 = vmul.f32 %v745, 1.442695
    %v749 = vpow.pop %v748
    %v750 = vadd.f32 %v747, 1.0
    %v751 = vadd.f32 %v749, 1.0
    %v752 = vrcp.pop %v750
    %v753 = vmul.f32 1.0, %v752
    %v754 = vrcp.pop %v751
    %v755 = vmul.f32 1.0, %v754
    %v756 = vtanh.pop %v743
    %v757 = vmul.f32 %v753, %v686
    %759 = vrot.lane.b32.xlu0 %v756, 64
    %v760 = vpop.permute.xlu0 %759
    %v762 = vmul.f32 %v753, %v760
    %764 = vrot.lane.b32.xlu0 %v762, 64
    %v765 = vpop.permute.xlu0 %764
    %v767 = vadd.f32 %v757, %v765
    %v768 = vtanh.pop %v767
    %770 = vrot.lane.b32.xlu0 %v768, 64
    %v771 = vpop.permute.xlu0 %770
    %v773 = vmul.f32 %v755, %v771
    %774 = vst.msk [vmem:[#allocation2 + $0x8] sm:$0xff] %vm693, %v773
    %775 = vst.msk [vmem:[#allocation2 + $0x30] sm:$0xff] %vm695, %v773
    %v776 = vpack.c.bf16 %v773, %v773
    %v778 = vsel %vm616, %v776, 0
    %780 = vmatprep.subr.bf16.mxu0 0
    %781 = vmatpush1.bf16.msra.mxu0 0
    %782 = vmatprep.subr.bf16.mxu0 0
    %783 = vmatpush1.bf16.msra.mxu0 0
    %784 = vmatprep.subr.bf16.mxu0 0
    %785 = vmatpush1.bf16.msra.mxu0 0
    %786 = vmatprep.subr.bf16.mxu0 0
    %787 = vmatpush1.bf16.msra.mxu0 0
    %788 = vmatprep.subr.bf16.mxu0 %v607
    %789 = vmatpush1.bf16.msra.mxu0 %v606
    %790 = vmatprep.subr.bf16.mxu0 %v605
    %791 = vmatpush1.bf16.msra.mxu0 %v604
    %792 = vmatprep.subr.bf16.mxu0 %v603
    %793 = vmatpush1.bf16.msra.mxu0 %v602
    %794 = vmatprep.subr.bf16.mxu0 %v601
    %795 = vmatpush1.bf16.msra.mxu0 %v600
    %796 = vmatprep.subr.bf16.mxu0 0
    %797 = vmatpush2.bf16.msra.mxu0 0
    %798 = vmatprep.subr.bf16.mxu0 0
    %799 = vmatpush2.bf16.msra.mxu0 0
    %800 = vmatprep.subr.bf16.mxu0 0
    %801 = vmatpush2.bf16.msra.mxu0 0
    %802 = vmatprep.subr.bf16.mxu0 0
    %803 = vmatpush2.bf16.msra.mxu0 0
    %804 = vmatprep.subr.bf16.mxu0 0
    %805 = vmatpush2.bf16.msra.mxu0 0
    %806 = vmatprep.subr.bf16.mxu0 0
    %807 = vmatpush2.bf16.msra.mxu0 0
    %808 = vmatprep.subr.bf16.mxu0 0
    %809 = vmatpush2.bf16.msra.mxu0 0
    %810 = vmatprep.subr.bf16.mxu0 0
    %811 = vmatpush2.bf16.msra.mxu0 0
    %812 = vmatprep.mubr.bf16.mxu0 0
    %813 = vmatmul.mubr.bf16.gmra.mxu0 %v778
    %v814 = vpop.f32.mrf.mxu0
    %v815 = vadd.f32 0.0, %v814
    %v816 = vpop.f32.mrf.mxu0
    %v817 = vadd.f32 0.0, %v816
    %v818 = vpop.f32.mrf.mxu0
    %v819 = vpop.f32.mrf.mxu0
    %820 = vdwg.mxu0
    %v821 = vadd.f32 %v546, %v815
    %v822 = vadd.f32 %v547, %v817
    %v823 = vxor.u32 %v821, 2147483648
    %v824 = vxor.u32 %v822, 2147483648
    %v825 = vmul.f32 %v823, 1.442695
    %v826 = vpow.pop %v825
    %v827 = vmul.f32 %v824, 1.442695
    %v828 = vpow.pop %v827
    %v829 = vadd.f32 %v826, 1.0
    %v830 = vadd.f32 %v828, 1.0
    %v831 = vrcp.pop %v829
    %v832 = vmul.f32 1.0, %v831
    %v833 = vrcp.pop %v830
    %v834 = vmul.f32 1.0, %v833
    %v835 = vtanh.pop %v822
    %v836 = vmul.f32 %v832, %v767
    %838 = vrot.lane.b32.xlu0 %v835, 64
    %v839 = vpop.permute.xlu0 %838
    %v841 = vmul.f32 %v832, %v839
    %843 = vrot.lane.b32.xlu0 %v841, 64
    %v844 = vpop.permute.xlu0 %843
    %v846 = vadd.f32 %v836, %v844
    %v847 = vtanh.pop %v846
    %849 = vrot.lane.b32.xlu0 %v847, 64
    %v850 = vpop.permute.xlu0 %849
    %v852 = vmul.f32 %v834, %v850
    %853 = vst.msk [vmem:[#allocation2 + $0x10] sm:$0xff] %vm693, %v852
    %854 = vst.msk [vmem:[#allocation2 + $0x28] sm:$0xff] %vm695, %v852
    %v855 = vpack.c.bf16 %v852, %v852
    %v857 = vsel %vm616, %v855, 0
    %859 = vmatprep.subr.bf16.mxu0 0
    %860 = vmatpush1.bf16.msra.mxu0 0
    %861 = vmatprep.subr.bf16.mxu0 0
    %862 = vmatpush1.bf16.msra.mxu0 0
    %863 = vmatprep.subr.bf16.mxu0 0
    %864 = vmatpush1.bf16.msra.mxu0 0
    %865 = vmatprep.subr.bf16.mxu0 0
    %866 = vmatpush1.bf16.msra.mxu0 0
    %867 = vmatprep.subr.bf16.mxu0 %v607
    %868 = vmatpush1.bf16.msra.mxu0 %v606
    %869 = vmatprep.subr.bf16.mxu0 %v605
    %870 = vmatpush1.bf16.msra.mxu0 %v604
    %871 = vmatprep.subr.bf16.mxu0 %v603
    %872 = vmatpush1.bf16.msra.mxu0 %v602
    %873 = vmatprep.subr.bf16.mxu0 %v601
    %874 = vmatpush1.bf16.msra.mxu0 %v600
    %875 = vmatprep.subr.bf16.mxu0 0
    %876 = vmatpush2.bf16.msra.mxu0 0
    %877 = vmatprep.subr.bf16.mxu0 0
    %878 = vmatpush2.bf16.msra.mxu0 0
    %879 = vmatprep.subr.bf16.mxu0 0
    %880 = vmatpush2.bf16.msra.mxu0 0
    %881 = vmatprep.subr.bf16.mxu0 0
    %882 = vmatpush2.bf16.msra.mxu0 0
    %883 = vmatprep.subr.bf16.mxu0 0
    %884 = vmatpush2.bf16.msra.mxu0 0
    %885 = vmatprep.subr.bf16.mxu0 0
    %886 = vmatpush2.bf16.msra.mxu0 0
    %887 = vmatprep.subr.bf16.mxu0 0
    %888 = vmatpush2.bf16.msra.mxu0 0
    %889 = vmatprep.subr.bf16.mxu0 0
    %890 = vmatpush2.bf16.msra.mxu0 0
    %891 = vmatprep.mubr.bf16.mxu0 0
    %892 = vmatmul.mubr.bf16.gmra.mxu0 %v857
    %v893 = vpop.f32.mrf.mxu0
    %v894 = vadd.f32 0.0, %v893
    %v895 = vpop.f32.mrf.mxu0
    %v896 = vadd.f32 0.0, %v895
    %v897 = vpop.f32.mrf.mxu0
    %v898 = vpop.f32.mrf.mxu0
    %899 = vdwg.mxu0
    %v900 = vadd.f32 %v550, %v894
    %v901 = vadd.f32 %v551, %v896
    %v902 = vxor.u32 %v900, 2147483648
    %v903 = vxor.u32 %v901, 2147483648
    %v904 = vmul.f32 %v902, 1.442695
    %v905 = vpow.pop %v904
    %v906 = vmul.f32 %v903, 1.442695
    %v907 = vpow.pop %v906
    %v908 = vadd.f32 %v905, 1.0
    %v909 = vadd.f32 %v907, 1.0
    %v910 = vrcp.pop %v908
    %v911 = vmul.f32 1.0, %v910
    %v912 = vrcp.pop %v909
    %v913 = vmul.f32 1.0, %v912
    %v914 = vtanh.pop %v901
    %v915 = vmul.f32 %v911, %v846
    %917 = vrot.lane.b32.xlu0 %v914, 64
    %v918 = vpop.permute.xlu0 %917
    %v920 = vmul.f32 %v911, %v918
    %922 = vrot.lane.b32.xlu0 %v920, 64
    %v923 = vpop.permute.xlu0 %922
    %v925 = vadd.f32 %v915, %v923
    %v926 = vtanh.pop %v925
    %928 = vrot.lane.b32.xlu0 %v926, 64
    %v929 = vpop.permute.xlu0 %928
    %v931 = vmul.f32 %v913, %v929
    %932 = vst.msk [vmem:[#allocation2 + $0x18] sm:$0xff] %vm693, %v931
    %933 = vst.msk [vmem:[#allocation2 + $0x20] sm:$0xff] %vm695, %v931
    %v934 = vpack.c.bf16 %v931, %v931
    %v936 = vsel %vm616, %v934, 0
    %938 = vmatprep.subr.bf16.mxu0 0
    %939 = vmatpush1.bf16.msra.mxu0 0
    %940 = vmatprep.subr.bf16.mxu0 0
    %941 = vmatpush1.bf16.msra.mxu0 0
    %942 = vmatprep.subr.bf16.mxu0 0
    %943 = vmatpush1.bf16.msra.mxu0 0
    %944 = vmatprep.subr.bf16.mxu0 0
    %945 = vmatpush1.bf16.msra.mxu0 0
    %946 = vmatprep.subr.bf16.mxu0 %v607
    %947 = vmatpush1.bf16.msra.mxu0 %v606
    %948 = vmatprep.subr.bf16.mxu0 %v605
    %949 = vmatpush1.bf16.msra.mxu0 %v604
    %950 = vmatprep.subr.bf16.mxu0 %v603
    %951 = vmatpush1.bf16.msra.mxu0 %v602
    %952 = vmatprep.subr.bf16.mxu0 %v601
    %953 = vmatpush1.bf16.msra.mxu0 %v600
    %954 = vmatprep.subr.bf16.mxu0 0
    %955 = vmatpush2.bf16.msra.mxu0 0
    %956 = vmatprep.subr.bf16.mxu0 0
    %957 = vmatpush2.bf16.msra.mxu0 0
    %958 = vmatprep.subr.bf16.mxu0 0
    %959 = vmatpush2.bf16.msra.mxu0 0
    %960 = vmatprep.subr.bf16.mxu0 0
    %961 = vmatpush2.bf16.msra.mxu0 0
    %962 = vmatprep.subr.bf16.mxu0 0
    %963 = vmatpush2.bf16.msra.mxu0 0
    %964 = vmatprep.subr.bf16.mxu0 0
    %965 = vmatpush2.bf16.msra.mxu0 0
    %966 = vmatprep.subr.bf16.mxu0 0
    %967 = vmatpush2.bf16.msra.mxu0 0
    %968 = vmatprep.subr.bf16.mxu0 0
    %969 = vmatpush2.bf16.msra.mxu0 0
    %970 = vmatprep.mubr.bf16.mxu0 0
    %971 = vmatmul.mubr.bf16.gmra.mxu0 %v936
    %v972 = vpop.f32.mrf.mxu0
    %v973 = vadd.f32 0.0, %v972
    %v974 = vpop.f32.mrf.mxu0
    %v975 = vadd.f32 0.0, %v974
    %v976 = vpop.f32.mrf.mxu0
    %v977 = vpop.f32.mrf.mxu0
    %978 = vdwg.mxu0
    %v979 = vadd.f32 %v554, %v973
    %v980 = vadd.f32 %v555, %v975
    %v981 = vxor.u32 %v979, 2147483648
    %v982 = vxor.u32 %v980, 2147483648
    %v983 = vmul.f32 %v981, 1.442695
    %v984 = vpow.pop %v983
    %v985 = vmul.f32 %v982, 1.442695
    %v986 = vpow.pop %v985
    %v987 = vadd.f32 %v984, 1.0
    %v988 = vadd.f32 %v986, 1.0
    %v989 = vrcp.pop %v987
    %v990 = vmul.f32 1.0, %v989
    %v991 = vrcp.pop %v988
    %v992 = vmul.f32 1.0, %v991
    %v993 = vtanh.pop %v980
    %v994 = vmul.f32 %v990, %v925
    %996 = vrot.lane.b32.xlu0 %v993, 64
    %v997 = vpop.permute.xlu0 %996
    %v999 = vmul.f32 %v990, %v997
    %1001 = vrot.lane.b32.xlu0 %v999, 64
    %v1002 = vpop.permute.xlu0 %1001
    %v1004 = vadd.f32 %v994, %v1002
    %v1005 = vtanh.pop %v1004
    %1007 = vrot.lane.b32.xlu0 %v1005, 64
    %v1008 = vpop.permute.xlu0 %1007
    %v1010 = vmul.f32 %v992, %v1008
    %1011 = vst.msk [vmem:[#allocation2 + $0x20] sm:$0xff] %vm693, %v1010
    %1012 = vst.msk [vmem:[#allocation2 + $0x18] sm:$0xff] %vm695, %v1010
    %v1013 = vpack.c.bf16 %v1010, %v1010
    %v1015 = vsel %vm616, %v1013, 0
    %1017 = vmatprep.subr.bf16.mxu0 0
    %1018 = vmatpush1.bf16.msra.mxu0 0
    %1019 = vmatprep.subr.bf16.mxu0 0
    %1020 = vmatpush1.bf16.msra.mxu0 0
    %1021 = vmatprep.subr.bf16.mxu0 0
    %1022 = vmatpush1.bf16.msra.mxu0 0
    %1023 = vmatprep.subr.bf16.mxu0 0
    %1024 = vmatpush1.bf16.msra.mxu0 0
    %1025 = vmatprep.subr.bf16.mxu0 %v607
    %1026 = vmatpush1.bf16.msra.mxu0 %v606
    %1027 = vmatprep.subr.bf16.mxu0 %v605
    %1028 = vmatpush1.bf16.msra.mxu0 %v604
    %1029 = vmatprep.subr.bf16.mxu0 %v603
    %1030 = vmatpush1.bf16.msra.mxu0 %v602
    %1031 = vmatprep.subr.bf16.mxu0 %v601
    %1032 = vmatpush1.bf16.msra.mxu0 %v600
    %1033 = vmatprep.subr.bf16.mxu0 0
    %1034 = vmatpush2.bf16.msra.mxu0 0
    %1035 = vmatprep.subr.bf16.mxu0 0
    %1036 = vmatpush2.bf16.msra.mxu0 0
    %1037 = vmatprep.subr.bf16.mxu0 0
    %1038 = vmatpush2.bf16.msra.mxu0 0
    %1039 = vmatprep.subr.bf16.mxu0 0
    %1040 = vmatpush2.bf16.msra.mxu0 0
    %1041 = vmatprep.subr.bf16.mxu0 0
    %1042 = vmatpush2.bf16.msra.mxu0 0
    %1043 = vmatprep.subr.bf16.mxu0 0
    %1044 = vmatpush2.bf16.msra.mxu0 0
    %1045 = vmatprep.subr.bf16.mxu0 0
    %1046 = vmatpush2.bf16.msra.mxu0 0
    %1047 = vmatprep.subr.bf16.mxu0 0
    %1048 = vmatpush2.bf16.msra.mxu0 0
    %1049 = vmatprep.mubr.bf16.mxu0 0
    %1050 = vmatmul.mubr.bf16.gmra.mxu0 %v1015
    %v1051 = vpop.f32.mrf.mxu0
    %v1052 = vadd.f32 0.0, %v1051
    %v1053 = vpop.f32.mrf.mxu0
    %v1054 = vadd.f32 0.0, %v1053
    %v1055 = vpop.f32.mrf.mxu0
    %v1056 = vpop.f32.mrf.mxu0
    %1057 = vdwg.mxu0
    %v1058 = vadd.f32 %v558, %v1052
    %v1059 = vadd.f32 %v559, %v1054
    %v1060 = vxor.u32 %v1058, 2147483648
    %v1061 = vxor.u32 %v1059, 2147483648
    %v1062 = vmul.f32 %v1060, 1.442695
    %v1063 = vpow.pop %v1062
    %v1064 = vmul.f32 %v1061, 1.442695
    %v1065 = vpow.pop %v1064
    %v1066 = vadd.f32 %v1063, 1.0
    %v1067 = vadd.f32 %v1065, 1.0
    %v1068 = vrcp.pop %v1066
    %v1069 = vmul.f32 1.0, %v1068
    %v1070 = vrcp.pop %v1067
    %v1071 = vmul.f32 1.0, %v1070
    %v1072 = vtanh.pop %v1059
    %v1073 = vmul.f32 %v1069, %v1004
    %1075 = vrot.lane.b32.xlu0 %v1072, 64
    %v1076 = vpop.permute.xlu0 %1075
    %v1078 = vmul.f32 %v1069, %v1076
    %1080 = vrot.lane.b32.xlu0 %v1078, 64
    %v1081 = vpop.permute.xlu0 %1080
    %v1083 = vadd.f32 %v1073, %v1081
    %v1084 = vtanh.pop %v1083
    %1086 = vrot.lane.b32.xlu0 %v1084, 64
    %v1087 = vpop.permute.xlu0 %1086
    %v1089 = vmul.f32 %v1071, %v1087
    %1090 = vst.msk [vmem:[#allocation2 + $0x28] sm:$0xff] %vm693, %v1089
    %1091 = vst.msk [vmem:[#allocation2 + $0x10] sm:$0xff] %vm695, %v1089
    %v1092 = vpack.c.bf16 %v1089, %v1089
    %v1094 = vsel %vm616, %v1092, 0
    %1096 = vmatprep.subr.bf16.mxu0 0
    %1097 = vmatpush1.bf16.msra.mxu0 0
    %1098 = vmatprep.subr.bf16.mxu0 0
    %1099 = vmatpush1.bf16.msra.mxu0 0
    %1100 = vmatprep.subr.bf16.mxu0 0
    %1101 = vmatpush1.bf16.msra.mxu0 0
    %1102 = vmatprep.subr.bf16.mxu0 0
    %1103 = vmatpush1.bf16.msra.mxu0 0
    %1104 = vmatprep.subr.bf16.mxu0 %v607
    %1105 = vmatpush1.bf16.msra.mxu0 %v606
    %1106 = vmatprep.subr.bf16.mxu0 %v605
    %1107 = vmatpush1.bf16.msra.mxu0 %v604
    %1108 = vmatprep.subr.bf16.mxu0 %v603
    %1109 = vmatpush1.bf16.msra.mxu0 %v602
    %1110 = vmatprep.subr.bf16.mxu0 %v601
    %1111 = vmatpush1.bf16.msra.mxu0 %v600
    %1112 = vmatprep.subr.bf16.mxu0 0
    %1113 = vmatpush2.bf16.msra.mxu0 0
    %1114 = vmatprep.subr.bf16.mxu0 0
    %1115 = vmatpush2.bf16.msra.mxu0 0
    %1116 = vmatprep.subr.bf16.mxu0 0
    %1117 = vmatpush2.bf16.msra.mxu0 0
    %1118 = vmatprep.subr.bf16.mxu0 0
    %1119 = vmatpush2.bf16.msra.mxu0 0
    %1120 = vmatprep.subr.bf16.mxu0 0
    %1121 = vmatpush2.bf16.msra.mxu0 0
    %1122 = vmatprep.subr.bf16.mxu0 0
    %1123 = vmatpush2.bf16.msra.mxu0 0
    %1124 = vmatprep.subr.bf16.mxu0 0
    %1125 = vmatpush2.bf16.msra.mxu0 0
    %1126 = vmatprep.subr.bf16.mxu0 0
    %1127 = vmatpush2.bf16.msra.mxu0 0
    %1128 = vmatprep.mubr.bf16.mxu0 0
    %1129 = vmatmul.mubr.bf16.gmra.mxu0 %v1094
    %v1130 = vpop.f32.mrf.mxu0
    %v1131 = vadd.f32 0.0, %v1130
    %v1132 = vpop.f32.mrf.mxu0
    %v1133 = vadd.f32 0.0, %v1132
    %v1134 = vpop.f32.mrf.mxu0
    %v1135 = vpop.f32.mrf.mxu0
    %1136 = vdwg.mxu0
    %v1137 = vadd.f32 %v562, %v1131
    %v1138 = vadd.f32 %v563, %v1133
    %v1139 = vxor.u32 %v1137, 2147483648
    %v1140 = vxor.u32 %v1138, 2147483648
    %v1141 = vmul.f32 %v1139, 1.442695
    %v1142 = vpow.pop %v1141
    %v1143 = vmul.f32 %v1140, 1.442695
    %v1144 = vpow.pop %v1143
    %v1145 = vadd.f32 %v1142, 1.0
    %v1146 = vadd.f32 %v1144, 1.0
    %v1147 = vrcp.pop %v1145
    %v1148 = vmul.f32 1.0, %v1147
    %v1149 = vrcp.pop %v1146
    %v1150 = vmul.f32 1.0, %v1149
    %v1151 = vtanh.pop %v1138
    %v1152 = vmul.f32 %v1148, %v1083
    %1154 = vrot.lane.b32.xlu0 %v1151, 64
    %v1155 = vpop.permute.xlu0 %1154
    %v1157 = vmul.f32 %v1148, %v1155
    %1159 = vrot.lane.b32.xlu0 %v1157, 64
    %v1160 = vpop.permute.xlu0 %1159
    %v1162 = vadd.f32 %v1152, %v1160
    %v1163 = vtanh.pop %v1162
    %1165 = vrot.lane.b32.xlu0 %v1163, 64
    %v1166 = vpop.permute.xlu0 %1165
    %v1168 = vmul.f32 %v1150, %v1166
    %1169 = vst.msk [vmem:[#allocation2 + $0x30] sm:$0xff] %vm693, %v1168
    %1170 = vst.msk [vmem:[#allocation2 + $0x8] sm:$0xff] %vm695, %v1168
    %v1171 = vpack.c.bf16 %v1168, %v1168
    %v1173 = vsel %vm616, %v1171, 0
    %1175 = vmatprep.subr.bf16.mxu0 0
    %1176 = vmatpush1.bf16.msra.mxu0 0
    %1177 = vmatprep.subr.bf16.mxu0 0
    %1178 = vmatpush1.bf16.msra.mxu0 0
    %1179 = vmatprep.subr.bf16.mxu0 0
    %1180 = vmatpush1.bf16.msra.mxu0 0
    %1181 = vmatprep.subr.bf16.mxu0 0
    %1182 = vmatpush1.bf16.msra.mxu0 0
    %1183 = vmatprep.subr.bf16.mxu0 %v607
    %1184 = vmatpush1.bf16.msra.mxu0 %v606
    %1185 = vmatprep.subr.bf16.mxu0 %v605
    %1186 = vmatpush1.bf16.msra.mxu0 %v604
    %1187 = vmatprep.subr.bf16.mxu0 %v603
    %1188 = vmatpush1.bf16.msra.mxu0 %v602
    %1189 = vmatprep.subr.bf16.mxu0 %v601
    %1190 = vmatpush1.bf16.msra.mxu0 %v600
    %1191 = vmatprep.subr.bf16.mxu0 0
    %1192 = vmatpush2.bf16.msra.mxu0 0
    %1193 = vmatprep.subr.bf16.mxu0 0
    %1194 = vmatpush2.bf16.msra.mxu0 0
    %1195 = vmatprep.subr.bf16.mxu0 0
    %1196 = vmatpush2.bf16.msra.mxu0 0
    %1197 = vmatprep.subr.bf16.mxu0 0
    %1198 = vmatpush2.bf16.msra.mxu0 0
    %1199 = vmatprep.subr.bf16.mxu0 0
    %1200 = vmatpush2.bf16.msra.mxu0 0
    %1201 = vmatprep.subr.bf16.mxu0 0
    %1202 = vmatpush2.bf16.msra.mxu0 0
    %1203 = vmatprep.subr.bf16.mxu0 0
    %1204 = vmatpush2.bf16.msra.mxu0 0
    %1205 = vmatprep.subr.bf16.mxu0 0
    %1206 = vmatpush2.bf16.msra.mxu0 0
    %1207 = vmatprep.mubr.bf16.mxu0 0
    %1208 = vmatmul.mubr.bf16.gmra.mxu0 %v1173
    %v1209 = vpop.f32.mrf.mxu0
    %v1210 = vadd.f32 0.0, %v1209
    %v1211 = vpop.f32.mrf.mxu0
    %v1212 = vadd.f32 0.0, %v1211
    %v1213 = vpop.f32.mrf.mxu0
    %v1214 = vpop.f32.mrf.mxu0
    %1215 = vdwg.mxu0
    %v1216 = vadd.f32 %v566, %v1210
    %v1217 = vadd.f32 %v567, %v1212
    %v1218 = vxor.u32 %v1216, 2147483648
    %v1219 = vxor.u32 %v1217, 2147483648
    %v1220 = vmul.f32 %v1218, 1.442695
    %v1221 = vpow.pop %v1220
    %v1222 = vmul.f32 %v1219, 1.442695
    %v1223 = vpow.pop %v1222
    %v1224 = vadd.f32 %v1221, 1.0
    %v1225 = vadd.f32 %v1223, 1.0
    %v1226 = vrcp.pop %v1224
    %v1227 = vmul.f32 1.0, %v1226
    %v1228 = vrcp.pop %v1225
    %v1229 = vmul.f32 1.0, %v1228
    %v1230 = vtanh.pop %v1217
    %v1231 = vmul.f32 %v1227, %v1162
    %1233 = vrot.lane.b32.xlu0 %v1230, 64
    %v1234 = vpop.permute.xlu0 %1233
    %v1236 = vmul.f32 %v1227, %v1234
    %1238 = vrot.lane.b32.xlu0 %v1236, 64
    %v1239 = vpop.permute.xlu0 %1238
    %v1241 = vadd.f32 %v1231, %v1239
    %v1242 = vtanh.pop %v1241
    %1244 = vrot.lane.b32.xlu0 %v1242, 64
    %v1245 = vpop.permute.xlu0 %1244
    %v1247 = vmul.f32 %v1229, %v1245
    %1248 = vst.msk [vmem:[#allocation2 + $0x38] sm:$0xff] %vm693, %v1247
    %1249 = vst.msk [vmem:[#allocation2] sm:$0xff] %vm695, %v1247
    %v1250 = vld [vmem:[#allocation2] sm:$0xff]
    %v1251 = vld [vmem:[#allocation2 + $0x8] sm:$0xff]
    %v1252 = vld [vmem:[#allocation2 + $0x10] sm:$0xff]
    %v1253 = vld [vmem:[#allocation2 + $0x18] sm:$0xff]
    %v1254 = vld [vmem:[#allocation2 + $0x20] sm:$0xff]
    %v1255 = vld [vmem:[#allocation2 + $0x28] sm:$0xff]
    %v1256 = vld [vmem:[#allocation2 + $0x30] sm:$0xff]
    %v1257 = vld [vmem:[#allocation2 + $0x38] sm:$0xff]
    %v1258 = vpack.c.bf16 %v1251, %v1250
    %v1259 = vpack.c.bf16 %v1253, %v1252
    %v1260 = vpack.c.bf16 %v1255, %v1254
    %v1261 = vpack.c.bf16 %v1257, %v1256
    %v1262 = vld [vmem:[#allocation3] sm:$0xff]
    %v1263 = vld [vmem:[#allocation3 + $0x8] sm:$0xff]
    %v1264 = vld [vmem:[#allocation3 + $0x10] sm:$0xff]
    %v1265 = vld [vmem:[#allocation3 + $0x18] sm:$0xff]
    %v1266 = vld [vmem:[#allocation3 + $0x20] sm:$0xff]
    %v1267 = vld [vmem:[#allocation3 + $0x28] sm:$0xff]
    %v1268 = vld [vmem:[#allocation3 + $0x30] sm:$0xff]
    %v1269 = vld [vmem:[#allocation3 + $0x38] sm:$0xff]
    %v1278 = vunpack.c.l.b16 %v1262
    %v1279 = vunpack.c.h.b16 %v1262
    %v1280 = vunpack.c.l.b16 %v1263
    %v1281 = vunpack.c.h.b16 %v1263
    %v1282 = vunpack.c.l.b16 %v1264
    %v1283 = vunpack.c.h.b16 %v1264
    %v1284 = vunpack.c.l.b16 %v1265
    %v1285 = vunpack.c.h.b16 %v1265
    %v1286 = vunpack.c.l.b16 %v1266
    %v1287 = vunpack.c.h.b16 %v1266
    %v1288 = vunpack.c.l.b16 %v1267
    %v1289 = vunpack.c.h.b16 %v1267
    %v1290 = vunpack.c.l.b16 %v1268
    %v1291 = vunpack.c.h.b16 %v1268
    %v1292 = vunpack.c.l.b16 %v1269
    %v1293 = vunpack.c.h.b16 %v1269
    %v1294 = vpack.c.b16 %v1280, %v1278
    %v1295 = vpack.c.b16 %v1281, %v1279
    %v1296 = vpack.c.b16 %v1284, %v1282
    %v1297 = vpack.c.b16 %v1285, %v1283
    %v1298 = vpack.c.b16 %v1288, %v1286
    %v1299 = vpack.c.b16 %v1289, %v1287
    %v1300 = vpack.c.b16 %v1292, %v1290
    %v1301 = vpack.c.b16 %v1293, %v1291
    %v1311 = vsel %vm616, %v1258, 0
    %v1314 = vsel %vm616, %v1259, 0
    %v1317 = vsel %vm616, %v1260, 0
    %v1320 = vsel %vm616, %v1261, 0
    %1322 = vmatprep.subr.bf16.mxu0 0
    %1323 = vmatpush1.bf16.msra.mxu0 0
    %1324 = vmatprep.subr.bf16.mxu0 0
    %1325 = vmatpush1.bf16.msra.mxu0 0
    %1326 = vmatprep.subr.bf16.mxu0 0
    %1327 = vmatpush1.bf16.msra.mxu0 0
    %1328 = vmatprep.subr.bf16.mxu0 0
    %1329 = vmatpush1.bf16.msra.mxu0 0
    %1330 = vmatprep.subr.bf16.mxu0 %v1301
    %1331 = vmatpush1.bf16.msra.mxu0 %v1300
    %1332 = vmatprep.subr.bf16.mxu0 %v1299
    %1333 = vmatpush1.bf16.msra.mxu0 %v1298
    %1334 = vmatprep.subr.bf16.mxu0 %v1297
    %1335 = vmatpush1.bf16.msra.mxu0 %v1296
    %1336 = vmatprep.subr.bf16.mxu0 %v1295
    %1337 = vmatpush1.bf16.msra.mxu0 %v1294
    %1338 = vmatprep.subr.bf16.mxu0 0
    %1339 = vmatpush2.bf16.msra.mxu0 0
    %1340 = vmatprep.subr.bf16.mxu0 0
    %1341 = vmatpush2.bf16.msra.mxu0 0
    %1342 = vmatprep.subr.bf16.mxu0 0
    %1343 = vmatpush2.bf16.msra.mxu0 0
    %1344 = vmatprep.subr.bf16.mxu0 0
    %1345 = vmatpush2.bf16.msra.mxu0 0
    %1346 = vmatprep.subr.bf16.mxu0 0
    %1347 = vmatpush2.bf16.msra.mxu0 0
    %1348 = vmatprep.subr.bf16.mxu0 0
    %1349 = vmatpush2.bf16.msra.mxu0 0
    %1350 = vmatprep.subr.bf16.mxu0 0
    %1351 = vmatpush2.bf16.msra.mxu0 0
    %1352 = vmatprep.subr.bf16.mxu0 0
    %1353 = vmatpush2.bf16.msra.mxu0 0
    %1354 = vmatprep.mubr.bf16.mxu0 0
    %1355 = vmatmul.mubr.bf16.gmra.mxu0 %v1311
    %v1356 = vpop.f32.mrf.mxu0
    %v1357 = vadd.f32 0.0, %v1356
    %v1358 = vpop.f32.mrf.mxu0
    %v1359 = vadd.f32 0.0, %v1358
    %v1360 = vpop.f32.mrf.mxu0
    %v1361 = vadd.f32 0.0, %v1360
    %v1362 = vpop.f32.mrf.mxu0
    %v1363 = vadd.f32 0.0, %v1362
    %1364 = vmatprep.mubr.bf16.mxu0 0
    %1365 = vmatmul.mubr.bf16.gmra.mxu0 %v1314
    %v1366 = vpop.f32.mrf.mxu0
    %v1367 = vadd.f32 0.0, %v1366
    %v1368 = vpop.f32.mrf.mxu0
    %v1369 = vadd.f32 0.0, %v1368
    %v1370 = vpop.f32.mrf.mxu0
    %v1371 = vadd.f32 0.0, %v1370
    %v1372 = vpop.f32.mrf.mxu0
    %v1373 = vadd.f32 0.0, %v1372
    %1374 = vmatprep.mubr.bf16.mxu0 0
    %1375 = vmatmul.mubr.bf16.gmra.mxu0 %v1317
    %v1376 = vpop.f32.mrf.mxu0
    %v1377 = vadd.f32 0.0, %v1376
    %v1378 = vpop.f32.mrf.mxu0
    %v1379 = vadd.f32 0.0, %v1378
    %v1380 = vpop.f32.mrf.mxu0
    %v1381 = vadd.f32 0.0, %v1380
    %v1382 = vpop.f32.mrf.mxu0
    %v1383 = vadd.f32 0.0, %v1382
    %1384 = vmatprep.mubr.bf16.mxu0 0
    %1385 = vmatmul.mubr.bf16.gmra.mxu0 %v1320
    %v1386 = vpop.f32.mrf.mxu0
    %v1387 = vadd.f32 0.0, %v1386
    %v1388 = vpop.f32.mrf.mxu0
    %v1389 = vadd.f32 0.0, %v1388
    %v1390 = vpop.f32.mrf.mxu0
    %v1391 = vadd.f32 0.0, %v1390
    %v1392 = vpop.f32.mrf.mxu0
    %v1393 = vadd.f32 0.0, %v1392
    %1394 = vdwg.mxu0
    %v1395 = vld [vmem:[#allocation6] sm:$0xff]
    %v1396 = vld [vmem:[#allocation6 + $0x8] sm:$0xff]
    %v1397 = vld [vmem:[#allocation6 + $0x10] sm:$0xff]
    %v1398 = vld [vmem:[#allocation6 + $0x18] sm:$0xff]
    %v1399 = vld [vmem:[#allocation6 + $0x20] sm:$0xff]
    %v1400 = vld [vmem:[#allocation6 + $0x28] sm:$0xff]
    %v1401 = vld [vmem:[#allocation6 + $0x30] sm:$0xff]
    %v1402 = vld [vmem:[#allocation6 + $0x38] sm:$0xff]
    %v1411 = vunpack.c.l.b16 %v1395
    %v1412 = vunpack.c.h.b16 %v1395
    %v1413 = vunpack.c.l.b16 %v1396
    %v1414 = vunpack.c.h.b16 %v1396
    %v1415 = vunpack.c.l.b16 %v1397
    %v1416 = vunpack.c.h.b16 %v1397
    %v1417 = vunpack.c.l.b16 %v1398
    %v1418 = vunpack.c.h.b16 %v1398
    %v1419 = vunpack.c.l.b16 %v1399
    %v1420 = vunpack.c.h.b16 %v1399
    %v1421 = vunpack.c.l.b16 %v1400
    %v1422 = vunpack.c.h.b16 %v1400
    %v1423 = vunpack.c.l.b16 %v1401
    %v1424 = vunpack.c.h.b16 %v1401
    %v1425 = vunpack.c.l.b16 %v1402
    %v1426 = vunpack.c.h.b16 %v1402
    %v1427 = vpack.c.b16 %v1413, %v1411
    %v1428 = vpack.c.b16 %v1414, %v1412
    %v1429 = vpack.c.b16 %v1417, %v1415
    %v1430 = vpack.c.b16 %v1418, %v1416
    %v1431 = vpack.c.b16 %v1421, %v1419
    %v1432 = vpack.c.b16 %v1422, %v1420
    %v1433 = vpack.c.b16 %v1425, %v1423
    %v1434 = vpack.c.b16 %v1426, %v1424
    %1443 = vmatprep.subr.bf16.mxu0 0
    %1444 = vmatpush1.bf16.msra.mxu0 0
    %1445 = vmatprep.subr.bf16.mxu0 0
    %1446 = vmatpush1.bf16.msra.mxu0 0
    %1447 = vmatprep.subr.bf16.mxu0 0
    %1448 = vmatpush1.bf16.msra.mxu0 0
    %1449 = vmatprep.subr.bf16.mxu0 0
    %1450 = vmatpush1.bf16.msra.mxu0 0
    %1451 = vmatprep.subr.bf16.mxu0 %v1434
    %1452 = vmatpush1.bf16.msra.mxu0 %v1433
    %1453 = vmatprep.subr.bf16.mxu0 %v1432
    %1454 = vmatpush1.bf16.msra.mxu0 %v1431
    %1455 = vmatprep.subr.bf16.mxu0 %v1430
    %1456 = vmatpush1.bf16.msra.mxu0 %v1429
    %1457 = vmatprep.subr.bf16.mxu0 %v1428
    %1458 = vmatpush1.bf16.msra.mxu0 %v1427
    %1459 = vmatprep.subr.bf16.mxu0 0
    %1460 = vmatpush2.bf16.msra.mxu0 0
    %1461 = vmatprep.subr.bf16.mxu0 0
    %1462 = vmatpush2.bf16.msra.mxu0 0
    %1463 = vmatprep.subr.bf16.mxu0 0
    %1464 = vmatpush2.bf16.msra.mxu0 0
    %1465 = vmatprep.subr.bf16.mxu0 0
    %1466 = vmatpush2.bf16.msra.mxu0 0
    %1467 = vmatprep.subr.bf16.mxu0 0
    %1468 = vmatpush2.bf16.msra.mxu0 0
    %1469 = vmatprep.subr.bf16.mxu0 0
    %1470 = vmatpush2.bf16.msra.mxu0 0
    %1471 = vmatprep.subr.bf16.mxu0 0
    %1472 = vmatpush2.bf16.msra.mxu0 0
    %1473 = vmatprep.subr.bf16.mxu0 0
    %1474 = vmatpush2.bf16.msra.mxu0 0
    %1475 = vmatprep.mubr.bf16.mxu0 0
    %1476 = vmatmul.mubr.bf16.gmra.mxu0 %v1311
    %v1477 = vpop.f32.mrf.mxu0
    %v1478 = vadd.f32 0.0, %v1477
    %v1479 = vpop.f32.mrf.mxu0
    %v1480 = vadd.f32 0.0, %v1479
    %v1481 = vpop.f32.mrf.mxu0
    %v1482 = vadd.f32 0.0, %v1481
    %v1483 = vpop.f32.mrf.mxu0
    %v1484 = vadd.f32 0.0, %v1483
    %1485 = vmatprep.mubr.bf16.mxu0 0
    %1486 = vmatmul.mubr.bf16.gmra.mxu0 %v1314
    %v1487 = vpop.f32.mrf.mxu0
    %v1488 = vadd.f32 0.0, %v1487
    %v1489 = vpop.f32.mrf.mxu0
    %v1490 = vadd.f32 0.0, %v1489
    %v1491 = vpop.f32.mrf.mxu0
    %v1492 = vadd.f32 0.0, %v1491
    %v1493 = vpop.f32.mrf.mxu0
    %v1494 = vadd.f32 0.0, %v1493
    %1495 = vmatprep.mubr.bf16.mxu0 0
    %1496 = vmatmul.mubr.bf16.gmra.mxu0 %v1317
    %v1497 = vpop.f32.mrf.mxu0
    %v1498 = vadd.f32 0.0, %v1497
    %v1499 = vpop.f32.mrf.mxu0
    %v1500 = vadd.f32 0.0, %v1499
    %v1501 = vpop.f32.mrf.mxu0
    %v1502 = vadd.f32 0.0, %v1501
    %v1503 = vpop.f32.mrf.mxu0
    %v1504 = vadd.f32 0.0, %v1503
    %1505 = vmatprep.mubr.bf16.mxu0 0
    %1506 = vmatmul.mubr.bf16.gmra.mxu0 %v1320
    %v1507 = vpop.f32.mrf.mxu0
    %v1508 = vadd.f32 0.0, %v1507
    %v1509 = vpop.f32.mrf.mxu0
    %v1510 = vadd.f32 0.0, %v1509
    %v1511 = vpop.f32.mrf.mxu0
    %v1512 = vadd.f32 0.0, %v1511
    %v1513 = vpop.f32.mrf.mxu0
    %v1514 = vadd.f32 0.0, %v1513
    %1515 = vdwg.mxu0
    %v1516 = vld [vmem:[%s9] sm:$0x3]
    %v1517 = vadd.f32 %v1357, %v1512
    %v1518 = vadd.f32 %v1359, %v1514
    %v1520 = vlaneseq
    %v1521 = vshrl.u32 %v1520, 7
    %v1522 = vsub.s32 0, %v1521
    %v1523 = vrot.slane %v1516, %v1522
    %v1524 = vlaneseq
    %v1525 = vshrl.u32 %v1524, 7
    %v1526 = vsub.s32 1, %v1525
    %v1527 = vrot.slane %v1516, %v1526
    %v1530 = vadd.f32 %v1517, %v1523
    %v1531 = vadd.f32 %v1518, %v1527
    %v1532 = vadd.f32 %v1361, %v1508
    %v1533 = vadd.f32 %v1363, %v1510
    %v1534 = vadd.f32 %v1532, %v1523
    %v1535 = vadd.f32 %v1533, %v1527
    %v1536 = vadd.f32 %v1367, %v1502
    %v1537 = vadd.f32 %v1369, %v1504
    %v1538 = vadd.f32 %v1536, %v1523
    %v1539 = vadd.f32 %v1537, %v1527
    %v1540 = vadd.f32 %v1371, %v1498
    %v1541 = vadd.f32 %v1373, %v1500
    %v1542 = vadd.f32 %v1540, %v1523
    %v1543 = vadd.f32 %v1541, %v1527
    %v1544 = vadd.f32 %v1377, %v1492
    %v1545 = vadd.f32 %v1379, %v1494
    %v1546 = vadd.f32 %v1544, %v1523
    %v1547 = vadd.f32 %v1545, %v1527
    %v1548 = vadd.f32 %v1381, %v1488
    %v1549 = vadd.f32 %v1383, %v1490
    %v1550 = vadd.f32 %v1548, %v1523
    %v1551 = vadd.f32 %v1549, %v1527
    %v1552 = vadd.f32 %v1387, %v1482
    %v1553 = vadd.f32 %v1389, %v1484
    %v1554 = vadd.f32 %v1552, %v1523
    %v1555 = vadd.f32 %v1553, %v1527
    %v1556 = vadd.f32 %v1391, %v1478
    %v1557 = vadd.f32 %v1393, %v1480
    %v1558 = vadd.f32 %v1556, %v1523
    %v1559 = vadd.f32 %v1557, %v1527
    %v1560 = vld [vmem:[#allocation8] sm:$0xff]
    %v1561 = vld [vmem:[#allocation8 + $0x8] sm:$0xff]
    %v1562 = vld [vmem:[#allocation8 + $0x10] sm:$0xff]
    %v1563 = vld [vmem:[#allocation8 + $0x18] sm:$0xff]
    %v1564 = vld [vmem:[#allocation8 + $0x20] sm:$0xff]
    %v1565 = vld [vmem:[#allocation8 + $0x28] sm:$0xff]
    %v1566 = vld [vmem:[#allocation8 + $0x30] sm:$0xff]
    %v1567 = vld [vmem:[#allocation8 + $0x38] sm:$0xff]
    %v1576 = vunpack.c.l.b16 %v1560
    %v1577 = vunpack.c.h.b16 %v1560
    %v1578 = vunpack.c.l.b16 %v1561
    %v1579 = vunpack.c.h.b16 %v1561
    %v1580 = vunpack.c.l.b16 %v1562
    %v1581 = vunpack.c.h.b16 %v1562
    %v1582 = vunpack.c.l.b16 %v1563
    %v1583 = vunpack.c.h.b16 %v1563
    %v1584 = vunpack.c.l.b16 %v1564
    %v1585 = vunpack.c.h.b16 %v1564
    %v1586 = vunpack.c.l.b16 %v1565
    %v1587 = vunpack.c.h.b16 %v1565
    %v1588 = vunpack.c.l.b16 %v1566
    %v1589 = vunpack.c.h.b16 %v1566
    %v1590 = vunpack.c.l.b16 %v1567
    %v1591 = vunpack.c.h.b16 %v1567
    %v1592 = vpack.c.b16 %v1578, %v1576
    %v1593 = vpack.c.b16 %v1579, %v1577
    %v1594 = vpack.c.b16 %v1582, %v1580
    %v1595 = vpack.c.b16 %v1583, %v1581
    %v1596 = vpack.c.b16 %v1586, %v1584
    %v1597 = vpack.c.b16 %v1587, %v1585
    %v1598 = vpack.c.b16 %v1590, %v1588
    %v1599 = vpack.c.b16 %v1591, %v1589
    %1608 = vmatprep.subr.bf16.mxu0 0
    %1609 = vmatpush1.bf16.msra.mxu0 0
    %1610 = vmatprep.subr.bf16.mxu0 0
    %1611 = vmatpush1.bf16.msra.mxu0 0
    %1612 = vmatprep.subr.bf16.mxu0 0
    %1613 = vmatpush1.bf16.msra.mxu0 0
    %1614 = vmatprep.subr.bf16.mxu0 0
    %1615 = vmatpush1.bf16.msra.mxu0 0
    %1616 = vmatprep.subr.bf16.mxu0 %v1599
    %1617 = vmatpush1.bf16.msra.mxu0 %v1598
    %1618 = vmatprep.subr.bf16.mxu0 %v1597
    %1619 = vmatpush1.bf16.msra.mxu0 %v1596
    %1620 = vmatprep.subr.bf16.mxu0 %v1595
    %1621 = vmatpush1.bf16.msra.mxu0 %v1594
    %1622 = vmatprep.subr.bf16.mxu0 %v1593
    %1623 = vmatpush1.bf16.msra.mxu0 %v1592
    %1624 = vmatprep.subr.bf16.mxu0 0
    %1625 = vmatpush2.bf16.msra.mxu0 0
    %1626 = vmatprep.subr.bf16.mxu0 0
    %1627 = vmatpush2.bf16.msra.mxu0 0
    %1628 = vmatprep.subr.bf16.mxu0 0
    %1629 = vmatpush2.bf16.msra.mxu0 0
    %1630 = vmatprep.subr.bf16.mxu0 0
    %1631 = vmatpush2.bf16.msra.mxu0 0
    %1632 = vmatprep.subr.bf16.mxu0 0
    %1633 = vmatpush2.bf16.msra.mxu0 0
    %1634 = vmatprep.subr.bf16.mxu0 0
    %1635 = vmatpush2.bf16.msra.mxu0 0
    %1636 = vmatprep.subr.bf16.mxu0 0
    %1637 = vmatpush2.bf16.msra.mxu0 0
    %1638 = vmatprep.subr.bf16.mxu0 0
    %1639 = vmatpush2.bf16.msra.mxu0 0
    %1640 = vmatprep.mubr.bf16.mxu0 0
    %1641 = vmatmul.mubr.bf16.gmra.mxu0 %v618
    %v1642 = vpop.f32.mrf.mxu0
    %v1643 = vadd.f32 0.0, %v1642
    %v1644 = vpop.f32.mrf.mxu0
    %v1645 = vadd.f32 0.0, %v1644
    %v1646 = vpop.f32.mrf.mxu0
    %v1647 = vpop.f32.mrf.mxu0
    %1648 = vdwg.mxu0
    %v1649 = vadd.f32 %v1530, %v1643
    %v1650 = vadd.f32 %v1531, %v1645
    %v1651 = vxor.u32 %v1649, 2147483648
    %v1652 = vxor.u32 %v1650, 2147483648
    %v1653 = vmul.f32 %v1651, 1.442695
    %v1654 = vpow.pop %v1653
    %v1655 = vmul.f32 %v1652, 1.442695
    %v1656 = vpow.pop %v1655
    %v1657 = vadd.f32 %v1654, 1.0
    %v1658 = vadd.f32 %v1656, 1.0
    %v1659 = vrcp.pop %v1657
    %v1660 = vmul.f32 1.0, %v1659
    %v1661 = vrcp.pop %v1658
    %v1662 = vmul.f32 1.0, %v1661
    %v1663 = vtanh.pop %v1650
    %v1664 = vmul.f32 %v1660, 0.0
    %1666 = vrot.lane.b32.xlu0 %v1663, 64
    %v1667 = vpop.permute.xlu0 %1666
    %v1669 = vmul.f32 %v1660, %v1667
    %1671 = vrot.lane.b32.xlu0 %v1669, 64
    %v1672 = vpop.permute.xlu0 %1671
    %v1674 = vadd.f32 %v1664, %v1672
    %v1675 = vtanh.pop %v1674
    %1677 = vrot.lane.b32.xlu0 %v1675, 64
    %v1678 = vpop.permute.xlu0 %1677
    %v1680 = vmul.f32 %v1662, %v1678
    %v1681 = vpack.c.bf16 %v1680, %v1680
    %v1683 = vsel %vm616, %v1681, 0
    %1685 = vmatprep.subr.bf16.mxu0 0
    %1686 = vmatpush1.bf16.msra.mxu0 0
    %1687 = vmatprep.subr.bf16.mxu0 0
    %1688 = vmatpush1.bf16.msra.mxu0 0
    %1689 = vmatprep.subr.bf16.mxu0 0
    %1690 = vmatpush1.bf16.msra.mxu0 0
    %1691 = vmatprep.subr.bf16.mxu0 0
    %1692 = vmatpush1.bf16.msra.mxu0 0
    %1693 = vmatprep.subr.bf16.mxu0 %v1599
    %1694 = vmatpush1.bf16.msra.mxu0 %v1598
    %1695 = vmatprep.subr.bf16.mxu0 %v1597
    %1696 = vmatpush1.bf16.msra.mxu0 %v1596
    %1697 = vmatprep.subr.bf16.mxu0 %v1595
    %1698 = vmatpush1.bf16.msra.mxu0 %v1594
    %1699 = vmatprep.subr.bf16.mxu0 %v1593
    %1700 = vmatpush1.bf16.msra.mxu0 %v1592
    %1701 = vmatprep.subr.bf16.mxu0 0
    %1702 = vmatpush2.bf16.msra.mxu0 0
    %1703 = vmatprep.subr.bf16.mxu0 0
    %1704 = vmatpush2.bf16.msra.mxu0 0
    %1705 = vmatprep.subr.bf16.mxu0 0
    %1706 = vmatpush2.bf16.msra.mxu0 0
    %1707 = vmatprep.subr.bf16.mxu0 0
    %1708 = vmatpush2.bf16.msra.mxu0 0
    %1709 = vmatprep.subr.bf16.mxu0 0
    %1710 = vmatpush2.bf16.msra.mxu0 0
    %1711 = vmatprep.subr.bf16.mxu0 0
    %1712 = vmatpush2.bf16.msra.mxu0 0
    %1713 = vmatprep.subr.bf16.mxu0 0
    %1714 = vmatpush2.bf16.msra.mxu0 0
    %1715 = vmatprep.subr.bf16.mxu0 0
    %1716 = vmatpush2.bf16.msra.mxu0 0
    %1717 = vmatprep.mubr.bf16.mxu0 0
    %1718 = vmatmul.mubr.bf16.gmra.mxu0 %v1683
    %v1719 = vpop.f32.mrf.mxu0
    %v1720 = vadd.f32 0.0, %v1719
    %v1721 = vpop.f32.mrf.mxu0
    %v1722 = vadd.f32 0.0, %v1721
    %v1723 = vpop.f32.mrf.mxu0
    %v1724 = vpop.f32.mrf.mxu0
    %1725 = vdwg.mxu0
    %v1726 = vadd.f32 %v1534, %v1720
    %v1727 = vadd.f32 %v1535, %v1722
    %v1728 = vxor.u32 %v1726, 2147483648
    %v1729 = vxor.u32 %v1727, 2147483648
    %v1730 = vmul.f32 %v1728, 1.442695
    %v1731 = vpow.pop %v1730
    %v1732 = vmul.f32 %v1729, 1.442695
    %v1733 = vpow.pop %v1732
    %v1734 = vadd.f32 %v1731, 1.0
    %v1735 = vadd.f32 %v1733, 1.0
    %v1736 = vrcp.pop %v1734
    %v1737 = vmul.f32 1.0, %v1736
    %v1738 = vrcp.pop %v1735
    %v1739 = vmul.f32 1.0, %v1738
    %v1740 = vtanh.pop %v1727
    %v1741 = vmul.f32 %v1737, %v1674
    %1743 = vrot.lane.b32.xlu0 %v1740, 64
    %v1744 = vpop.permute.xlu0 %1743
    %v1746 = vmul.f32 %v1737, %v1744
    %1748 = vrot.lane.b32.xlu0 %v1746, 64
    %v1749 = vpop.permute.xlu0 %1748
    %v1751 = vadd.f32 %v1741, %v1749
    %v1752 = vtanh.pop %v1751
    %1754 = vrot.lane.b32.xlu0 %v1752, 64
    %v1755 = vpop.permute.xlu0 %1754
    %v1757 = vmul.f32 %v1739, %v1755
    %v1758 = vpack.c.bf16 %v1757, %v1757
    %v1760 = vsel %vm616, %v1758, 0
    %1762 = vmatprep.subr.bf16.mxu0 0
    %1763 = vmatpush1.bf16.msra.mxu0 0
    %1764 = vmatprep.subr.bf16.mxu0 0
    %1765 = vmatpush1.bf16.msra.mxu0 0
    %1766 = vmatprep.subr.bf16.mxu0 0
    %1767 = vmatpush1.bf16.msra.mxu0 0
    %1768 = vmatprep.subr.bf16.mxu0 0
    %1769 = vmatpush1.bf16.msra.mxu0 0
    %1770 = vmatprep.subr.bf16.mxu0 %v1599
    %1771 = vmatpush1.bf16.msra.mxu0 %v1598
    %1772 = vmatprep.subr.bf16.mxu0 %v1597
    %1773 = vmatpush1.bf16.msra.mxu0 %v1596
    %1774 = vmatprep.subr.bf16.mxu0 %v1595
    %1775 = vmatpush1.bf16.msra.mxu0 %v1594
    %1776 = vmatprep.subr.bf16.mxu0 %v1593
    %1777 = vmatpush1.bf16.msra.mxu0 %v1592
    %1778 = vmatprep.subr.bf16.mxu0 0
    %1779 = vmatpush2.bf16.msra.mxu0 0
    %1780 = vmatprep.subr.bf16.mxu0 0
    %1781 = vmatpush2.bf16.msra.mxu0 0
    %1782 = vmatprep.subr.bf16.mxu0 0
    %1783 = vmatpush2.bf16.msra.mxu0 0
    %1784 = vmatprep.subr.bf16.mxu0 0
    %1785 = vmatpush2.bf16.msra.mxu0 0
    %1786 = vmatprep.subr.bf16.mxu0 0
    %1787 = vmatpush2.bf16.msra.mxu0 0
    %1788 = vmatprep.subr.bf16.mxu0 0
    %1789 = vmatpush2.bf16.msra.mxu0 0
    %1790 = vmatprep.subr.bf16.mxu0 0
    %1791 = vmatpush2.bf16.msra.mxu0 0
    %1792 = vmatprep.subr.bf16.mxu0 0
    %1793 = vmatpush2.bf16.msra.mxu0 0
    %1794 = vmatprep.mubr.bf16.mxu0 0
    %1795 = vmatmul.mubr.bf16.gmra.mxu0 %v1760
    %v1796 = vpop.f32.mrf.mxu0
    %v1797 = vadd.f32 0.0, %v1796
    %v1798 = vpop.f32.mrf.mxu0
    %v1799 = vadd.f32 0.0, %v1798
    %v1800 = vpop.f32.mrf.mxu0
    %v1801 = vpop.f32.mrf.mxu0
    %1802 = vdwg.mxu0
    %v1803 = vadd.f32 %v1538, %v1797
    %v1804 = vadd.f32 %v1539, %v1799
    %v1805 = vxor.u32 %v1803, 2147483648
    %v1806 = vxor.u32 %v1804, 2147483648
    %v1807 = vmul.f32 %v1805, 1.442695
    %v1808 = vpow.pop %v1807
    %v1809 = vmul.f32 %v1806, 1.442695
    %v1810 = vpow.pop %v1809
    %v1811 = vadd.f32 %v1808, 1.0
    %v1812 = vadd.f32 %v1810, 1.0
    %v1813 = vrcp.pop %v1811
    %v1814 = vmul.f32 1.0, %v1813
    %v1815 = vrcp.pop %v1812
    %v1816 = vmul.f32 1.0, %v1815
    %v1817 = vtanh.pop %v1804
    %v1818 = vmul.f32 %v1814, %v1751
    %1820 = vrot.lane.b32.xlu0 %v1817, 64
    %v1821 = vpop.permute.xlu0 %1820
    %v1823 = vmul.f32 %v1814, %v1821
    %1825 = vrot.lane.b32.xlu0 %v1823, 64
    %v1826 = vpop.permute.xlu0 %1825
    %v1828 = vadd.f32 %v1818, %v1826
    %v1829 = vtanh.pop %v1828
    %1831 = vrot.lane.b32.xlu0 %v1829, 64
    %v1832 = vpop.permute.xlu0 %1831
    %v1834 = vmul.f32 %v1816, %v1832
    %v1835 = vpack.c.bf16 %v1834, %v1834
    %v1837 = vsel %vm616, %v1835, 0
    %1839 = vmatprep.subr.bf16.mxu0 0
    %1840 = vmatpush1.bf16.msra.mxu0 0
    %1841 = vmatprep.subr.bf16.mxu0 0
    %1842 = vmatpush1.bf16.msra.mxu0 0
    %1843 = vmatprep.subr.bf16.mxu0 0
    %1844 = vmatpush1.bf16.msra.mxu0 0
    %1845 = vmatprep.subr.bf16.mxu0 0
    %1846 = vmatpush1.bf16.msra.mxu0 0
    %1847 = vmatprep.subr.bf16.mxu0 %v1599
    %1848 = vmatpush1.bf16.msra.mxu0 %v1598
    %1849 = vmatprep.subr.bf16.mxu0 %v1597
    %1850 = vmatpush1.bf16.msra.mxu0 %v1596
    %1851 = vmatprep.subr.bf16.mxu0 %v1595
    %1852 = vmatpush1.bf16.msra.mxu0 %v1594
    %1853 = vmatprep.subr.bf16.mxu0 %v1593
    %1854 = vmatpush1.bf16.msra.mxu0 %v1592
    %1855 = vmatprep.subr.bf16.mxu0 0
    %1856 = vmatpush2.bf16.msra.mxu0 0
    %1857 = vmatprep.subr.bf16.mxu0 0
    %1858 = vmatpush2.bf16.msra.mxu0 0
    %1859 = vmatprep.subr.bf16.mxu0 0
    %1860 = vmatpush2.bf16.msra.mxu0 0
    %1861 = vmatprep.subr.bf16.mxu0 0
    %1862 = vmatpush2.bf16.msra.mxu0 0
    %1863 = vmatprep.subr.bf16.mxu0 0
    %1864 = vmatpush2.bf16.msra.mxu0 0
    %1865 = vmatprep.subr.bf16.mxu0 0
    %1866 = vmatpush2.bf16.msra.mxu0 0
    %1867 = vmatprep.subr.bf16.mxu0 0
    %1868 = vmatpush2.bf16.msra.mxu0 0
    %1869 = vmatprep.subr.bf16.mxu0 0
    %1870 = vmatpush2.bf16.msra.mxu0 0
    %1871 = vmatprep.mubr.bf16.mxu0 0
    %1872 = vmatmul.mubr.bf16.gmra.mxu0 %v1837
    %v1873 = vpop.f32.mrf.mxu0
    %v1874 = vadd.f32 0.0, %v1873
    %v1875 = vpop.f32.mrf.mxu0
    %v1876 = vadd.f32 0.0, %v1875
    %v1877 = vpop.f32.mrf.mxu0
    %v1878 = vpop.f32.mrf.mxu0
    %1879 = vdwg.mxu0
    %v1880 = vadd.f32 %v1542, %v1874
    %v1881 = vadd.f32 %v1543, %v1876
    %v1882 = vxor.u32 %v1880, 2147483648
    %v1883 = vxor.u32 %v1881, 2147483648
    %v1884 = vmul.f32 %v1882, 1.442695
    %v1885 = vpow.pop %v1884
    %v1886 = vmul.f32 %v1883, 1.442695
    %v1887 = vpow.pop %v1886
    %v1888 = vadd.f32 %v1885, 1.0
    %v1889 = vadd.f32 %v1887, 1.0
    %v1890 = vrcp.pop %v1888
    %v1891 = vmul.f32 1.0, %v1890
    %v1892 = vrcp.pop %v1889
    %v1893 = vmul.f32 1.0, %v1892
    %v1894 = vtanh.pop %v1881
    %v1895 = vmul.f32 %v1891, %v1828
    %1897 = vrot.lane.b32.xlu0 %v1894, 64
    %v1898 = vpop.permute.xlu0 %1897
    %v1900 = vmul.f32 %v1891, %v1898
    %1902 = vrot.lane.b32.xlu0 %v1900, 64
    %v1903 = vpop.permute.xlu0 %1902
    %v1905 = vadd.f32 %v1895, %v1903
    %v1906 = vtanh.pop %v1905
    %1908 = vrot.lane.b32.xlu0 %v1906, 64
    %v1909 = vpop.permute.xlu0 %1908
    %v1911 = vmul.f32 %v1893, %v1909
    %v1912 = vpack.c.bf16 %v1911, %v1911
    %v1914 = vsel %vm616, %v1912, 0
    %1916 = vmatprep.subr.bf16.mxu0 0
    %1917 = vmatpush1.bf16.msra.mxu0 0
    %1918 = vmatprep.subr.bf16.mxu0 0
    %1919 = vmatpush1.bf16.msra.mxu0 0
    %1920 = vmatprep.subr.bf16.mxu0 0
    %1921 = vmatpush1.bf16.msra.mxu0 0
    %1922 = vmatprep.subr.bf16.mxu0 0
    %1923 = vmatpush1.bf16.msra.mxu0 0
    %1924 = vmatprep.subr.bf16.mxu0 %v1599
    %1925 = vmatpush1.bf16.msra.mxu0 %v1598
    %1926 = vmatprep.subr.bf16.mxu0 %v1597
    %1927 = vmatpush1.bf16.msra.mxu0 %v1596
    %1928 = vmatprep.subr.bf16.mxu0 %v1595
    %1929 = vmatpush1.bf16.msra.mxu0 %v1594
    %1930 = vmatprep.subr.bf16.mxu0 %v1593
    %1931 = vmatpush1.bf16.msra.mxu0 %v1592
    %1932 = vmatprep.subr.bf16.mxu0 0
    %1933 = vmatpush2.bf16.msra.mxu0 0
    %1934 = vmatprep.subr.bf16.mxu0 0
    %1935 = vmatpush2.bf16.msra.mxu0 0
    %1936 = vmatprep.subr.bf16.mxu0 0
    %1937 = vmatpush2.bf16.msra.mxu0 0
    %1938 = vmatprep.subr.bf16.mxu0 0
    %1939 = vmatpush2.bf16.msra.mxu0 0
    %1940 = vmatprep.subr.bf16.mxu0 0
    %1941 = vmatpush2.bf16.msra.mxu0 0
    %1942 = vmatprep.subr.bf16.mxu0 0
    %1943 = vmatpush2.bf16.msra.mxu0 0
    %1944 = vmatprep.subr.bf16.mxu0 0
    %1945 = vmatpush2.bf16.msra.mxu0 0
    %1946 = vmatprep.subr.bf16.mxu0 0
    %1947 = vmatpush2.bf16.msra.mxu0 0
    %1948 = vmatprep.mubr.bf16.mxu0 0
    %1949 = vmatmul.mubr.bf16.gmra.mxu0 %v1914
    %v1950 = vpop.f32.mrf.mxu0
    %v1951 = vadd.f32 0.0, %v1950
    %v1952 = vpop.f32.mrf.mxu0
    %v1953 = vadd.f32 0.0, %v1952
    %v1954 = vpop.f32.mrf.mxu0
    %v1955 = vpop.f32.mrf.mxu0
    %1956 = vdwg.mxu0
    %v1957 = vadd.f32 %v1546, %v1951
    %v1958 = vadd.f32 %v1547, %v1953
    %v1959 = vxor.u32 %v1957, 2147483648
    %v1960 = vxor.u32 %v1958, 2147483648
    %v1961 = vmul.f32 %v1959, 1.442695
    %v1962 = vpow.pop %v1961
    %v1963 = vmul.f32 %v1960, 1.442695
    %v1964 = vpow.pop %v1963
    %v1965 = vadd.f32 %v1962, 1.0
    %v1966 = vadd.f32 %v1964, 1.0
    %v1967 = vrcp.pop %v1965
    %v1968 = vmul.f32 1.0, %v1967
    %v1969 = vrcp.pop %v1966
    %v1970 = vmul.f32 1.0, %v1969
    %v1971 = vtanh.pop %v1958
    %v1972 = vmul.f32 %v1968, %v1905
    %1974 = vrot.lane.b32.xlu0 %v1971, 64
    %v1975 = vpop.permute.xlu0 %1974
    %v1977 = vmul.f32 %v1968, %v1975
    %1979 = vrot.lane.b32.xlu0 %v1977, 64
    %v1980 = vpop.permute.xlu0 %1979
    %v1982 = vadd.f32 %v1972, %v1980
    %v1983 = vtanh.pop %v1982
    %1985 = vrot.lane.b32.xlu0 %v1983, 64
    %v1986 = vpop.permute.xlu0 %1985
    %v1988 = vmul.f32 %v1970, %v1986
    %v1989 = vpack.c.bf16 %v1988, %v1988
    %v1991 = vsel %vm616, %v1989, 0
    %1993 = vmatprep.subr.bf16.mxu0 0
    %1994 = vmatpush1.bf16.msra.mxu0 0
    %1995 = vmatprep.subr.bf16.mxu0 0
    %1996 = vmatpush1.bf16.msra.mxu0 0
    %1997 = vmatprep.subr.bf16.mxu0 0
    %1998 = vmatpush1.bf16.msra.mxu0 0
    %1999 = vmatprep.subr.bf16.mxu0 0
    %2000 = vmatpush1.bf16.msra.mxu0 0
    %2001 = vmatprep.subr.bf16.mxu0 %v1599
    %2002 = vmatpush1.bf16.msra.mxu0 %v1598
    %2003 = vmatprep.subr.bf16.mxu0 %v1597
    %2004 = vmatpush1.bf16.msra.mxu0 %v1596
    %2005 = vmatprep.subr.bf16.mxu0 %v1595
    %2006 = vmatpush1.bf16.msra.mxu0 %v1594
    %2007 = vmatprep.subr.bf16.mxu0 %v1593
    %2008 = vmatpush1.bf16.msra.mxu0 %v1592
    %2009 = vmatprep.subr.bf16.mxu0 0
    %2010 = vmatpush2.bf16.msra.mxu0 0
    %2011 = vmatprep.subr.bf16.mxu0 0
    %2012 = vmatpush2.bf16.msra.mxu0 0
    %2013 = vmatprep.subr.bf16.mxu0 0
    %2014 = vmatpush2.bf16.msra.mxu0 0
    %2015 = vmatprep.subr.bf16.mxu0 0
    %2016 = vmatpush2.bf16.msra.mxu0 0
    %2017 = vmatprep.subr.bf16.mxu0 0
    %2018 = vmatpush2.bf16.msra.mxu0 0
    %2019 = vmatprep.subr.bf16.mxu0 0
    %2020 = vmatpush2.bf16.msra.mxu0 0
    %2021 = vmatprep.subr.bf16.mxu0 0
    %2022 = vmatpush2.bf16.msra.mxu0 0
    %2023 = vmatprep.subr.bf16.mxu0 0
    %2024 = vmatpush2.bf16.msra.mxu0 0
    %2025 = vmatprep.mubr.bf16.mxu0 0
    %2026 = vmatmul.mubr.bf16.gmra.mxu0 %v1991
    %v2027 = vpop.f32.mrf.mxu0
    %v2028 = vadd.f32 0.0, %v2027
    %v2029 = vpop.f32.mrf.mxu0
    %v2030 = vadd.f32 0.0, %v2029
    %v2031 = vpop.f32.mrf.mxu0
    %v2032 = vpop.f32.mrf.mxu0
    %2033 = vdwg.mxu0
    %v2034 = vadd.f32 %v1550, %v2028
    %v2035 = vadd.f32 %v1551, %v2030
    %v2036 = vxor.u32 %v2034, 2147483648
    %v2037 = vxor.u32 %v2035, 2147483648
    %v2038 = vmul.f32 %v2036, 1.442695
    %v2039 = vpow.pop %v2038
    %v2040 = vmul.f32 %v2037, 1.442695
    %v2041 = vpow.pop %v2040
    %v2042 = vadd.f32 %v2039, 1.0
    %v2043 = vadd.f32 %v2041, 1.0
    %v2044 = vrcp.pop %v2042
    %v2045 = vmul.f32 1.0, %v2044
    %v2046 = vrcp.pop %v2043
    %v2047 = vmul.f32 1.0, %v2046
    %v2048 = vtanh.pop %v2035
    %v2049 = vmul.f32 %v2045, %v1982
    %2051 = vrot.lane.b32.xlu0 %v2048, 64
    %v2052 = vpop.permute.xlu0 %2051
    %v2054 = vmul.f32 %v2045, %v2052
    %2056 = vrot.lane.b32.xlu0 %v2054, 64
    %v2057 = vpop.permute.xlu0 %2056
    %v2059 = vadd.f32 %v2049, %v2057
    %v2060 = vtanh.pop %v2059
    %2062 = vrot.lane.b32.xlu0 %v2060, 64
    %v2063 = vpop.permute.xlu0 %2062
    %v2065 = vmul.f32 %v2047, %v2063
    %v2066 = vpack.c.bf16 %v2065, %v2065
    %v2068 = vsel %vm616, %v2066, 0
    %2070 = vmatprep.subr.bf16.mxu0 0
    %2071 = vmatpush1.bf16.msra.mxu0 0
    %2072 = vmatprep.subr.bf16.mxu0 0
    %2073 = vmatpush1.bf16.msra.mxu0 0
    %2074 = vmatprep.subr.bf16.mxu0 0
    %2075 = vmatpush1.bf16.msra.mxu0 0
    %2076 = vmatprep.subr.bf16.mxu0 0
    %2077 = vmatpush1.bf16.msra.mxu0 0
    %2078 = vmatprep.subr.bf16.mxu0 %v1599
    %2079 = vmatpush1.bf16.msra.mxu0 %v1598
    %2080 = vmatprep.subr.bf16.mxu0 %v1597
    %2081 = vmatpush1.bf16.msra.mxu0 %v1596
    %2082 = vmatprep.subr.bf16.mxu0 %v1595
    %2083 = vmatpush1.bf16.msra.mxu0 %v1594
    %2084 = vmatprep.subr.bf16.mxu0 %v1593
    %2085 = vmatpush1.bf16.msra.mxu0 %v1592
    %2086 = vmatprep.subr.bf16.mxu0 0
    %2087 = vmatpush2.bf16.msra.mxu0 0
    %2088 = vmatprep.subr.bf16.mxu0 0
    %2089 = vmatpush2.bf16.msra.mxu0 0
    %2090 = vmatprep.subr.bf16.mxu0 0
    %2091 = vmatpush2.bf16.msra.mxu0 0
    %2092 = vmatprep.subr.bf16.mxu0 0
    %2093 = vmatpush2.bf16.msra.mxu0 0
    %2094 = vmatprep.subr.bf16.mxu0 0
    %2095 = vmatpush2.bf16.msra.mxu0 0
    %2096 = vmatprep.subr.bf16.mxu0 0
    %2097 = vmatpush2.bf16.msra.mxu0 0
    %2098 = vmatprep.subr.bf16.mxu0 0
    %2099 = vmatpush2.bf16.msra.mxu0 0
    %2100 = vmatprep.subr.bf16.mxu0 0
    %2101 = vmatpush2.bf16.msra.mxu0 0
    %2102 = vmatprep.mubr.bf16.mxu0 0
    %2103 = vmatmul.mubr.bf16.gmra.mxu0 %v2068
    %v2104 = vpop.f32.mrf.mxu0
    %v2105 = vadd.f32 0.0, %v2104
    %v2106 = vpop.f32.mrf.mxu0
    %v2107 = vadd.f32 0.0, %v2106
    %v2108 = vpop.f32.mrf.mxu0
    %v2109 = vpop.f32.mrf.mxu0
    %2110 = vdwg.mxu0
    %v2111 = vadd.f32 %v1554, %v2105
    %v2112 = vadd.f32 %v1555, %v2107
    %v2113 = vxor.u32 %v2111, 2147483648
    %v2114 = vxor.u32 %v2112, 2147483648
    %v2115 = vmul.f32 %v2113, 1.442695
    %v2116 = vpow.pop %v2115
    %v2117 = vmul.f32 %v2114, 1.442695
    %v2118 = vpow.pop %v2117
    %v2119 = vadd.f32 %v2116, 1.0
    %v2120 = vadd.f32 %v2118, 1.0
    %v2121 = vrcp.pop %v2119
    %v2122 = vmul.f32 1.0, %v2121
    %v2123 = vrcp.pop %v2120
    %v2124 = vmul.f32 1.0, %v2123
    %v2125 = vtanh.pop %v2112
    %v2126 = vmul.f32 %v2122, %v2059
    %2128 = vrot.lane.b32.xlu0 %v2125, 64
    %v2129 = vpop.permute.xlu0 %2128
    %v2131 = vmul.f32 %v2122, %v2129
    %2133 = vrot.lane.b32.xlu0 %v2131, 64
    %v2134 = vpop.permute.xlu0 %2133
    %v2136 = vadd.f32 %v2126, %v2134
    %v2137 = vtanh.pop %v2136
    %2139 = vrot.lane.b32.xlu0 %v2137, 64
    %v2140 = vpop.permute.xlu0 %2139
    %v2142 = vmul.f32 %v2124, %v2140
    %v2143 = vpack.c.bf16 %v2142, %v2142
    %v2145 = vsel %vm616, %v2143, 0
    %2147 = vmatprep.subr.bf16.mxu0 0
    %2148 = vmatpush1.bf16.msra.mxu0 0
    %2149 = vmatprep.subr.bf16.mxu0 0
    %2150 = vmatpush1.bf16.msra.mxu0 0
    %2151 = vmatprep.subr.bf16.mxu0 0
    %2152 = vmatpush1.bf16.msra.mxu0 0
    %2153 = vmatprep.subr.bf16.mxu0 0
    %2154 = vmatpush1.bf16.msra.mxu0 0
    %2155 = vmatprep.subr.bf16.mxu0 %v1599
    %2156 = vmatpush1.bf16.msra.mxu0 %v1598
    %2157 = vmatprep.subr.bf16.mxu0 %v1597
    %2158 = vmatpush1.bf16.msra.mxu0 %v1596
    %2159 = vmatprep.subr.bf16.mxu0 %v1595
    %2160 = vmatpush1.bf16.msra.mxu0 %v1594
    %2161 = vmatprep.subr.bf16.mxu0 %v1593
    %2162 = vmatpush1.bf16.msra.mxu0 %v1592
    %2163 = vmatprep.subr.bf16.mxu0 0
    %2164 = vmatpush2.bf16.msra.mxu0 0
    %2165 = vmatprep.subr.bf16.mxu0 0
    %2166 = vmatpush2.bf16.msra.mxu0 0
    %2167 = vmatprep.subr.bf16.mxu0 0
    %2168 = vmatpush2.bf16.msra.mxu0 0
    %2169 = vmatprep.subr.bf16.mxu0 0
    %2170 = vmatpush2.bf16.msra.mxu0 0
    %2171 = vmatprep.subr.bf16.mxu0 0
    %2172 = vmatpush2.bf16.msra.mxu0 0
    %2173 = vmatprep.subr.bf16.mxu0 0
    %2174 = vmatpush2.bf16.msra.mxu0 0
    %2175 = vmatprep.subr.bf16.mxu0 0
    %2176 = vmatpush2.bf16.msra.mxu0 0
    %2177 = vmatprep.subr.bf16.mxu0 0
    %2178 = vmatpush2.bf16.msra.mxu0 0
    %2179 = vmatprep.mubr.bf16.mxu0 0
    %2180 = vmatmul.mubr.bf16.gmra.mxu0 %v2145
    %v2181 = vpop.f32.mrf.mxu0
    %v2182 = vadd.f32 0.0, %v2181
    %v2183 = vpop.f32.mrf.mxu0
    %v2184 = vadd.f32 0.0, %v2183
    %v2185 = vpop.f32.mrf.mxu0
    %v2186 = vpop.f32.mrf.mxu0
    %2187 = vdwg.mxu0
    %v2188 = vadd.f32 %v1558, %v2182
    %v2189 = vadd.f32 %v1559, %v2184
    %v2190 = vxor.u32 %v2188, 2147483648
    %v2191 = vxor.u32 %v2189, 2147483648
    %v2192 = vmul.f32 %v2190, 1.442695
    %v2193 = vpow.pop %v2192
    %v2194 = vmul.f32 %v2191, 1.442695
    %v2195 = vpow.pop %v2194
    %v2196 = vadd.f32 %v2193, 1.0
    %v2197 = vadd.f32 %v2195, 1.0
    %v2198 = vrcp.pop %v2196
    %v2199 = vmul.f32 1.0, %v2198
    %v2200 = vrcp.pop %v2197
    %v2201 = vmul.f32 1.0, %v2200
    %v2202 = vtanh.pop %v2189
    %v2203 = vmul.f32 %v2199, %v2136
    %2205 = vrot.lane.b32.xlu0 %v2202, 64
    %v2206 = vpop.permute.xlu0 %2205
    %v2208 = vmul.f32 %v2199, %v2206
    %2210 = vrot.lane.b32.xlu0 %v2208, 64
    %v2211 = vpop.permute.xlu0 %2210
    %v2213 = vadd.f32 %v2203, %v2211
    %v2214 = vtanh.pop %v2213
    %2216 = vrot.lane.b32.xlu0 %v2214, 64
    %v2217 = vpop.permute.xlu0 %2216
    %v2219 = vmul.f32 %v2201, %v2217
    %2221 = vrot.lane.b32.xlu0 %v2219, 64
    %v2222 = vpop.permute.xlu0 %2221
    %v2224 = vsel %vm616, %v1247, %v2222
    %v2225 = vld [vmem:[%s10] sm:$0xff]
    %v2226 = vld [vmem:[%s10 + $0x8] sm:$0xff]
    %v2227 = vld [vmem:[%s10 + $0x10] sm:$0xff]
    %v2228 = vld [vmem:[%s10 + $0x18] sm:$0xff]
    %v2229 = vld [vmem:[%s10 + $0x20] sm:$0xff]
    %v2230 = vld [vmem:[%s10 + $0x28] sm:$0xff]
    %v2231 = vld [vmem:[%s10 + $0x30] sm:$0xff]
    %v2232 = vld [vmem:[%s10 + $0x38] sm:$0xff]
    %v2233 = vld [vmem:[%s10 + $0x40] sm:$0xff]
    %v2234 = vld [vmem:[%s10 + $0x48] sm:$0xff]
    %v2235 = vld [vmem:[%s10 + $0x50] sm:$0xff]
    %v2236 = vld [vmem:[%s10 + $0x58] sm:$0xff]
    %v2237 = vld [vmem:[%s10 + $0x60] sm:$0xff]
    %v2238 = vld [vmem:[%s10 + $0x68] sm:$0xff]
    %v2239 = vld [vmem:[%s10 + $0x70] sm:$0xff]
    %v2240 = vld [vmem:[%s10 + $0x78] sm:$0xff]
    %v2241 = vld [vmem:[%s11] sm:$0x1]
    %v2243 = vlaneseq
    %v2244 = vshrl.u32 %v2243, 7
    %v2245 = vsub.s32 0, %v2244
    %v2246 = vrot.slane %v2241, %v2245
    %2248 = vmatprep.subr.mxu0 0.0
    %2249 = vmatpush1.msra.mxu0 %v2240
    %2250 = vmatprep.subr.mxu0 0.0
    %2251 = vmatpush1.msra.mxu0 %v2239
    %2252 = vmatprep.subr.mxu0 0.0
    %2253 = vmatpush1.msra.mxu0 %v2238
    %2254 = vmatprep.subr.mxu0 0.0
    %2255 = vmatpush1.msra.mxu0 %v2237
    %2256 = vmatprep.subr.mxu0 0.0
    %2257 = vmatpush1.msra.mxu0 %v2236
    %2258 = vmatprep.subr.mxu0 0.0
    %2259 = vmatpush1.msra.mxu0 %v2235
    %2260 = vmatprep.subr.mxu0 0.0
    %2261 = vmatpush1.msra.mxu0 %v2234
    %2262 = vmatprep.subr.mxu0 0.0
    %2263 = vmatpush1.msra.mxu0 %v2233
    %2264 = vmatprep.subr.mxu0 0.0
    %2265 = vmatpush1.msra.mxu0 %v2232
    %2266 = vmatprep.subr.mxu0 0.0
    %2267 = vmatpush1.msra.mxu0 %v2231
    %2268 = vmatprep.subr.mxu0 0.0
    %2269 = vmatpush1.msra.mxu0 %v2230
    %2270 = vmatprep.subr.mxu0 0.0
    %2271 = vmatpush1.msra.mxu0 %v2229
    %2272 = vmatprep.subr.mxu0 0.0
    %2273 = vmatpush1.msra.mxu0 %v2228
    %2274 = vmatprep.subr.mxu0 0.0
    %2275 = vmatpush1.msra.mxu0 %v2227
    %2276 = vmatprep.subr.mxu0 0.0
    %2277 = vmatpush1.msra.mxu0 %v2226
    %2278 = vmatprep.subr.mxu0 0.0
    %2279 = vmatpush1.msra.mxu0 %v2225
    %2280 = vmatprep.subr.mxu0 0.0
    %2281 = vmatpush2.msra.mxu0 0.0
    %2282 = vmatprep.subr.mxu0 0.0
    %2283 = vmatpush2.msra.mxu0 0.0
    %2284 = vmatprep.subr.mxu0 0.0
    %2285 = vmatpush2.msra.mxu0 0.0
    %2286 = vmatprep.subr.mxu0 0.0
    %2287 = vmatpush2.msra.mxu0 0.0
    %2288 = vmatprep.subr.mxu0 0.0
    %2289 = vmatpush2.msra.mxu0 0.0
    %2290 = vmatprep.subr.mxu0 0.0
    %2291 = vmatpush2.msra.mxu0 0.0
    %2292 = vmatprep.subr.mxu0 0.0
    %2293 = vmatpush2.msra.mxu0 0.0
    %2294 = vmatprep.subr.mxu0 0.0
    %2295 = vmatpush2.msra.mxu0 0.0
    %2296 = vmatprep.subr.mxu0 0.0
    %2297 = vmatpush2.msra.mxu0 0.0
    %2298 = vmatprep.subr.mxu0 0.0
    %2299 = vmatpush2.msra.mxu0 0.0
    %2300 = vmatprep.subr.mxu0 0.0
    %2301 = vmatpush2.msra.mxu0 0.0
    %2302 = vmatprep.subr.mxu0 0.0
    %2303 = vmatpush2.msra.mxu0 0.0
    %2304 = vmatprep.subr.mxu0 0.0
    %2305 = vmatpush2.msra.mxu0 0.0
    %2306 = vmatprep.subr.mxu0 0.0
    %2307 = vmatpush2.msra.mxu0 0.0
    %2308 = vmatprep.subr.mxu0 0.0
    %2309 = vmatpush2.msra.mxu0 0.0
    %2310 = vmatprep.subr.mxu0 0.0
    %2311 = vmatpush2.msra.mxu0 0.0
    %2312 = vmatprep.mubr.f32.mxu0 0.0
    %2313 = vmatmul.mubr.f32.gmra.mxu0 %v2224
    %v2314 = vpop.f32.mrf.mxu0
    %v2315 = vadd.f32 %v2246, %v2314
    %v2316 = vpop.f32.mrf.mxu0
    %2317 = vdwg.mxu0
    %vm2318 = vcmask 27648
    %2319 = vst.msk [vmem:[#allocation9] sm:$0xf] %vm2318, %v2315
    // Predicated region
    $region62: #{bilstm_forward.1} parent=1 // pred_check
      _
    $region63: #{bilstm_forward.1} parent=1 // pred_check_branch
      %2321 = sbr.rel (0) target = $region65
    $region64: #{bilstm_forward.1} parent=1 // pred_region
      %s2323 = ssub.s32 64, 64
      %2324 = vsyncadd [#allocation5], %s2323
      %s2326 = sshll.u32 [#allocation9], 4
      %s2327 = int_to_ptr.vmem [resolvable:$true] %s2326
      %2329 = dma.vmem_to_hbm [thread:$0]  %s2327, 64, %s12, [#allocation5]
    $region65: #{bilstm_forward.1} parent=1 // pred_fallthru
      _
    // Predicated region
    $region66: #{bilstm_forward.1} parent=1 // pred_check
      _
    $region67: #{bilstm_forward.1} parent=1 // pred_check_branch
      %2331 = sbr.rel (0) target = $region69
    $region68: #{bilstm_forward.1} parent=1 // pred_region
      %2332 = dma.done [#allocation5], 64
    $region69: #{bilstm_forward.1} parent=1 // pred_fallthru
      _
    %2333 = vsyncpa [#allocation4], 1
    %2334 = vsyncpa [#allocation7], 1
    %2335 = vsyncpa [#allocation5], 1

</llo_original>
